<compile_context>
chip_gen: v5e
topology: v5e:2x2
jax: 0.10.0
libtpu: 0.0.40
codegen_flags: <defaults>
</compile_context>

<pallas_src>
import functools
import math

import jax
import jax.numpy as jnp
from jax.experimental import pallas as pl
from jax.experimental.pallas import tpu as pltpu

# MXU operand / activation dtype; all accumulation stays in float32.
COMPUTE_DTYPE = jnp.bfloat16
LN_EPS = 1e-5          # torch.nn.LayerNorm default
NEG_BIG = -1e9         # stand-in for -inf (avoids NaN on fully-masked rows)


# ----------------------------------------------------------------------------
# Small helpers
# ----------------------------------------------------------------------------
def _round_up(x, m):
    return (x + m - 1) // m * m


def _row_tile(m):
    # Big row tiles amortize the ~0.35 us per-grid-step overhead; multiple of
    # 16 keeps bf16 sublane packing clean.  For the demo M=16 -> tile 16, so
    # no padding / slicing ops are emitted at all.
    if m >= 512:
        return 512
    if m >= 256:
        return 256
    return max(16, _round_up(m, 16))


def _col_tile(n):
    # Tile the output dim of linear() so large weights (real vocab proj /
    # d_model) are streamed instead of held fully VMEM resident (v7x: 64 MiB).
    return 512 if (n > 512 and n % 512 == 0) else n


def _pad_rows(x2, tm):
    m = x2.shape[0]
    mp = _round_up(m, tm)
    if mp == m:
        return x2
    return jnp.pad(x2, ((0, mp - m), (0, 0)))


def _layer_norm_math(x, g, b):
    x = x.astype(jnp.float32)
    mean = jnp.mean(x, axis=-1, keepdims=True)
    var = jnp.mean(jnp.square(x - mean), axis=-1, keepdims=True)
    return (x - mean) * jax.lax.rsqrt(var + LN_EPS) * g + b


# ----------------------------------------------------------------------------
# Pallas kernels
# ----------------------------------------------------------------------------
def _linear_kernel(x_ref, w_ref, b_ref, o_ref):
    x = x_ref[...].astype(COMPUTE_DTYPE)
    acc = jnp.dot(x, w_ref[...], preferred_element_type=jnp.float32)
    o_ref[...] = (acc + b_ref[...]).astype(o_ref.dtype)


def linear(x2, w, b, out_dtype=COMPUTE_DTYPE):
    """(M, Din) @ (Din, Dout) + (1, Dout) -> (M, Dout); M row-tiled, Dout N-tiled."""
    m, d_in = x2.shape
    d_out = w.shape[1]
    tm = _row_tile(m)
    tn = _col_tile(d_out)
    xp = _pad_rows(x2, tm)
    mp = xp.shape[0]
    out = pl.pallas_call(
        _linear_kernel,
        out_shape=jax.ShapeDtypeStruct((mp, d_out), out_dtype),
        grid_spec=pltpu.PrefetchScalarGridSpec(
            num_scalar_prefetch=0,
            grid=(mp // tm, d_out // tn),
            in_specs=[
                pl.BlockSpec((tm, d_in), lambda i, j: (i, 0)),
                pl.BlockSpec((d_in, tn), lambda i, j: (0, j)),
                pl.BlockSpec((1, tn), lambda i, j: (0, j)),
            ],
            out_specs=pl.BlockSpec((tm, tn), lambda i, j: (i, j)),
        ),
        compiler_params=pltpu.CompilerParams(
            dimension_semantics=("parallel", "parallel")),
    )(xp, w, b)
    return out if mp == m else out[:m]


def _linear_res_ln_kernel(x_ref, w_ref, b_ref, r_ref, g_ref, beta_ref, o_ref):
    x = x_ref[...].astype(COMPUTE_DTYPE)
    h = jnp.dot(x, w_ref[...], preferred_element_type=jnp.float32)
    h = h + b_ref[...] + r_ref[...].astype(jnp.float32)          # bias + residual
    o_ref[...] = _layer_norm_math(h, g_ref[...], beta_ref[...]).astype(o_ref.dtype)


def linear_res_ln(x2, w, b, res2, g, beta):
    """LayerNorm(x2 @ w + b + res2); fused output-projection epilogue."""
    m, d_in = x2.shape
    d_out = w.shape[1]
    tm = _row_tile(m)
    xp = _pad_rows(x2, tm)
    rp = _pad_rows(res2, tm)
    mp = xp.shape[0]
    out = pl.pallas_call(
        _linear_res_ln_kernel,
        out_shape=jax.ShapeDtypeStruct((mp, d_out), COMPUTE_DTYPE),
        grid_spec=pltpu.PrefetchScalarGridSpec(
            num_scalar_prefetch=0,
            grid=(mp // tm,),
            in_specs=[
                pl.BlockSpec((tm, d_in), lambda i: (i, 0)),
                # LN needs the whole row, so the (E, E) weight stays resident.
                pl.BlockSpec((d_in, d_out), lambda i: (0, 0)),
                pl.BlockSpec((1, d_out), lambda i: (0, 0)),
                pl.BlockSpec((tm, d_out), lambda i: (i, 0)),
                pl.BlockSpec((1, d_out), lambda i: (0, 0)),
                pl.BlockSpec((1, d_out), lambda i: (0, 0)),
            ],
            out_specs=pl.BlockSpec((tm, d_out), lambda i: (i, 0)),
        ),
        compiler_params=pltpu.CompilerParams(dimension_semantics=("parallel",)),
    )(xp, w, b, rp, g, beta)
    return out if mp == m else out[:m]


def _ffn_res_ln_kernel(x_ref, w1_ref, b1_ref, w2_ref, b2_ref, g_ref, beta_ref,
                       o_ref, acc_ref):
    kf = pl.program_id(1)

    @pl.when(kf == 0)
    def _():
        # Fuse the second bias into the accumulator init.
        acc_ref[...] = jnp.broadcast_to(b2_ref[...], acc_ref.shape)

    x = x_ref[...].astype(COMPUTE_DTYPE)
    h = jnp.dot(x, w1_ref[...], preferred_element_type=jnp.float32) + b1_ref[...]
    h = jnp.maximum(h, 0.0).astype(COMPUTE_DTYPE)   # ReLU, bf16 for 2nd MXU pass
    # Dropout(p=0.1) after ReLU: identity in eval mode.
    acc_ref[...] += jnp.dot(h, w2_ref[...], preferred_element_type=jnp.float32)

    @pl.when(kf == pl.num_programs(1) - 1)
    def _():
        y = acc_ref[...] + x_ref[...].astype(jnp.float32)        # residual = FFN input
        o_ref[...] = _layer_norm_math(y, g_ref[...], beta_ref[...]).astype(o_ref.dtype)


def ffn_res_ln(x2, w1, b1, w2, b2, g, beta):
    """LayerNorm(FFN(x2) + x2) with a d_ff-tiled f32 VMEM accumulator."""
    m, d_model = x2.shape
    d_ff = w1.shape[1]
    tm = _row_tile(m)
    tff = 512 if (d_ff > 512 and d_ff % 512 == 0) else d_ff
    xp = _pad_rows(x2, tm)
    mp = xp.shape[0]
    out = pl.pallas_call(
        _ffn_res_ln_kernel,
        out_shape=jax.ShapeDtypeStruct((mp, d_model), COMPUTE_DTYPE),
        grid_spec=pltpu.PrefetchScalarGridSpec(
            num_scalar_prefetch=0,
            grid=(mp // tm, d_ff // tff),
            in_specs=[
                pl.BlockSpec((tm, d_model), lambda i, k: (i, 0)),
                pl.BlockSpec((d_model, tff), lambda i, k: (0, k)),
                pl.BlockSpec((1, tff), lambda i, k: (0, k)),
                pl.BlockSpec((tff, d_model), lambda i, k: (k, 0)),
                pl.BlockSpec((1, d_model), lambda i, k: (0, 0)),
                pl.BlockSpec((1, d_model), lambda i, k: (0, 0)),
                pl.BlockSpec((1, d_model), lambda i, k: (0, 0)),
            ],
            out_specs=pl.BlockSpec((tm, d_model), lambda i, k: (i, 0)),
            scratch_shapes=[pltpu.VMEM((tm, d_model), jnp.float32)],
        ),
        compiler_params=pltpu.CompilerParams(
            dimension_semantics=("parallel", "arbitrary")),
    )(xp, w1, b1, w2, b2, g, beta)
    return out if mp == m else out[:m]


def _sdpa_core(q, k, v, bias, scale):
    """q (H,Sq,hd), k/v (H,Skv,hd), bias None or broadcastable to (H,Sq,Skv)."""
    # Contract on the last dims (no explicit K transpose through the XLU).
    s = jax.lax.dot_general(q, k, (((2,), (2,)), ((0,), (0,))),
                            preferred_element_type=jnp.float32) * scale
    if bias is not None:
        s = s + bias
    s = s - jnp.max(s, axis=-1, keepdims=True)
    p = jnp.exp(s)
    l = jnp.sum(p, axis=-1, keepdims=True)
    p = p * pl.reciprocal(l, approx=True)           # EUP slot, frees VALU
    # Dropout(p=0.1) on attention weights: identity in eval mode.
    return jax.lax.dot_general(p.astype(v.dtype), v, (((2,), (1,)), ((0,), (0,))),
                               preferred_element_type=jnp.float32)


def _sdpa_mask_kernel(q_ref, k_ref, v_ref, m_ref, o_ref, *, scale):
    # Padding mask built in-kernel from the (1, Skv) 0/1 row -- no (B,Sq,Skv)
    # f32 bias ever touches HBM.
    bias = jnp.where(m_ref[0] == 0, NEG_BIG, 0.0)[None]          # (1,1,Skv)
    o_ref[0] = _sdpa_core(q_ref[0], k_ref[0], v_ref[0], bias, scale).astype(o_ref.dtype)


def _sdpa_nomask_kernel(q_ref, k_ref, v_ref, o_ref, *, scale, causal):
    if causal:
        sq, skv = q_ref.shape[2], k_ref.shape[2]
        row = jax.lax.broadcasted_iota(jnp.int32, (sq, skv), 0)
        col = jax.lax.broadcasted_iota(jnp.int32, (sq, skv), 1)
        bias = jnp.where(row >= col, 0.0, NEG_BIG)[None]         # (1,Sq,Skv)
    else:
        bias = None
    o_ref[0] = _sdpa_core(q_ref[0], k_ref[0], v_ref[0], bias, scale).astype(o_ref.dtype)


def sdpa(q, k, v, mask01=None, causal=False):
    """q,k,v: (B, H, S, hd) bf16.  One grid step per batch, all heads in-block."""
    batch, n_heads, sq, hd = q.shape
    skv = k.shape[2]
    scale = 1.0 / math.sqrt(hd)
    qkv_specs = [
        pl.BlockSpec((1, n_heads, sq, hd), lambda b: (b, 0, 0, 0)),
        pl.BlockSpec((1, n_heads, skv, hd), lambda b: (b, 0, 0, 0)),
        pl.BlockSpec((1, n_heads, skv, hd), lambda b: (b, 0, 0, 0)),
    ]
    args = [q.astype(COMPUTE_DTYPE), k.astype(COMPUTE_DTYPE), v.astype(COMPUTE_DTYPE)]
    if causal or mask01 is None:
        kern = functools.partial(_sdpa_nomask_kernel, scale=scale, causal=causal)
        in_specs = qkv_specs
    else:
        kern = functools.partial(_sdpa_mask_kernel, scale=scale)
        in_specs = qkv_specs + [pl.BlockSpec((1, 1, skv), lambda b: (b, 0, 0))]
        args.append(mask01.reshape(batch, 1, skv).astype(jnp.int32))
    return pl.pallas_call(
        kern,
        out_shape=jax.ShapeDtypeStruct((batch, n_heads, sq, hd), COMPUTE_DTYPE),
        grid_spec=pltpu.PrefetchScalarGridSpec(
            num_scalar_prefetch=0,
            grid=(batch,),
            in_specs=in_specs,
            out_specs=pl.BlockSpec((1, n_heads, sq, hd), lambda b: (b, 0, 0, 0)),
        ),
        compiler_params=pltpu.CompilerParams(dimension_semantics=("parallel",)),
    )(*args)


PALLAS_OPS = {"linear": linear, "linear_res_ln": linear_res_ln,
              "ffn_res_ln": ffn_res_ln, "sdpa": sdpa}


# ----------------------------------------------------------------------------
# Pure-JAX reference ops (same dtype flow -> tight numerical comparison)
# ----------------------------------------------------------------------------
def make_ref_ops():
    def linear_ref(x2, w, b, out_dtype=COMPUTE_DTYPE):
        h = jnp.dot(x2.astype(COMPUTE_DTYPE), w,
                    preferred_element_type=jnp.float32) + b
        return h.astype(out_dtype)

    def linear_res_ln_ref(x2, w, b, res2, g, beta):
        h = jnp.dot(x2.astype(COMPUTE_DTYPE), w, preferred_element_type=jnp.float32)
        h = h + b + res2.astype(jnp.float32)
        return _layer_norm_math(h, g, beta).astype(COMPUTE_DTYPE)

    def ffn_res_ln_ref(x2, w1, b1, w2, b2, g, beta):
        h = jnp.dot(x2.astype(COMPUTE_DTYPE), w1,
                    preferred_element_type=jnp.float32) + b1
        h = jnp.maximum(h, 0.0).astype(COMPUTE_DTYPE)
        y = jnp.dot(h, w2, preferred_element_type=jnp.float32) + b2
        y = y + x2.astype(jnp.float32)
        return _layer_norm_math(y, g, beta).astype(COMPUTE_DTYPE)

    def sdpa_ref(q, k, v, mask01=None, causal=False):
        _, _, sq, hd = q.shape
        skv = k.shape[2]
        scale = 1.0 / math.sqrt(hd)
        s = jnp.einsum('bhqd,bhkd->bhqk', q.astype(COMPUTE_DTYPE),
                       k.astype(COMPUTE_DTYPE),
                       preferred_element_type=jnp.float32) * scale
        if causal:
            row = jax.lax.broadcasted_iota(jnp.int32, (sq, skv), 0)
            col = jax.lax.broadcasted_iota(jnp.int32, (sq, skv), 1)
            s = s + jnp.where(row >= col, 0.0, NEG_BIG)
        elif mask01 is not None:
            s = s + jnp.where(mask01[:, None, None, :] == 0, NEG_BIG, 0.0)
        s = s - jnp.max(s, axis=-1, keepdims=True)
        p = jnp.exp(s)
        p = p / jnp.sum(p, axis=-1, keepdims=True)
        o = jnp.einsum('bhqk,bhkd->bhqd', p.astype(COMPUTE_DTYPE),
                       v.astype(COMPUTE_DTYPE), preferred_element_type=jnp.float32)
        return o.astype(COMPUTE_DTYPE)

    return {"linear": linear_ref, "linear_res_ln": linear_res_ln_ref,
            "ffn_res_ln": ffn_res_ln_ref, "sdpa": sdpa_ref}


# ----------------------------------------------------------------------------
# Model composition (mirrors the PyTorch module structure, eval semantics)
# ----------------------------------------------------------------------------
def positional_encoding(seq_len, embed_size):
    pos = jnp.arange(seq_len, dtype=jnp.float32)[:, None]
    i2 = jnp.arange(0, embed_size, 2, dtype=jnp.float32)
    div = jnp.exp(-math.log(10000.0) * i2 / embed_size)
    ang = pos * div                                              # (S, E/2)
    return jnp.stack([jnp.sin(ang), jnp.cos(ang)], axis=-1).reshape(seq_len, embed_size)


def multi_head_self_attention(ops, p, x2, batch, seq, mask01, causal, n_heads):
    e = x2.shape[1]
    hd = e // n_heads
    # Fused Q/K/V projection: one pallas_call, x tile DMA'd once.
    qkv = ops["linear"](x2, p["wqkv"], p["bqkv"])                # (B*S, 3E) bf16
    # NOTE: the reference module uses .view(B, H, S, hd) -- a plain reshape,
    # not the usual transpose-based head split; replicate that exactly.
    q = qkv[:, :e].reshape(batch, n_heads, seq, hd)
    k = qkv[:, e:2 * e].reshape(batch, n_heads, seq, hd)
    v = qkv[:, 2 * e:].reshape(batch, n_heads, seq, hd)
    attn = ops["sdpa"](q, k, v, mask01=mask01, causal=causal)    # (B, H, S, hd)
    return attn.reshape(batch * seq, e)


def multi_head_cross_attention(ops, p, x2, mem2, batch, sq, skv, mask01, n_heads):
    e = x2.shape[1]
    hd = e // n_heads
    q2 = ops["linear"](x2, p["wq"], p["bq"])                     # (B*Sq, E)
    kv = ops["linear"](mem2, p["wkv"], p["bkv"])                 # (B*Skv, 2E)
    q = q2.reshape(batch, n_heads, sq, hd)
    k = kv[:, :e].reshape(batch, n_heads, skv, hd)
    v = kv[:, e:].reshape(batch, n_heads, skv, hd)
    attn = ops["sdpa"](q, k, v, mask01=mask01, causal=False)
    return attn.reshape(batch * sq, e)


def encoder_block(ops, p, x2, batch, seq, mask01, n_heads):
    a2 = multi_head_self_attention(ops, p["mha"], x2, batch, seq, mask01, False, n_heads)
    # output proj + residual + LN1 fused
    x2 = ops["linear_res_ln"](a2, p["mha"]["wo"], p["mha"]["bo"], x2,
                              p["ln1"]["g"], p["ln1"]["b"])
    # FFN + residual + LN2 fused
    x2 = ops["ffn_res_ln"](x2, p["ffn"]["w1"], p["ffn"]["b1"],
                           p["ffn"]["w2"], p["ffn"]["b2"],
                           p["ln2"]["g"], p["ln2"]["b"])
    return x2


def decoder_block(ops, p, x2, mem2, batch, s_tgt, s_src, src_mask01, n_heads):
    a2 = multi_head_self_attention(ops, p["mmha"], x2, batch, s_tgt, None, True, n_heads)
    x2 = ops["linear_res_ln"](a2, p["mmha"]["wo"], p["mmha"]["bo"], x2,
                              p["ln1"]["g"], p["ln1"]["b"])
    c2 = multi_head_cross_attention(ops, p["mha"], x2, mem2, batch, s_tgt, s_src,
                                    src_mask01, n_heads)
    x2 = ops["linear_res_ln"](c2, p["mha"]["wo"], p["mha"]["bo"], x2,
                              p["ln2"]["g"], p["ln2"]["b"])
    x2 = ops["ffn_res_ln"](x2, p["ffn"]["w1"], p["ffn"]["b1"],
                           p["ffn"]["w2"], p["ffn"]["b2"],
                           p["ln3"]["g"], p["ln3"]["b"])
    return x2


def transformer_forward(ops, n_heads, params, src, tgt, src_mask=None):
    batch, s_src = src.shape
    s_tgt = tgt.shape[1]
    e = params["embedding"].shape[1]
    pos = positional_encoding(max(s_src, s_tgt), e)

    # Embedding + positional encoding (+ Dropout = identity).  Gather stays in
    # JAX; activations are cast to bf16 ONCE and stay bf16 through the stack.
    mem2 = (params["embedding"][src] + pos[:s_src]).reshape(batch * s_src, e)
    mem2 = mem2.astype(COMPUTE_DTYPE)
    for blk in params["encoder"]:
        mem2 = encoder_block(ops, blk, mem2, batch, s_src, src_mask, n_heads)

    x2 = (params["embedding"][tgt] + pos[:s_tgt]).reshape(batch * s_tgt, e)
    x2 = x2.astype(COMPUTE_DTYPE)
    for blk in params["decoder"]:
        x2 = decoder_block(ops, blk, x2, mem2, batch, s_tgt, s_src, src_mask, n_heads)

    logits = ops["linear"](x2, params["proj"]["w"], params["proj"]["b"],
                           out_dtype=jnp.float32)
    return logits.reshape(batch, s_tgt, -1)


# ----------------------------------------------------------------------------
# Parameter init (matches torch defaults) + one-time kernel-friendly prep
# ----------------------------------------------------------------------------
def _init_linear_params(key, fan_in, fan_out):
    kw, kb = jax.random.split(key)
    bound = 1.0 / math.sqrt(fan_in)
    return {"w": jax.random.uniform(kw, (fan_in, fan_out), jnp.float32, -bound, bound),
            "b": jax.random.uniform(kb, (fan_out,), jnp.float32, -bound, bound)}


def _init_mha_params(key, e):
    kq, kk, kv, ko = jax.random.split(key, 4)
    return {"q": _init_linear_params(kq, e, e), "k": _init_linear_params(kk, e, e),
            "v": _init_linear_params(kv, e, e), "o": _init_linear_params(ko, e, e)}


def _init_ffn_params(key, d_model, d_ff):
    k1, k2 = jax.random.split(key)
    return {"lin1": _init_linear_params(k1, d_model, d_ff),
            "lin2": _init_linear_params(k2, d_ff, d_model)}


def _init_ln_params(d):
    return {"g": jnp.ones((d,), jnp.float32), "b": jnp.zeros((d,), jnp.float32)}


def _init_encoder_block(key, e, d_ff):
    k1, k2 = jax.random.split(key)
    return {"mha": _init_mha_params(k1, e), "ffn": _init_ffn_params(k2, e, d_ff),
            "ln1": _init_ln_params(e), "ln2": _init_ln_params(e)}


def _init_decoder_block(key, e, d_ff):
    k1, k2, k3 = jax.random.split(key, 3)
    return {"mmha": _init_mha_params(k1, e), "mha": _init_mha_params(k2, e),
            "ffn": _init_ffn_params(k3, e, d_ff),
            "ln1": _init_ln_params(e), "ln2": _init_ln_params(e), "ln3": _init_ln_params(e)}


def init_transformer_params(key, vocab_size, n_enc, n_dec, e, d_ff):
    keys = jax.random.split(key, n_enc + n_dec + 2)
    enc = [_init_encoder_block(keys[i], e, d_ff) for i in range(n_enc)]
    dec = [_init_decoder_block(keys[n_enc + i], e, d_ff) for i in range(n_dec)]
    return {"embedding": jax.random.normal(keys[-2], (vocab_size, e), jnp.float32),
            "encoder": enc, "decoder": dec,
            "proj": _init_linear_params(keys[-1], e, vocab_size)}


def _prep_mha_self(p):
    return {"wqkv": jnp.concatenate([p["q"]["w"], p["k"]["w"], p["v"]["w"]],
                                    axis=1).astype(COMPUTE_DTYPE),
            "bqkv": jnp.concatenate([p["q"]["b"], p["k"]["b"], p["v"]["b"]]
                                    )[None, :].astype(jnp.float32),
            "wo": p["o"]["w"].astype(COMPUTE_DTYPE),
            "bo": p["o"]["b"][None, :].astype(jnp.float32)}


def _prep_mha_cross(p):
    return {"wq": p["q"]["w"].astype(COMPUTE_DTYPE),
            "bq": p["q"]["b"][None, :].astype(jnp.float32),
            "wkv": jnp.concatenate([p["k"]["w"], p["v"]["w"]], axis=1).astype(COMPUTE_DTYPE),
            "bkv": jnp.concatenate([p["k"]["b"], p["v"]["b"]])[None, :].astype(jnp.float32),
            "wo": p["o"]["w"].astype(COMPUTE_DTYPE),
            "bo": p["o"]["b"][None, :].astype(jnp.float32)}


def _prep_ffn(p):
    return {"w1": p["lin1"]["w"].astype(COMPUTE_DTYPE),
            "b1": p["lin1"]["b"][None, :].astype(jnp.float32),
            "w2": p["lin2"]["w"].astype(COMPUTE_DTYPE),
            "b2": p["lin2"]["b"][None, :].astype(jnp.float32)}


def _prep_ln(p):
    return {"g": p["g"][None, :].astype(jnp.float32),
            "b": p["b"][None, :].astype(jnp.float32)}


def prepare_params(raw):
    """One-time (outside jit): fuse QKV / KV weights, cast weights to bf16."""
    enc = [{"mha": _prep_mha_self(b["mha"]), "ffn": _prep_ffn(b["ffn"]),
            "ln1": _prep_ln(b["ln1"]), "ln2": _prep_ln(b["ln2"])}
           for b in raw["encoder"]]
    dec = [{"mmha": _prep_mha_self(b["mmha"]), "mha": _prep_mha_cross(b["mha"]),
            "ffn": _prep_ffn(b["ffn"]), "ln1": _prep_ln(b["ln1"]),
            "ln2": _prep_ln(b["ln2"]), "ln3": _prep_ln(b["ln3"])}
           for b in raw["decoder"]]
    return {"embedding": raw["embedding"],
            "encoder": enc, "decoder": dec,
            "proj": {"w": raw["proj"]["w"].astype(COMPUTE_DTYPE),
                     "b": raw["proj"]["b"][None, :].astype(jnp.float32)}}


# ----------------------------------------------------------------------------
if __name__ == "__main__":
    VOCAB, EMBED, D_FF = 128, 128, 256      # lane-dense (multiples of 128)
    N_HEADS, N_ENC, N_DEC = 4, 2, 2
    B, S_SRC, S_TGT = 2, 8, 8

    key = jax.random.PRNGKey(0)
    k_params, k_src, k_tgt = jax.random.split(key, 3)
    raw_params = init_transformer_params(k_params, VOCAB, N_ENC, N_DEC, EMBED, D_FF)
    params = prepare_params(raw_params)     # bf16 / fused weights built ONCE

    src = jax.random.randint(k_src, (B, S_SRC), 0, VOCAB)
    tgt = jax.random.randint(k_tgt, (B, S_TGT), 0, VOCAB)
    # src padding mask: batch 0 fully valid, batch 1 has 2 padded positions.
    src_mask = jnp.array([[1, 1, 1, 1, 1, 1, 1, 1],
                          [1, 1, 1, 1, 1, 1, 0, 0]], dtype=jnp.int32)

    fwd = jax.jit(functools.partial(transformer_forward, PALLAS_OPS, N_HEADS))
    logits = fwd(params, src, tgt, src_mask)
    jax.block_until_ready(logits)

    ref_fwd = jax.jit(functools.partial(transformer_forward, make_ref_ops(), N_HEADS))
    ref = ref_fwd(params, src, tgt, src_mask)
    jax.block_until_ready(ref)

    assert logits.shape == (B, S_TGT, VOCAB)
    assert bool(jnp.all(jnp.isfinite(logits)))
    max_err = float(jnp.max(jnp.abs(logits - ref)))
    assert max_err < 5e-2, f"mismatch vs reference: {max_err}"

    print("KERNEL_OK")
</pallas_src>

<mosaic_0001>
module attributes {stable_mosaic.version = 11 : i64} {
  func.func @_linear_kernel(%arg0: i32, %arg1: i32, %arg2: memref<16x128xbf16, #tpu.memory_space<vmem>>, %arg3: memref<128x384xbf16, #tpu.memory_space<vmem>>, %arg4: memref<1x384xf32, #tpu.memory_space<vmem>>, %arg5: memref<16x384xbf16, #tpu.memory_space<vmem>>) attributes {dimension_semantics = [#tpu.dimension_semantics<parallel>, #tpu.dimension_semantics<parallel>], iteration_bounds = array<i64: 1, 1>, scalar_prefetch = 0 : i64, scratch_operands = 0 : i64, tpu.core_type = #tpu.core_type<tc>, window_params = [{transform_indices = @transform_0, window_bounds = array<i64: 16, 128>}, {transform_indices = @transform_1, window_bounds = array<i64: 128, 384>}, {transform_indices = @transform_2, window_bounds = array<i64: 1, 384>}, {transform_indices = @transform_3, window_bounds = array<i64: 16, 384>}]} {
    %c0 = arith.constant 0 : index
    %c0_0 = arith.constant 0 : index
    %0 = vector.load %arg2[%c0, %c0_0] : memref<16x128xbf16, #tpu.memory_space<vmem>>, vector<16x128xbf16>
    %c0_1 = arith.constant 0 : index
    %c0_2 = arith.constant 0 : index
    %1 = vector.load %arg3[%c0_1, %c0_2] : memref<128x384xbf16, #tpu.memory_space<vmem>>, vector<128x384xbf16>
    %cst = arith.constant dense<0.000000e+00> : vector<16x384xf32>
    %2 = tpu.matmul %0, %1, %cst {dimension_numbers = #tpu.dot_dimension_numbers<[1], [0], [0], [1], [0, 0, 1, 1], [], []>} : vector<16x128xbf16>, vector<128x384xbf16>, vector<16x384xf32> -> vector<16x384xf32>
    %c0_3 = arith.constant 0 : index
    %c0_4 = arith.constant 0 : index
    %3 = vector.load %arg4[%c0_3, %c0_4] : memref<1x384xf32, #tpu.memory_space<vmem>>, vector<1x384xf32>
    %4 = vector.broadcast %3 : vector<1x384xf32> to vector<16x384xf32>
    %5 = arith.addf %2, %4 : vector<16x384xf32>
    %6 = arith.truncf %5 : vector<16x384xf32> to vector<16x384xbf16>
    %c0_5 = arith.constant 0 : index
    %c0_6 = arith.constant 0 : index
    %7 = vector.load %arg5[%c0_5, %c0_6] : memref<16x384xbf16, #tpu.memory_space<vmem>>, vector<16x384xbf16>
    tpu.vector_store %arg5[%c0_5, %c0_6], %6 {strides = array<i32>} : memref<16x384xbf16, #tpu.memory_space<vmem>>, vector<16x384xbf16>,
    return
  }
  func.func @transform_0(%arg0: i32, %arg1: i32) -> (i32, i32) {
    %c0_i32 = arith.constant 0 : i32
    %c0_i32_0 = arith.constant 0 : i32
    return %arg0, %c0_i32 : i32, i32
  }
  func.func @transform_1(%arg0: i32, %arg1: i32) -> (i32, i32) {
    %c0_i32 = arith.constant 0 : i32
    %c0_i32_0 = arith.constant 0 : i32
    return %c0_i32, %arg1 : i32, i32
  }
  func.func @transform_2(%arg0: i32, %arg1: i32) -> (i32, i32) {
    %c0_i32 = arith.constant 0 : i32
    %c0_i32_0 = arith.constant 0 : i32
    return %c0_i32, %arg1 : i32, i32
  }
  func.func @transform_3(%arg0: i32, %arg1: i32) -> (i32, i32) {
    %c0_i32 = arith.constant 0 : i32
    return %arg0, %arg1 : i32, i32
  }
}

module attributes {stable_mosaic.version = 11 : i64} {
  func.func @_sdpa_nomask_kernel(%arg0: i32, %arg1: memref<1x4x8x32xbf16, #tpu.memory_space<vmem>>, %arg2: memref<1x4x8x32xbf16, #tpu.memory_space<vmem>>, %arg3: memref<1x4x8x32xbf16, #tpu.memory_space<vmem>>, %arg4: memref<1x4x8x32xbf16, #tpu.memory_space<vmem>>) attributes {dimension_semantics = [#tpu.dimension_semantics<parallel>], iteration_bounds = array<i64: 2>, scalar_prefetch = 0 : i64, scratch_operands = 0 : i64, tpu.core_type = #tpu.core_type<tc>, window_params = [{transform_indices = @transform_0, window_bounds = array<i64: 1, 4, 8, 32>}, {transform_indices = @transform_1, window_bounds = array<i64: 1, 4, 8, 32>}, {transform_indices = @transform_2, window_bounds = array<i64: 1, 4, 8, 32>}, {transform_indices = @transform_3, window_bounds = array<i64: 1, 4, 8, 32>}]} {
    %0 = tpu.iota {dimensions = array<i32: 0>} : vector<8x8xi32>
    %1 = tpu.iota {dimensions = array<i32: 1>} : vector<8x8xi32>
    %2 = arith.cmpi sge, %0, %1 : vector<8x8xi32>
    %cst = arith.constant 0.000000e+00 : f32
    %cst_0 = arith.constant -1.000000e+09 : f32
    %3 = vector.broadcast %cst : f32 to vector<8x8xf32>
    %4 = vector.broadcast %cst_0 : f32 to vector<8x8xf32>
    %5 = arith.select %2, %3, %4 : vector<8x8xi1>, vector<8x8xf32>
    %6 = vector.shape_cast %5 : vector<8x8xf32> to vector<1x8x8xf32>
    %c0 = arith.constant 0 : index
    %c0_1 = arith.constant 0 : index
    %c0_2 = arith.constant 0 : index
    %c0_3 = arith.constant 0 : index
    %7 = vector.load %arg1[%c0, %c0_1, %c0_2, %c0_3] : memref<1x4x8x32xbf16, #tpu.memory_space<vmem>>, vector<1x4x8x32xbf16>
    %8 = vector.shape_cast %7 : vector<1x4x8x32xbf16> to vector<4x8x32xbf16>
    %c0_4 = arith.constant 0 : index
    %c0_5 = arith.constant 0 : index
    %c0_6 = arith.constant 0 : index
    %c0_7 = arith.constant 0 : index
    %9 = vector.load %arg2[%c0_4, %c0_5, %c0_6, %c0_7] : memref<1x4x8x32xbf16, #tpu.memory_space<vmem>>, vector<1x4x8x32xbf16>
    %10 = vector.shape_cast %9 : vector<1x4x8x32xbf16> to vector<4x8x32xbf16>
    %c0_8 = arith.constant 0 : index
    %c0_9 = arith.constant 0 : index
    %c0_10 = arith.constant 0 : index
    %c0_11 = arith.constant 0 : index
    %11 = vector.load %arg3[%c0_8, %c0_9, %c0_10, %c0_11] : memref<1x4x8x32xbf16, #tpu.memory_space<vmem>>, vector<1x4x8x32xbf16>
    %12 = vector.shape_cast %11 : vector<1x4x8x32xbf16> to vector<4x8x32xbf16>
    %cst_12 = arith.constant dense<0.000000e+00> : vector<4x8x8xf32>
    %13 = tpu.matmul %8, %10, %cst_12 {dimension_numbers = #tpu.dot_dimension_numbers<[2], [2], [1], [1], [0, 0, 0, 1, 1, 1], [0], [0]>} : vector<4x8x32xbf16>, vector<4x8x32xbf16>, vector<4x8x8xf32> -> vector<4x8x8xf32>
    %cst_13 = arith.constant 0.176776692 : f32
    %14 = vector.broadcast %cst_13 : f32 to vector<4x8x8xf32>
    %15 = arith.mulf %13, %14 : vector<4x8x8xf32>
    %16 = vector.broadcast %6 : vector<1x8x8xf32> to vector<4x8x8xf32>
    %17 = arith.addf %15, %16 : vector<4x8x8xf32>
    %cst_14 = arith.constant dense<0xFF800000> : vector<4x8xf32>
    %18 = vector.multi_reduction <maximumf>, %17, %cst_14 [2] : vector<4x8x8xf32> to vector<4x8xf32>
    %19 = vector.shape_cast %18 : vector<4x8xf32> to vector<4x8x1xf32>
    %20 = vector.broadcast %19 : vector<4x8x1xf32> to vector<4x8x8xf32>
    %21 = arith.subf %17, %20 : vector<4x8x8xf32>
    %22 = math.exp %21 : vector<4x8x8xf32>
    %cst_15 = arith.constant dense<0.000000e+00> : vector<4x8xf32>
    %23 = vector.multi_reduction <add>, %22, %cst_15 [2] : vector<4x8x8xf32> to vector<4x8xf32>
    %24 = vector.shape_cast %23 : vector<4x8xf32> to vector<4x8x1xf32>
    %25 = tpu.reciprocal %24 {approx = true} : vector<4x8x1xf32> -> vector<4x8x1xf32>
    %26 = vector.broadcast %25 : vector<4x8x1xf32> to vector<4x8x8xf32>
    %27 = arith.mulf %22, %26 : vector<4x8x8xf32>
    %28 = arith.truncf %27 : vector<4x8x8xf32> to vector<4x8x8xbf16>
    %cst_16 = arith.constant dense<0.000000e+00> : vector<4x8x32xf32>
    %29 = tpu.matmul %28, %12, %cst_16 {dimension_numbers = #tpu.dot_dimension_numbers<[2], [1], [1], [2], [0, 0, 0, 1, 1, 2], [0], [0]>} : vector<4x8x8xbf16>, vector<4x8x32xbf16>, vector<4x8x32xf32> -> vector<4x8x32xf32>
    %30 = arith.truncf %29 : vector<4x8x32xf32> to vector<4x8x32xbf16>
    %c0_17 = arith.constant 0 : index
    %c0_18 = arith.constant 0 : index
    %c0_19 = arith.constant 0 : index
    %c0_20 = arith.constant 0 : index
    %31 = vector.load %arg4[%c0_17, %c0_18, %c0_19, %c0_20] : memref<1x4x8x32xbf16, #tpu.memory_space<vmem>>, vector<1x4x8x32xbf16>
    %32 = vector.shape_cast %31 : vector<1x4x8x32xbf16> to vector<4x8x32xbf16>
    %33 = vector.shape_cast %30 : vector<4x8x32xbf16> to vector<1x4x8x32xbf16>
    tpu.vector_store %arg4[%c0_17, %c0_18, %c0_19, %c0_20], %33 {strides = array<i32>} : memref<1x4x8x32xbf16, #tpu.memory_space<vmem>>, vector<1x4x8x32xbf16>,
    return
  }
  func.func @transform_0(%arg0: i32) -> (i32, i32, i32, i32) {
    %c0_i32 = arith.constant 0 : i32
    %c0_i32_0 = arith.constant 0 : i32
    %c0_i32_1 = arith.constant 0 : i32
    %c0_i32_2 = arith.constant 0 : i32
    return %arg0, %c0_i32, %c0_i32_0, %c0_i32_1 : i32, i32, i32, i32
  }
  func.func @transform_1(%arg0: i32) -> (i32, i32, i32, i32) {
    %c0_i32 = arith.constant 0 : i32
    %c0_i32_0 = arith.constant 0 : i32
    %c0_i32_1 = arith.constant 0 : i32
    %c0_i32_2 = arith.constant 0 : i32
    return %arg0, %c0_i32, %c0_i32_0, %c0_i32_1 : i32, i32, i32, i32
  }
  func.func @transform_2(%arg0: i32) -> (i32, i32, i32, i32) {
    %c0_i32 = arith.constant 0 : i32
    %c0_i32_0 = arith.constant 0 : i32
    %c0_i32_1 = arith.constant 0 : i32
    %c0_i32_2 = arith.constant 0 : i32
    return %arg0, %c0_i32, %c0_i32_0, %c0_i32_1 : i32, i32, i32, i32
  }
  func.func @transform_3(%arg0: i32) -> (i32, i32, i32, i32) {
    %c0_i32 = arith.constant 0 : i32
    %c0_i32_0 = arith.constant 0 : i32
    %c0_i32_1 = arith.constant 0 : i32
    %c0_i32_2 = arith.constant 0 : i32
    return %arg0, %c0_i32, %c0_i32_0, %c0_i32_1 : i32, i32, i32, i32
  }
}

module attributes {stable_mosaic.version = 11 : i64} {
  func.func @_linear_kernel(%arg0: i32, %arg1: i32, %arg2: memref<16x128xbf16, #tpu.memory_space<vmem>>, %arg3: memref<128x128xbf16, #tpu.memory_space<vmem>>, %arg4: memref<1x128xf32, #tpu.memory_space<vmem>>, %arg5: memref<16x128xbf16, #tpu.memory_space<vmem>>) attributes {dimension_semantics = [#tpu.dimension_semantics<parallel>, #tpu.dimension_semantics<parallel>], iteration_bounds = array<i64: 1, 1>, scalar_prefetch = 0 : i64, scratch_operands = 0 : i64, tpu.core_type = #tpu.core_type<tc>, window_params = [{transform_indices = @transform_0, window_bounds = array<i64: 16, 128>}, {transform_indices = @transform_1, window_bounds = array<i64: 128, 128>}, {transform_indices = @transform_2, window_bounds = array<i64: 1, 128>}, {transform_indices = @transform_3, window_bounds = array<i64: 16, 128>}]} {
    %c0 = arith.constant 0 : index
    %c0_0 = arith.constant 0 : index
    %0 = vector.load %arg2[%c0, %c0_0] : memref<16x128xbf16, #tpu.memory_space<vmem>>, vector<16x128xbf16>
    %c0_1 = arith.constant 0 : index
    %c0_2 = arith.constant 0 : index
    %1 = vector.load %arg3[%c0_1, %c0_2] : memref<128x128xbf16, #tpu.memory_space<vmem>>, vector<128x128xbf16>
    %cst = arith.constant dense<0.000000e+00> : vector<16x128xf32>
    %2 = tpu.matmul %0, %1, %cst {dimension_numbers = #tpu.dot_dimension_numbers<[1], [0], [0], [1], [0, 0, 1, 1], [], []>} : vector<16x128xbf16>, vector<128x128xbf16>, vector<16x128xf32> -> vector<16x128xf32>
    %c0_3 = arith.constant 0 : index
    %c0_4 = arith.constant 0 : index
    %3 = vector.load %arg4[%c0_3, %c0_4] : memref<1x128xf32, #tpu.memory_space<vmem>>, vector<1x128xf32>
    %4 = vector.broadcast %3 : vector<1x128xf32> to vector<16x128xf32>
    %5 = arith.addf %2, %4 : vector<16x128xf32>
    %6 = arith.truncf %5 : vector<16x128xf32> to vector<16x128xbf16>
    %c0_5 = arith.constant 0 : index
    %c0_6 = arith.constant 0 : index
    %7 = vector.load %arg5[%c0_5, %c0_6] : memref<16x128xbf16, #tpu.memory_space<vmem>>, vector<16x128xbf16>
    tpu.vector_store %arg5[%c0_5, %c0_6], %6 {strides = array<i32>} : memref<16x128xbf16, #tpu.memory_space<vmem>>, vector<16x128xbf16>,
    return
  }
  func.func @transform_0(%arg0: i32, %arg1: i32) -> (i32, i32) {
    %c0_i32 = arith.constant 0 : i32
    %c0_i32_0 = arith.constant 0 : i32
    return %arg0, %c0_i32 : i32, i32
  }
  func.func @transform_1(%arg0: i32, %arg1: i32) -> (i32, i32) {
    %c0_i32 = arith.constant 0 : i32
    %c0_i32_0 = arith.constant 0 : i32
    return %c0_i32, %arg1 : i32, i32
  }
  func.func @transform_2(%arg0: i32, %arg1: i32) -> (i32, i32) {
    %c0_i32 = arith.constant 0 : i32
    %c0_i32_0 = arith.constant 0 : i32
    return %c0_i32, %arg1 : i32, i32
  }
  func.func @transform_3(%arg0: i32, %arg1: i32) -> (i32, i32) {
    %c0_i32 = arith.constant 0 : i32
    return %arg0, %arg1 : i32, i32
  }
}

module attributes {stable_mosaic.version = 11 : i64} {
  func.func @_linear_res_ln_kernel(%arg0: i32, %arg1: memref<16x128xbf16, #tpu.memory_space<vmem>>, %arg2: memref<128x128xbf16, #tpu.memory_space<vmem>>, %arg3: memref<1x128xf32, #tpu.memory_space<vmem>>, %arg4: memref<16x128xbf16, #tpu.memory_space<vmem>>, %arg5: memref<1x128xf32, #tpu.memory_space<vmem>>, %arg6: memref<1x128xf32, #tpu.memory_space<vmem>>, %arg7: memref<16x128xbf16, #tpu.memory_space<vmem>>) attributes {dimension_semantics = [#tpu.dimension_semantics<parallel>], iteration_bounds = array<i64: 1>, scalar_prefetch = 0 : i64, scratch_operands = 0 : i64, tpu.core_type = #tpu.core_type<tc>, window_params = [{transform_indices = @transform_0, window_bounds = array<i64: 16, 128>}, {pipeline_mode = #tpu.pipeline_mode<synchronous>, transform_indices = @transform_1, window_bounds = array<i64: 128, 128>}, {pipeline_mode = #tpu.pipeline_mode<synchronous>, transform_indices = @transform_2, window_bounds = array<i64: 1, 128>}, {transform_indices = @transform_3, window_bounds = array<i64: 16, 128>}, {pipeline_mode = #tpu.pipeline_mode<synchronous>, transform_indices = @transform_4, window_bounds = array<i64: 1, 128>}, {pipeline_mode = #tpu.pipeline_mode<synchronous>, transform_indices = @transform_5, window_bounds = array<i64: 1, 128>}, {transform_indices = @transform_6, window_bounds = array<i64: 16, 128>}]} {
    %c0 = arith.constant 0 : index
    %c0_0 = arith.constant 0 : index
    %0 = vector.load %arg1[%c0, %c0_0] : memref<16x128xbf16, #tpu.memory_space<vmem>>, vector<16x128xbf16>
    %c0_1 = arith.constant 0 : index
    %c0_2 = arith.constant 0 : index
    %1 = vector.load %arg2[%c0_1, %c0_2] : memref<128x128xbf16, #tpu.memory_space<vmem>>, vector<128x128xbf16>
    %cst = arith.constant dense<0.000000e+00> : vector<16x128xf32>
    %2 = tpu.matmul %0, %1, %cst {dimension_numbers = #tpu.dot_dimension_numbers<[1], [0], [0], [1], [0, 0, 1, 1], [], []>} : vector<16x128xbf16>, vector<128x128xbf16>, vector<16x128xf32> -> vector<16x128xf32>
    %c0_3 = arith.constant 0 : index
    %c0_4 = arith.constant 0 : index
    %3 = vector.load %arg3[%c0_3, %c0_4] : memref<1x128xf32, #tpu.memory_space<vmem>>, vector<1x128xf32>
    %4 = vector.broadcast %3 : vector<1x128xf32> to vector<16x128xf32>
    %5 = arith.addf %2, %4 : vector<16x128xf32>
    %c0_5 = arith.constant 0 : index
    %c0_6 = arith.constant 0 : index
    %6 = vector.load %arg4[%c0_5, %c0_6] : memref<16x128xbf16, #tpu.memory_space<vmem>>, vector<16x128xbf16>
    %7 = arith.extf %6 : vector<16x128xbf16> to vector<16x128xf32>
    %8 = arith.addf %5, %7 : vector<16x128xf32>
    %c0_7 = arith.constant 0 : index
    %c0_8 = arith.constant 0 : index
    %9 = vector.load %arg5[%c0_7, %c0_8] : memref<1x128xf32, #tpu.memory_space<vmem>>, vector<1x128xf32>
    %c0_9 = arith.constant 0 : index
    %c0_10 = arith.constant 0 : index
    %10 = vector.load %arg6[%c0_9, %c0_10] : memref<1x128xf32, #tpu.memory_space<vmem>>, vector<1x128xf32>
    %cst_11 = arith.constant dense<0.000000e+00> : vector<16xf32>
    %11 = vector.multi_reduction <add>, %8, %cst_11 [1] : vector<16x128xf32> to vector<16xf32>
    %12 = vector.shape_cast %11 : vector<16xf32> to vector<16x1xf32>
    %cst_12 = arith.constant 1.280000e+02 : f32
    %13 = vector.broadcast %cst_12 : f32 to vector<16x1xf32>
    %14 = arith.divf %12, %13 : vector<16x1xf32>
    %15 = vector.broadcast %14 : vector<16x1xf32> to vector<16x128xf32>
    %16 = arith.subf %8, %15 : vector<16x128xf32>
    %17 = arith.mulf %16, %16 : vector<16x128xf32>
    %cst_13 = arith.constant dense<0.000000e+00> : vector<16xf32>
    %18 = vector.multi_reduction <add>, %17, %cst_13 [1] : vector<16x128xf32> to vector<16xf32>
    %19 = vector.shape_cast %18 : vector<16xf32> to vector<16x1xf32>
    %cst_14 = arith.constant 1.280000e+02 : f32
    %20 = vector.broadcast %cst_14 : f32 to vector<16x1xf32>
    %21 = arith.divf %19, %20 : vector<16x1xf32>
    %22 = vector.broadcast %14 : vector<16x1xf32> to vector<16x128xf32>
    %23 = arith.subf %8, %22 : vector<16x128xf32>
    %cst_15 = arith.constant 9.99999974E-6 : f32
    %24 = vector.broadcast %cst_15 : f32 to vector<16x1xf32>
    %25 = arith.addf %21, %24 : vector<16x1xf32>
    %26 = math.rsqrt %25 : vector<16x1xf32>
    %27 = vector.broadcast %26 : vector<16x1xf32> to vector<16x128xf32>
    %28 = arith.mulf %23, %27 : vector<16x128xf32>
    %29 = vector.broadcast %9 : vector<1x128xf32> to vector<16x128xf32>
    %30 = arith.mulf %28, %29 : vector<16x128xf32>
    %31 = vector.broadcast %10 : vector<1x128xf32> to vector<16x128xf32>
    %32 = arith.addf %30, %31 : vector<16x128xf32>
    %33 = arith.truncf %32 : vector<16x128xf32> to vector<16x128xbf16>
    %c0_16 = arith.constant 0 : index
    %c0_17 = arith.constant 0 : index
    %34 = vector.load %arg7[%c0_16, %c0_17] : memref<16x128xbf16, #tpu.memory_space<vmem>>, vector<16x128xbf16>
    tpu.vector_store %arg7[%c0_16, %c0_17], %33 {strides = array<i32>} : memref<16x128xbf16, #tpu.memory_space<vmem>>, vector<16x128xbf16>,
    return
  }
  func.func @transform_0(%arg0: i32) -> (i32, i32) {
    %c0_i32 = arith.constant 0 : i32
    %c0_i32_0 = arith.constant 0 : i32
    return %arg0, %c0_i32 : i32, i32
  }
  func.func @transform_1(%arg0: i32) -> (i32, i32) {
    %c0_i32 = arith.constant 0 : i32
    %c0_i32_0 = arith.constant 0 : i32
    %c0_i32_1 = arith.constant 0 : i32
    return %c0_i32, %c0_i32_0 : i32, i32
  }
  func.func @transform_2(%arg0: i32) -> (i32, i32) {
    %c0_i32 = arith.constant 0 : i32
    %c0_i32_0 = arith.constant 0 : i32
    %c0_i32_1 = arith.constant 0 : i32
    return %c0_i32, %c0_i32_0 : i32, i32
  }
  func.func @transform_3(%arg0: i32) -> (i32, i32) {
    %c0_i32 = arith.constant 0 : i32
    %c0_i32_0 = arith.constant 0 : i32
    return %arg0, %c0_i32 : i32, i32
  }
  func.func @transform_4(%arg0: i32) -> (i32, i32) {
    %c0_i32 = arith.constant 0 : i32
    %c0_i32_0 = arith.constant 0 : i32
    %c0_i32_1 = arith.constant 0 : i32
    return %c0_i32, %c0_i32_0 : i32, i32
  }
  func.func @transform_5(%arg0: i32) -> (i32, i32) {
    %c0_i32 = arith.constant 0 : i32
    %c0_i32_0 = arith.constant 0 : i32
    %c0_i32_1 = arith.constant 0 : i32
    return %c0_i32, %c0_i32_0 : i32, i32
  }
  func.func @transform_6(%arg0: i32) -> (i32, i32) {
    %c0_i32 = arith.constant 0 : i32
    %c0_i32_0 = arith.constant 0 : i32
    return %arg0, %c0_i32 : i32, i32
  }
}

module attributes {stable_mosaic.version = 11 : i64} {
  func.func @_sdpa_mask_kernel(%arg0: i32, %arg1: memref<1x4x8x32xbf16, #tpu.memory_space<vmem>>, %arg2: memref<1x4x8x32xbf16, #tpu.memory_space<vmem>>, %arg3: memref<1x4x8x32xbf16, #tpu.memory_space<vmem>>, %arg4: memref<1x1x8xi32, #tpu.memory_space<vmem>>, %arg5: memref<1x4x8x32xbf16, #tpu.memory_space<vmem>>) attributes {dimension_semantics = [#tpu.dimension_semantics<parallel>], iteration_bounds = array<i64: 2>, scalar_prefetch = 0 : i64, scratch_operands = 0 : i64, tpu.core_type = #tpu.core_type<tc>, window_params = [{transform_indices = @transform_0, window_bounds = array<i64: 1, 4, 8, 32>}, {transform_indices = @transform_1, window_bounds = array<i64: 1, 4, 8, 32>}, {transform_indices = @transform_2, window_bounds = array<i64: 1, 4, 8, 32>}, {transform_indices = @transform_3, window_bounds = array<i64: 1, 1, 8>}, {transform_indices = @transform_4, window_bounds = array<i64: 1, 4, 8, 32>}]} {
    %c0 = arith.constant 0 : index
    %c0_0 = arith.constant 0 : index
    %c0_1 = arith.constant 0 : index
    %0 = vector.load %arg4[%c0, %c0_0, %c0_1] : memref<1x1x8xi32, #tpu.memory_space<vmem>>, vector<1x1x8xi32>
    %1 = vector.shape_cast %0 : vector<1x1x8xi32> to vector<1x8xi32>
    %c0_i32 = arith.constant 0 : i32
    %2 = vector.broadcast %c0_i32 : i32 to vector<1x8xi32>
    %3 = arith.cmpi eq, %1, %2 : vector<1x8xi32>
    %cst = arith.constant -1.000000e+09 : f32
    %cst_2 = arith.constant 0.000000e+00 : f32
    %4 = vector.broadcast %cst : f32 to vector<1x8xf32>
    %5 = vector.broadcast %cst_2 : f32 to vector<1x8xf32>
    %6 = arith.select %3, %4, %5 : vector<1x8xi1>, vector<1x8xf32>
    %7 = vector.shape_cast %6 : vector<1x8xf32> to vector<1x1x8xf32>
    %c0_3 = arith.constant 0 : index
    %c0_4 = arith.constant 0 : index
    %c0_5 = arith.constant 0 : index
    %c0_6 = arith.constant 0 : index
    %8 = vector.load %arg1[%c0_3, %c0_4, %c0_5, %c0_6] : memref<1x4x8x32xbf16, #tpu.memory_space<vmem>>, vector<1x4x8x32xbf16>
    %9 = vector.shape_cast %8 : vector<1x4x8x32xbf16> to vector<4x8x32xbf16>
    %c0_7 = arith.constant 0 : index
    %c0_8 = arith.constant 0 : index
    %c0_9 = arith.constant 0 : index
    %c0_10 = arith.constant 0 : index
    %10 = vector.load %arg2[%c0_7, %c0_8, %c0_9, %c0_10] : memref<1x4x8x32xbf16, #tpu.memory_space<vmem>>, vector<1x4x8x32xbf16>
    %11 = vector.shape_cast %10 : vector<1x4x8x32xbf16> to vector<4x8x32xbf16>
    %c0_11 = arith.constant 0 : index
    %c0_12 = arith.constant 0 : index
    %c0_13 = arith.constant 0 : index
    %c0_14 = arith.constant 0 : index
    %12 = vector.load %arg3[%c0_11, %c0_12, %c0_13, %c0_14] : memref<1x4x8x32xbf16, #tpu.memory_space<vmem>>, vector<1x4x8x32xbf16>
    %13 = vector.shape_cast %12 : vector<1x4x8x32xbf16> to vector<4x8x32xbf16>
    %cst_15 = arith.constant dense<0.000000e+00> : vector<4x8x8xf32>
    %14 = tpu.matmul %9, %11, %cst_15 {dimension_numbers = #tpu.dot_dimension_numbers<[2], [2], [1], [1], [0, 0, 0, 1, 1, 1], [0], [0]>} : vector<4x8x32xbf16>, vector<4x8x32xbf16>, vector<4x8x8xf32> -> vector<4x8x8xf32>
    %cst_16 = arith.constant 0.176776692 : f32
    %15 = vector.broadcast %cst_16 : f32 to vector<4x8x8xf32>
    %16 = arith.mulf %14, %15 : vector<4x8x8xf32>
    %17 = vector.broadcast %7 : vector<1x1x8xf32> to vector<4x8x8xf32>
    %18 = arith.addf %16, %17 : vector<4x8x8xf32>
    %cst_17 = arith.constant dense<0xFF800000> : vector<4x8xf32>
    %19 = vector.multi_reduction <maximumf>, %18, %cst_17 [2] : vector<4x8x8xf32> to vector<4x8xf32>
    %20 = vector.shape_cast %19 : vector<4x8xf32> to vector<4x8x1xf32>
    %21 = vector.broadcast %20 : vector<4x8x1xf32> to vector<4x8x8xf32>
    %22 = arith.subf %18, %21 : vector<4x8x8xf32>
    %23 = math.exp %22 : vector<4x8x8xf32>
    %cst_18 = arith.constant dense<0.000000e+00> : vector<4x8xf32>
    %24 = vector.multi_reduction <add>, %23, %cst_18 [2] : vector<4x8x8xf32> to vector<4x8xf32>
    %25 = vector.shape_cast %24 : vector<4x8xf32> to vector<4x8x1xf32>
    %26 = tpu.reciprocal %25 {approx = true} : vector<4x8x1xf32> -> vector<4x8x1xf32>
    %27 = vector.broadcast %26 : vector<4x8x1xf32> to vector<4x8x8xf32>
    %28 = arith.mulf %23, %27 : vector<4x8x8xf32>
    %29 = arith.truncf %28 : vector<4x8x8xf32> to vector<4x8x8xbf16>
    %cst_19 = arith.constant dense<0.000000e+00> : vector<4x8x32xf32>
    %30 = tpu.matmul %29, %13, %cst_19 {dimension_numbers = #tpu.dot_dimension_numbers<[2], [1], [1], [2], [0, 0, 0, 1, 1, 2], [0], [0]>} : vector<4x8x8xbf16>, vector<4x8x32xbf16>, vector<4x8x32xf32> -> vector<4x8x32xf32>
    %31 = arith.truncf %30 : vector<4x8x32xf32> to vector<4x8x32xbf16>
    %c0_20 = arith.constant 0 : index
    %c0_21 = arith.constant 0 : index
    %c0_22 = arith.constant 0 : index
    %c0_23 = arith.constant 0 : index
    %32 = vector.load %arg5[%c0_20, %c0_21, %c0_22, %c0_23] : memref<1x4x8x32xbf16, #tpu.memory_space<vmem>>, vector<1x4x8x32xbf16>
    %33 = vector.shape_cast %32 : vector<1x4x8x32xbf16> to vector<4x8x32xbf16>
    %34 = vector.shape_cast %31 : vector<4x8x32xbf16> to vector<1x4x8x32xbf16>
    tpu.vector_store %arg5[%c0_20, %c0_21, %c0_22, %c0_23], %34 {strides = array<i32>} : memref<1x4x8x32xbf16, #tpu.memory_space<vmem>>, vector<1x4x8x32xbf16>,
    return
  }
  func.func @transform_0(%arg0: i32) -> (i32, i32, i32, i32) {
    %c0_i32 = arith.constant 0 : i32
    %c0_i32_0 = arith.constant 0 : i32
    %c0_i32_1 = arith.constant 0 : i32
    %c0_i32_2 = arith.constant 0 : i32
    return %arg0, %c0_i32, %c0_i32_0, %c0_i32_1 : i32, i32, i32, i32
  }
  func.func @transform_1(%arg0: i32) -> (i32, i32, i32, i32) {
    %c0_i32 = arith.constant 0 : i32
    %c0_i32_0 = arith.constant 0 : i32
    %c0_i32_1 = arith.constant 0 : i32
    %c0_i32_2 = arith.constant 0 : i32
    return %arg0, %c0_i32, %c0_i32_0, %c0_i32_1 : i32, i32, i32, i32
  }
  func.func @transform_2(%arg0: i32) -> (i32, i32, i32, i32) {
    %c0_i32 = arith.constant 0 : i32
    %c0_i32_0 = arith.constant 0 : i32
    %c0_i32_1 = arith.constant 0 : i32
    %c0_i32_2 = arith.constant 0 : i32
    return %arg0, %c0_i32, %c0_i32_0, %c0_i32_1 : i32, i32, i32, i32
  }
  func.func @transform_3(%arg0: i32) -> (i32, i32, i32) {
    %c0_i32 = arith.constant 0 : i32
    %c0_i32_0 = arith.constant 0 : i32
    %c0_i32_1 = arith.constant 0 : i32
    return %arg0, %c0_i32, %c0_i32_0 : i32, i32, i32
  }
  func.func @transform_4(%arg0: i32) -> (i32, i32, i32, i32) {
    %c0_i32 = arith.constant 0 : i32
    %c0_i32_0 = arith.constant 0 : i32
    %c0_i32_1 = arith.constant 0 : i32
    %c0_i32_2 = arith.constant 0 : i32
    return %arg0, %c0_i32, %c0_i32_0, %c0_i32_1 : i32, i32, i32, i32
  }
}

module attributes {stable_mosaic.version = 11 : i64} {
  func.func @_linear_res_ln_kernel(%arg0: i32, %arg1: memref<16x128xbf16, #tpu.memory_space<vmem>>, %arg2: memref<128x128xbf16, #tpu.memory_space<vmem>>, %arg3: memref<1x128xf32, #tpu.memory_space<vmem>>, %arg4: memref<16x128xbf16, #tpu.memory_space<vmem>>, %arg5: memref<1x128xf32, #tpu.memory_space<vmem>>, %arg6: memref<1x128xf32, #tpu.memory_space<vmem>>, %arg7: memref<16x128xbf16, #tpu.memory_space<vmem>>) attributes {dimension_semantics = [#tpu.dimension_semantics<parallel>], iteration_bounds = array<i64: 1>, scalar_prefetch = 0 : i64, scratch_operands = 0 : i64, tpu.core_type = #tpu.core_type<tc>, window_params = [{transform_indices = @transform_0, window_bounds = array<i64: 16, 128>}, {pipeline_mode = #tpu.pipeline_mode<synchronous>, transform_indices = @transform_1, window_bounds = array<i64: 128, 128>}, {pipeline_mode = #tpu.pipeline_mode<synchronous>, transform_indices = @transform_2, window_bounds = array<i64: 1, 128>}, {transform_indices = @transform_3, window_bounds = array<i64: 16, 128>}, {pipeline_mode = #tpu.pipeline_mode<synchronous>, transform_indices = @transform_4, window_bounds = array<i64: 1, 128>}, {pipeline_mode = #tpu.pipeline_mode<synchronous>, transform_indices = @transform_5, window_bounds = array<i64: 1, 128>}, {transform_indices = @transform_6, window_bounds = array<i64: 16, 128>}]} {
    %c0 = arith.constant 0 : index
    %c0_0 = arith.constant 0 : index
    %0 = vector.load %arg1[%c0, %c0_0] : memref<16x128xbf16, #tpu.memory_space<vmem>>, vector<16x128xbf16>
    %c0_1 = arith.constant 0 : index
    %c0_2 = arith.constant 0 : index
    %1 = vector.load %arg2[%c0_1, %c0_2] : memref<128x128xbf16, #tpu.memory_space<vmem>>, vector<128x128xbf16>
    %cst = arith.constant dense<0.000000e+00> : vector<16x128xf32>
    %2 = tpu.matmul %0, %1, %cst {dimension_numbers = #tpu.dot_dimension_numbers<[1], [0], [0], [1], [0, 0, 1, 1], [], []>} : vector<16x128xbf16>, vector<128x128xbf16>, vector<16x128xf32> -> vector<16x128xf32>
    %c0_3 = arith.constant 0 : index
    %c0_4 = arith.constant 0 : index
    %3 = vector.load %arg3[%c0_3, %c0_4] : memref<1x128xf32, #tpu.memory_space<vmem>>, vector<1x128xf32>
    %4 = vector.broadcast %3 : vector<1x128xf32> to vector<16x128xf32>
    %5 = arith.addf %2, %4 : vector<16x128xf32>
    %c0_5 = arith.constant 0 : index
    %c0_6 = arith.constant 0 : index
    %6 = vector.load %arg4[%c0_5, %c0_6] : memref<16x128xbf16, #tpu.memory_space<vmem>>, vector<16x128xbf16>
    %7 = arith.extf %6 : vector<16x128xbf16> to vector<16x128xf32>
    %8 = arith.addf %5, %7 : vector<16x128xf32>
    %c0_7 = arith.constant 0 : index
    %c0_8 = arith.constant 0 : index
    %9 = vector.load %arg5[%c0_7, %c0_8] : memref<1x128xf32, #tpu.memory_space<vmem>>, vector<1x128xf32>
    %c0_9 = arith.constant 0 : index
    %c0_10 = arith.constant 0 : index
    %10 = vector.load %arg6[%c0_9, %c0_10] : memref<1x128xf32, #tpu.memory_space<vmem>>, vector<1x128xf32>
    %cst_11 = arith.constant dense<0.000000e+00> : vector<16xf32>
    %11 = vector.multi_reduction <add>, %8, %cst_11 [1] : vector<16x128xf32> to vector<16xf32>
    %12 = vector.shape_cast %11 : vector<16xf32> to vector<16x1xf32>
    %cst_12 = arith.constant 1.280000e+02 : f32
    %13 = vector.broadcast %cst_12 : f32 to vector<16x1xf32>
    %14 = arith.divf %12, %13 : vector<16x1xf32>
    %15 = vector.broadcast %14 : vector<16x1xf32> to vector<16x128xf32>
    %16 = arith.subf %8, %15 : vector<16x128xf32>
    %17 = arith.mulf %16, %16 : vector<16x128xf32>
    %cst_13 = arith.constant dense<0.000000e+00> : vector<16xf32>
    %18 = vector.multi_reduction <add>, %17, %cst_13 [1] : vector<16x128xf32> to vector<16xf32>
    %19 = vector.shape_cast %18 : vector<16xf32> to vector<16x1xf32>
    %cst_14 = arith.constant 1.280000e+02 : f32
    %20 = vector.broadcast %cst_14 : f32 to vector<16x1xf32>
    %21 = arith.divf %19, %20 : vector<16x1xf32>
    %22 = vector.broadcast %14 : vector<16x1xf32> to vector<16x128xf32>
    %23 = arith.subf %8, %22 : vector<16x128xf32>
    %cst_15 = arith.constant 9.99999974E-6 : f32
    %24 = vector.broadcast %cst_15 : f32 to vector<16x1xf32>
    %25 = arith.addf %21, %24 : vector<16x1xf32>
    %26 = math.rsqrt %25 : vector<16x1xf32>
    %27 = vector.broadcast %26 : vector<16x1xf32> to vector<16x128xf32>
    %28 = arith.mulf %23, %27 : vector<16x128xf32>
    %29 = vector.broadcast %9 : vector<1x128xf32> to vector<16x128xf32>
    %30 = arith.mulf %28, %29 : vector<16x128xf32>
    %31 = vector.broadcast %10 : vector<1x128xf32> to vector<16x128xf32>
    %32 = arith.addf %30, %31 : vector<16x128xf32>
    %33 = arith.truncf %32 : vector<16x128xf32> to vector<16x128xbf16>
    %c0_16 = arith.constant 0 : index
    %c0_17 = arith.constant 0 : index
    %34 = vector.load %arg7[%c0_16, %c0_17] : memref<16x128xbf16, #tpu.memory_space<vmem>>, vector<16x128xbf16>
    tpu.vector_store %arg7[%c0_16, %c0_17], %33 {strides = array<i32>} : memref<16x128xbf16, #tpu.memory_space<vmem>>, vector<16x128xbf16>,
    return
  }
  func.func @transform_0(%arg0: i32) -> (i32, i32) {
    %c0_i32 = arith.constant 0 : i32
    %c0_i32_0 = arith.constant 0 : i32
    return %arg0, %c0_i32 : i32, i32
  }
  func.func @transform_1(%arg0: i32) -> (i32, i32) {
    %c0_i32 = arith.constant 0 : i32
    %c0_i32_0 = arith.constant 0 : i32
    %c0_i32_1 = arith.constant 0 : i32
    return %c0_i32, %c0_i32_0 : i32, i32
  }
  func.func @transform_2(%arg0: i32) -> (i32, i32) {
    %c0_i32 = arith.constant 0 : i32
    %c0_i32_0 = arith.constant 0 : i32
    %c0_i32_1 = arith.constant 0 : i32
    return %c0_i32, %c0_i32_0 : i32, i32
  }
  func.func @transform_3(%arg0: i32) -> (i32, i32) {
    %c0_i32 = arith.constant 0 : i32
    %c0_i32_0 = arith.constant 0 : i32
    return %arg0, %c0_i32 : i32, i32
  }
  func.func @transform_4(%arg0: i32) -> (i32, i32) {
    %c0_i32 = arith.constant 0 : i32
    %c0_i32_0 = arith.constant 0 : i32
    %c0_i32_1 = arith.constant 0 : i32
    return %c0_i32, %c0_i32_0 : i32, i32
  }
  func.func @transform_5(%arg0: i32) -> (i32, i32) {
    %c0_i32 = arith.constant 0 : i32
    %c0_i32_0 = arith.constant 0 : i32
    %c0_i32_1 = arith.constant 0 : i32
    return %c0_i32, %c0_i32_0 : i32, i32
  }
  func.func @transform_6(%arg0: i32) -> (i32, i32) {
    %c0_i32 = arith.constant 0 : i32
    %c0_i32_0 = arith.constant 0 : i32
    return %arg0, %c0_i32 : i32, i32
  }
}

module attributes {stable_mosaic.version = 11 : i64} {
  func.func @_ffn_res_ln_kernel(%arg0: i32, %arg1: i32, %arg2: memref<16x128xbf16, #tpu.memory_space<vmem>>, %arg3: memref<128x256xbf16, #tpu.memory_space<vmem>>, %arg4: memref<1x256xf32, #tpu.memory_space<vmem>>, %arg5: memref<256x128xbf16, #tpu.memory_space<vmem>>, %arg6: memref<1x128xf32, #tpu.memory_space<vmem>>, %arg7: memref<1x128xf32, #tpu.memory_space<vmem>>, %arg8: memref<1x128xf32, #tpu.memory_space<vmem>>, %arg9: memref<16x128xbf16, #tpu.memory_space<vmem>>, %arg10: memref<16x128xf32, #tpu.memory_space<vmem>>) attributes {dimension_semantics = [#tpu.dimension_semantics<parallel>, #tpu.dimension_semantics<arbitrary>], iteration_bounds = array<i64: 1, 1>, scalar_prefetch = 0 : i64, scratch_operands = 1 : i64, tpu.core_type = #tpu.core_type<tc>, window_params = [{transform_indices = @transform_0, window_bounds = array<i64: 16, 128>}, {transform_indices = @transform_1, window_bounds = array<i64: 128, 256>}, {transform_indices = @transform_2, window_bounds = array<i64: 1, 256>}, {transform_indices = @transform_3, window_bounds = array<i64: 256, 128>}, {pipeline_mode = #tpu.pipeline_mode<synchronous>, transform_indices = @transform_4, window_bounds = array<i64: 1, 128>}, {pipeline_mode = #tpu.pipeline_mode<synchronous>, transform_indices = @transform_5, window_bounds = array<i64: 1, 128>}, {pipeline_mode = #tpu.pipeline_mode<synchronous>, transform_indices = @transform_6, window_bounds = array<i64: 1, 128>}, {transform_indices = @transform_7, window_bounds = array<i64: 16, 128>}]} {
    %c0_i32 = arith.constant 0 : i32
    %0 = arith.cmpi eq, %arg1, %c0_i32 : i32
    %1 = arith.extui %0 : i1 to i32
    %c0_i32_0 = arith.constant 0 : i32
    %2 = arith.cmpi ne, %1, %c0_i32_0 : i32
    scf.if %2 {
      %c0_16 = arith.constant 0 : index
      %c0_17 = arith.constant 0 : index
      %20 = vector.load %arg6[%c0_16, %c0_17] : memref<1x128xf32, #tpu.memory_space<vmem>>, vector<1x128xf32>
      %21 = vector.shape_cast %20 : vector<1x128xf32> to vector<1x128xf32>
      %22 = vector.broadcast %21 : vector<1x128xf32> to vector<16x128xf32>
      %c0_18 = arith.constant 0 : index
      %c0_19 = arith.constant 0 : index
      %23 = vector.load %arg10[%c0_18, %c0_19] : memref<16x128xf32, #tpu.memory_space<vmem>>, vector<16x128xf32>
      tpu.vector_store %arg10[%c0_18, %c0_19], %22 {strides = array<i32>} : memref<16x128xf32, #tpu.memory_space<vmem>>, vector<16x128xf32>,
    } else {
    }
    %c0 = arith.constant 0 : index
    %c0_1 = arith.constant 0 : index
    %3 = vector.load %arg2[%c0, %c0_1] : memref<16x128xbf16, #tpu.memory_space<vmem>>, vector<16x128xbf16>
    %c0_2 = arith.constant 0 : index
    %c0_3 = arith.constant 0 : index
    %4 = vector.load %arg3[%c0_2, %c0_3] : memref<128x256xbf16, #tpu.memory_space<vmem>>, vector<128x256xbf16>
    %cst = arith.constant dense<0.000000e+00> : vector<16x256xf32>
    %5 = tpu.matmul %3, %4, %cst {dimension_numbers = #tpu.dot_dimension_numbers<[1], [0], [0], [1], [0, 0, 1, 1], [], []>} : vector<16x128xbf16>, vector<128x256xbf16>, vector<16x256xf32> -> vector<16x256xf32>
    %c0_4 = arith.constant 0 : index
    %c0_5 = arith.constant 0 : index
    %6 = vector.load %arg4[%c0_4, %c0_5] : memref<1x256xf32, #tpu.memory_space<vmem>>, vector<1x256xf32>
    %7 = vector.broadcast %6 : vector<1x256xf32> to vector<16x256xf32>
    %8 = arith.addf %5, %7 : vector<16x256xf32>
    %cst_6 = arith.constant 0.000000e+00 : f32
    %9 = vector.broadcast %cst_6 : f32 to vector<16x256xf32>
    %10 = arith.maximumf %8, %9 : vector<16x256xf32>
    %11 = arith.truncf %10 : vector<16x256xf32> to vector<16x256xbf16>
    %c0_7 = arith.constant 0 : index
    %c0_8 = arith.constant 0 : index
    %12 = vector.load %arg10[%c0_7, %c0_8] : memref<16x128xf32, #tpu.memory_space<vmem>>, vector<16x128xf32>
    %c0_9 = arith.constant 0 : index
    %c0_10 = arith.constant 0 : index
    %13 = vector.load %arg5[%c0_9, %c0_10] : memref<256x128xbf16, #tpu.memory_space<vmem>>, vector<256x128xbf16>
    %cst_11 = arith.constant dense<0.000000e+00> : vector<16x128xf32>
    %14 = tpu.matmul %11, %13, %cst_11 {dimension_numbers = #tpu.dot_dimension_numbers<[1], [0], [0], [1], [0, 0, 1, 1], [], []>} : vector<16x256xbf16>, vector<256x128xbf16>, vector<16x128xf32> -> vector<16x128xf32>
    %15 = arith.addf %12, %14 : vector<16x128xf32>
    %c0_12 = arith.constant 0 : index
    %c0_13 = arith.constant 0 : index
    %16 = vector.load %arg10[%c0_12, %c0_13] : memref<16x128xf32, #tpu.memory_space<vmem>>, vector<16x128xf32>
    tpu.vector_store %arg10[%c0_12, %c0_13], %15 {strides = array<i32>} : memref<16x128xf32, #tpu.memory_space<vmem>>, vector<16x128xf32>,
    %c0_i32_14 = arith.constant 0 : i32
    %17 = arith.cmpi eq, %arg1, %c0_i32_14 : i32
    %18 = arith.extui %17 : i1 to i32
    %c0_i32_15 = arith.constant 0 : i32
    %19 = arith.cmpi ne, %18, %c0_i32_15 : i32
    scf.if %19 {
      %c0_16 = arith.constant 0 : index
      %c0_17 = arith.constant 0 : index
      %20 = vector.load %arg10[%c0_16, %c0_17] : memref<16x128xf32, #tpu.memory_space<vmem>>, vector<16x128xf32>
      %c0_18 = arith.constant 0 : index
      %c0_19 = arith.constant 0 : index
      %21 = vector.load %arg2[%c0_18, %c0_19] : memref<16x128xbf16, #tpu.memory_space<vmem>>, vector<16x128xbf16>
      %22 = arith.extf %21 : vector<16x128xbf16> to vector<16x128xf32>
      %23 = arith.addf %20, %22 : vector<16x128xf32>
      %c0_20 = arith.constant 0 : index
      %c0_21 = arith.constant 0 : index
      %24 = vector.load %arg7[%c0_20, %c0_21] : memref<1x128xf32, #tpu.memory_space<vmem>>, vector<1x128xf32>
      %c0_22 = arith.constant 0 : index
      %c0_23 = arith.constant 0 : index
      %25 = vector.load %arg8[%c0_22, %c0_23] : memref<1x128xf32, #tpu.memory_space<vmem>>, vector<1x128xf32>
      %cst_24 = arith.constant dense<0.000000e+00> : vector<16xf32>
      %26 = vector.multi_reduction <add>, %23, %cst_24 [1] : vector<16x128xf32> to vector<16xf32>
      %27 = vector.shape_cast %26 : vector<16xf32> to vector<16x1xf32>
      %cst_25 = arith.constant 1.280000e+02 : f32
      %28 = vector.broadcast %cst_25 : f32 to vector<16x1xf32>
      %29 = arith.divf %27, %28 : vector<16x1xf32>
      %30 = vector.broadcast %29 : vector<16x1xf32> to vector<16x128xf32>
      %31 = arith.subf %23, %30 : vector<16x128xf32>
      %32 = arith.mulf %31, %31 : vector<16x128xf32>
      %cst_26 = arith.constant dense<0.000000e+00> : vector<16xf32>
      %33 = vector.multi_reduction <add>, %32, %cst_26 [1] : vector<16x128xf32> to vector<16xf32>
      %34 = vector.shape_cast %33 : vector<16xf32> to vector<16x1xf32>
      %cst_27 = arith.constant 1.280000e+02 : f32
      %35 = vector.broadcast %cst_27 : f32 to vector<16x1xf32>
      %36 = arith.divf %34, %35 : vector<16x1xf32>
      %37 = vector.broadcast %29 : vector<16x1xf32> to vector<16x128xf32>
      %38 = arith.subf %23, %37 : vector<16x128xf32>
      %cst_28 = arith.constant 9.99999974E-6 : f32
      %39 = vector.broadcast %cst_28 : f32 to vector<16x1xf32>
      %40 = arith.addf %36, %39 : vector<16x1xf32>
      %41 = math.rsqrt %40 : vector<16x1xf32>
      %42 = vector.broadcast %41 : vector<16x1xf32> to vector<16x128xf32>
      %43 = arith.mulf %38, %42 : vector<16x128xf32>
      %44 = vector.broadcast %24 : vector<1x128xf32> to vector<16x128xf32>
      %45 = arith.mulf %43, %44 : vector<16x128xf32>
      %46 = vector.broadcast %25 : vector<1x128xf32> to vector<16x128xf32>
      %47 = arith.addf %45, %46 : vector<16x128xf32>
      %48 = arith.truncf %47 : vector<16x128xf32> to vector<16x128xbf16>
      %c0_29 = arith.constant 0 : index
      %c0_30 = arith.constant 0 : index
      %49 = vector.load %arg9[%c0_29, %c0_30] : memref<16x128xbf16, #tpu.memory_space<vmem>>, vector<16x128xbf16>
      tpu.vector_store %arg9[%c0_29, %c0_30], %48 {strides = array<i32>} : memref<16x128xbf16, #tpu.memory_space<vmem>>, vector<16x128xbf16>,
    } else {
    }
    return
  }
  func.func @transform_0(%arg0: i32, %arg1: i32) -> (i32, i32) {
    %c0_i32 = arith.constant 0 : i32
    %c0_i32_0 = arith.constant 0 : i32
    return %arg0, %c0_i32 : i32, i32
  }
  func.func @transform_1(%arg0: i32, %arg1: i32) -> (i32, i32) {
    %c0_i32 = arith.constant 0 : i32
    %c0_i32_0 = arith.constant 0 : i32
    return %c0_i32, %arg1 : i32, i32
  }
  func.func @transform_2(%arg0: i32, %arg1: i32) -> (i32, i32) {
    %c0_i32 = arith.constant 0 : i32
    %c0_i32_0 = arith.constant 0 : i32
    return %c0_i32, %arg1 : i32, i32
  }
  func.func @transform_3(%arg0: i32, %arg1: i32) -> (i32, i32) {
    %c0_i32 = arith.constant 0 : i32
    %c0_i32_0 = arith.constant 0 : i32
    return %arg1, %c0_i32 : i32, i32
  }
  func.func @transform_4(%arg0: i32, %arg1: i32) -> (i32, i32) {
    %c0_i32 = arith.constant 0 : i32
    %c0_i32_0 = arith.constant 0 : i32
    %c0_i32_1 = arith.constant 0 : i32
    return %c0_i32, %c0_i32_0 : i32, i32
  }
  func.func @transform_5(%arg0: i32, %arg1: i32) -> (i32, i32) {
    %c0_i32 = arith.constant 0 : i32
    %c0_i32_0 = arith.constant 0 : i32
    %c0_i32_1 = arith.constant 0 : i32
    return %c0_i32, %c0_i32_0 : i32, i32
  }
  func.func @transform_6(%arg0: i32, %arg1: i32) -> (i32, i32) {
    %c0_i32 = arith.constant 0 : i32
    %c0_i32_0 = arith.constant 0 : i32
    %c0_i32_1 = arith.constant 0 : i32
    return %c0_i32, %c0_i32_0 : i32, i32
  }
  func.func @transform_7(%arg0: i32, %arg1: i32) -> (i32, i32) {
    %c0_i32 = arith.constant 0 : i32
    %c0_i32_0 = arith.constant 0 : i32
    return %arg0, %c0_i32 : i32, i32
  }
}

module attributes {stable_mosaic.version = 11 : i64} {
  func.func @_linear_kernel(%arg0: i32, %arg1: i32, %arg2: memref<16x128xbf16, #tpu.memory_space<vmem>>, %arg3: memref<128x256xbf16, #tpu.memory_space<vmem>>, %arg4: memref<1x256xf32, #tpu.memory_space<vmem>>, %arg5: memref<16x256xbf16, #tpu.memory_space<vmem>>) attributes {dimension_semantics = [#tpu.dimension_semantics<parallel>, #tpu.dimension_semantics<parallel>], iteration_bounds = array<i64: 1, 1>, scalar_prefetch = 0 : i64, scratch_operands = 0 : i64, tpu.core_type = #tpu.core_type<tc>, window_params = [{transform_indices = @transform_0, window_bounds = array<i64: 16, 128>}, {transform_indices = @transform_1, window_bounds = array<i64: 128, 256>}, {transform_indices = @transform_2, window_bounds = array<i64: 1, 256>}, {transform_indices = @transform_3, window_bounds = array<i64: 16, 256>}]} {
    %c0 = arith.constant 0 : index
    %c0_0 = arith.constant 0 : index
    %0 = vector.load %arg2[%c0, %c0_0] : memref<16x128xbf16, #tpu.memory_space<vmem>>, vector<16x128xbf16>
    %c0_1 = arith.constant 0 : index
    %c0_2 = arith.constant 0 : index
    %1 = vector.load %arg3[%c0_1, %c0_2] : memref<128x256xbf16, #tpu.memory_space<vmem>>, vector<128x256xbf16>
    %cst = arith.constant dense<0.000000e+00> : vector<16x256xf32>
    %2 = tpu.matmul %0, %1, %cst {dimension_numbers = #tpu.dot_dimension_numbers<[1], [0], [0], [1], [0, 0, 1, 1], [], []>} : vector<16x128xbf16>, vector<128x256xbf16>, vector<16x256xf32> -> vector<16x256xf32>
    %c0_3 = arith.constant 0 : index
    %c0_4 = arith.constant 0 : index
    %3 = vector.load %arg4[%c0_3, %c0_4] : memref<1x256xf32, #tpu.memory_space<vmem>>, vector<1x256xf32>
    %4 = vector.broadcast %3 : vector<1x256xf32> to vector<16x256xf32>
    %5 = arith.addf %2, %4 : vector<16x256xf32>
    %6 = arith.truncf %5 : vector<16x256xf32> to vector<16x256xbf16>
    %c0_5 = arith.constant 0 : index
    %c0_6 = arith.constant 0 : index
    %7 = vector.load %arg5[%c0_5, %c0_6] : memref<16x256xbf16, #tpu.memory_space<vmem>>, vector<16x256xbf16>
    tpu.vector_store %arg5[%c0_5, %c0_6], %6 {strides = array<i32>} : memref<16x256xbf16, #tpu.memory_space<vmem>>, vector<16x256xbf16>,
    return
  }
  func.func @transform_0(%arg0: i32, %arg1: i32) -> (i32, i32) {
    %c0_i32 = arith.constant 0 : i32
    %c0_i32_0 = arith.constant 0 : i32
    return %arg0, %c0_i32 : i32, i32
  }
  func.func @transform_1(%arg0: i32, %arg1: i32) -> (i32, i32) {
    %c0_i32 = arith.constant 0 : i32
    %c0_i32_0 = arith.constant 0 : i32
    return %c0_i32, %arg1 : i32, i32
  }
  func.func @transform_2(%arg0: i32, %arg1: i32) -> (i32, i32) {
    %c0_i32 = arith.constant 0 : i32
    %c0_i32_0 = arith.constant 0 : i32
    return %c0_i32, %arg1 : i32, i32
  }
  func.func @transform_3(%arg0: i32, %arg1: i32) -> (i32, i32) {
    %c0_i32 = arith.constant 0 : i32
    return %arg0, %arg1 : i32, i32
  }
}

module attributes {stable_mosaic.version = 11 : i64} {
  func.func @_linear_res_ln_kernel(%arg0: i32, %arg1: memref<16x128xbf16, #tpu.memory_space<vmem>>, %arg2: memref<128x128xbf16, #tpu.memory_space<vmem>>, %arg3: memref<1x128xf32, #tpu.memory_space<vmem>>, %arg4: memref<16x128xbf16, #tpu.memory_space<vmem>>, %arg5: memref<1x128xf32, #tpu.memory_space<vmem>>, %arg6: memref<1x128xf32, #tpu.memory_space<vmem>>, %arg7: memref<16x128xbf16, #tpu.memory_space<vmem>>) attributes {dimension_semantics = [#tpu.dimension_semantics<parallel>], iteration_bounds = array<i64: 1>, scalar_prefetch = 0 : i64, scratch_operands = 0 : i64, tpu.core_type = #tpu.core_type<tc>, window_params = [{transform_indices = @transform_0, window_bounds = array<i64: 16, 128>}, {pipeline_mode = #tpu.pipeline_mode<synchronous>, transform_indices = @transform_1, window_bounds = array<i64: 128, 128>}, {pipeline_mode = #tpu.pipeline_mode<synchronous>, transform_indices = @transform_2, window_bounds = array<i64: 1, 128>}, {transform_indices = @transform_3, window_bounds = array<i64: 16, 128>}, {pipeline_mode = #tpu.pipeline_mode<synchronous>, transform_indices = @transform_4, window_bounds = array<i64: 1, 128>}, {pipeline_mode = #tpu.pipeline_mode<synchronous>, transform_indices = @transform_5, window_bounds = array<i64: 1, 128>}, {transform_indices = @transform_6, window_bounds = array<i64: 16, 128>}]} {
    %c0 = arith.constant 0 : index
    %c0_0 = arith.constant 0 : index
    %0 = vector.load %arg1[%c0, %c0_0] : memref<16x128xbf16, #tpu.memory_space<vmem>>, vector<16x128xbf16>
    %c0_1 = arith.constant 0 : index
    %c0_2 = arith.constant 0 : index
    %1 = vector.load %arg2[%c0_1, %c0_2] : memref<128x128xbf16, #tpu.memory_space<vmem>>, vector<128x128xbf16>
    %cst = arith.constant dense<0.000000e+00> : vector<16x128xf32>
    %2 = tpu.matmul %0, %1, %cst {dimension_numbers = #tpu.dot_dimension_numbers<[1], [0], [0], [1], [0, 0, 1, 1], [], []>} : vector<16x128xbf16>, vector<128x128xbf16>, vector<16x128xf32> -> vector<16x128xf32>
    %c0_3 = arith.constant 0 : index
    %c0_4 = arith.constant 0 : index
    %3 = vector.load %arg3[%c0_3, %c0_4] : memref<1x128xf32, #tpu.memory_space<vmem>>, vector<1x128xf32>
    %4 = vector.broadcast %3 : vector<1x128xf32> to vector<16x128xf32>
    %5 = arith.addf %2, %4 : vector<16x128xf32>
    %c0_5 = arith.constant 0 : index
    %c0_6 = arith.constant 0 : index
    %6 = vector.load %arg4[%c0_5, %c0_6] : memref<16x128xbf16, #tpu.memory_space<vmem>>, vector<16x128xbf16>
    %7 = arith.extf %6 : vector<16x128xbf16> to vector<16x128xf32>
    %8 = arith.addf %5, %7 : vector<16x128xf32>
    %c0_7 = arith.constant 0 : index
    %c0_8 = arith.constant 0 : index
    %9 = vector.load %arg5[%c0_7, %c0_8] : memref<1x128xf32, #tpu.memory_space<vmem>>, vector<1x128xf32>
    %c0_9 = arith.constant 0 : index
    %c0_10 = arith.constant 0 : index
    %10 = vector.load %arg6[%c0_9, %c0_10] : memref<1x128xf32, #tpu.memory_space<vmem>>, vector<1x128xf32>
    %cst_11 = arith.constant dense<0.000000e+00> : vector<16xf32>
    %11 = vector.multi_reduction <add>, %8, %cst_11 [1] : vector<16x128xf32> to vector<16xf32>
    %12 = vector.shape_cast %11 : vector<16xf32> to vector<16x1xf32>
    %cst_12 = arith.constant 1.280000e+02 : f32
    %13 = vector.broadcast %cst_12 : f32 to vector<16x1xf32>
    %14 = arith.divf %12, %13 : vector<16x1xf32>
    %15 = vector.broadcast %14 : vector<16x1xf32> to vector<16x128xf32>
    %16 = arith.subf %8, %15 : vector<16x128xf32>
    %17 = arith.mulf %16, %16 : vector<16x128xf32>
    %cst_13 = arith.constant dense<0.000000e+00> : vector<16xf32>
    %18 = vector.multi_reduction <add>, %17, %cst_13 [1] : vector<16x128xf32> to vector<16xf32>
    %19 = vector.shape_cast %18 : vector<16xf32> to vector<16x1xf32>
    %cst_14 = arith.constant 1.280000e+02 : f32
    %20 = vector.broadcast %cst_14 : f32 to vector<16x1xf32>
    %21 = arith.divf %19, %20 : vector<16x1xf32>
    %22 = vector.broadcast %14 : vector<16x1xf32> to vector<16x128xf32>
    %23 = arith.subf %8, %22 : vector<16x128xf32>
    %cst_15 = arith.constant 9.99999974E-6 : f32
    %24 = vector.broadcast %cst_15 : f32 to vector<16x1xf32>
    %25 = arith.addf %21, %24 : vector<16x1xf32>
    %26 = math.rsqrt %25 : vector<16x1xf32>
    %27 = vector.broadcast %26 : vector<16x1xf32> to vector<16x128xf32>
    %28 = arith.mulf %23, %27 : vector<16x128xf32>
    %29 = vector.broadcast %9 : vector<1x128xf32> to vector<16x128xf32>
    %30 = arith.mulf %28, %29 : vector<16x128xf32>
    %31 = vector.broadcast %10 : vector<1x128xf32> to vector<16x128xf32>
    %32 = arith.addf %30, %31 : vector<16x128xf32>
    %33 = arith.truncf %32 : vector<16x128xf32> to vector<16x128xbf16>
    %c0_16 = arith.constant 0 : index
    %c0_17 = arith.constant 0 : index
    %34 = vector.load %arg7[%c0_16, %c0_17] : memref<16x128xbf16, #tpu.memory_space<vmem>>, vector<16x128xbf16>
    tpu.vector_store %arg7[%c0_16, %c0_17], %33 {strides = array<i32>} : memref<16x128xbf16, #tpu.memory_space<vmem>>, vector<16x128xbf16>,
    return
  }
  func.func @transform_0(%arg0: i32) -> (i32, i32) {
    %c0_i32 = arith.constant 0 : i32
    %c0_i32_0 = arith.constant 0 : i32
    return %arg0, %c0_i32 : i32, i32
  }
  func.func @transform_1(%arg0: i32) -> (i32, i32) {
    %c0_i32 = arith.constant 0 : i32
    %c0_i32_0 = arith.constant 0 : i32
    %c0_i32_1 = arith.constant 0 : i32
    return %c0_i32, %c0_i32_0 : i32, i32
  }
  func.func @transform_2(%arg0: i32) -> (i32, i32) {
    %c0_i32 = arith.constant 0 : i32
    %c0_i32_0 = arith.constant 0 : i32
    %c0_i32_1 = arith.constant 0 : i32
    return %c0_i32, %c0_i32_0 : i32, i32
  }
  func.func @transform_3(%arg0: i32) -> (i32, i32) {
    %c0_i32 = arith.constant 0 : i32
    %c0_i32_0 = arith.constant 0 : i32
    return %arg0, %c0_i32 : i32, i32
  }
  func.func @transform_4(%arg0: i32) -> (i32, i32) {
    %c0_i32 = arith.constant 0 : i32
    %c0_i32_0 = arith.constant 0 : i32
    %c0_i32_1 = arith.constant 0 : i32
    return %c0_i32, %c0_i32_0 : i32, i32
  }
  func.func @transform_5(%arg0: i32) -> (i32, i32) {
    %c0_i32 = arith.constant 0 : i32
    %c0_i32_0 = arith.constant 0 : i32
    %c0_i32_1 = arith.constant 0 : i32
    return %c0_i32, %c0_i32_0 : i32, i32
  }
  func.func @transform_6(%arg0: i32) -> (i32, i32) {
    %c0_i32 = arith.constant 0 : i32
    %c0_i32_0 = arith.constant 0 : i32
    return %arg0, %c0_i32 : i32, i32
  }
}

module attributes {stable_mosaic.version = 11 : i64} {
  func.func @_linear_res_ln_kernel(%arg0: i32, %arg1: memref<16x128xbf16, #tpu.memory_space<vmem>>, %arg2: memref<128x128xbf16, #tpu.memory_space<vmem>>, %arg3: memref<1x128xf32, #tpu.memory_space<vmem>>, %arg4: memref<16x128xbf16, #tpu.memory_space<vmem>>, %arg5: memref<1x128xf32, #tpu.memory_space<vmem>>, %arg6: memref<1x128xf32, #tpu.memory_space<vmem>>, %arg7: memref<16x128xbf16, #tpu.memory_space<vmem>>) attributes {dimension_semantics = [#tpu.dimension_semantics<parallel>], iteration_bounds = array<i64: 1>, scalar_prefetch = 0 : i64, scratch_operands = 0 : i64, tpu.core_type = #tpu.core_type<tc>, window_params = [{transform_indices = @transform_0, window_bounds = array<i64: 16, 128>}, {pipeline_mode = #tpu.pipeline_mode<synchronous>, transform_indices = @transform_1, window_bounds = array<i64: 128, 128>}, {pipeline_mode = #tpu.pipeline_mode<synchronous>, transform_indices = @transform_2, window_bounds = array<i64: 1, 128>}, {transform_indices = @transform_3, window_bounds = array<i64: 16, 128>}, {pipeline_mode = #tpu.pipeline_mode<synchronous>, transform_indices = @transform_4, window_bounds = array<i64: 1, 128>}, {pipeline_mode = #tpu.pipeline_mode<synchronous>, transform_indices = @transform_5, window_bounds = array<i64: 1, 128>}, {transform_indices = @transform_6, window_bounds = array<i64: 16, 128>}]} {
    %c0 = arith.constant 0 : index
    %c0_0 = arith.constant 0 : index
    %0 = vector.load %arg1[%c0, %c0_0] : memref<16x128xbf16, #tpu.memory_space<vmem>>, vector<16x128xbf16>
    %c0_1 = arith.constant 0 : index
    %c0_2 = arith.constant 0 : index
    %1 = vector.load %arg2[%c0_1, %c0_2] : memref<128x128xbf16, #tpu.memory_space<vmem>>, vector<128x128xbf16>
    %cst = arith.constant dense<0.000000e+00> : vector<16x128xf32>
    %2 = tpu.matmul %0, %1, %cst {dimension_numbers = #tpu.dot_dimension_numbers<[1], [0], [0], [1], [0, 0, 1, 1], [], []>} : vector<16x128xbf16>, vector<128x128xbf16>, vector<16x128xf32> -> vector<16x128xf32>
    %c0_3 = arith.constant 0 : index
    %c0_4 = arith.constant 0 : index
    %3 = vector.load %arg3[%c0_3, %c0_4] : memref<1x128xf32, #tpu.memory_space<vmem>>, vector<1x128xf32>
    %4 = vector.broadcast %3 : vector<1x128xf32> to vector<16x128xf32>
    %5 = arith.addf %2, %4 : vector<16x128xf32>
    %c0_5 = arith.constant 0 : index
    %c0_6 = arith.constant 0 : index
    %6 = vector.load %arg4[%c0_5, %c0_6] : memref<16x128xbf16, #tpu.memory_space<vmem>>, vector<16x128xbf16>
    %7 = arith.extf %6 : vector<16x128xbf16> to vector<16x128xf32>
    %8 = arith.addf %5, %7 : vector<16x128xf32>
    %c0_7 = arith.constant 0 : index
    %c0_8 = arith.constant 0 : index
    %9 = vector.load %arg5[%c0_7, %c0_8] : memref<1x128xf32, #tpu.memory_space<vmem>>, vector<1x128xf32>
    %c0_9 = arith.constant 0 : index
    %c0_10 = arith.constant 0 : index
    %10 = vector.load %arg6[%c0_9, %c0_10] : memref<1x128xf32, #tpu.memory_space<vmem>>, vector<1x128xf32>
    %cst_11 = arith.constant dense<0.000000e+00> : vector<16xf32>
    %11 = vector.multi_reduction <add>, %8, %cst_11 [1] : vector<16x128xf32> to vector<16xf32>
    %12 = vector.shape_cast %11 : vector<16xf32> to vector<16x1xf32>
    %cst_12 = arith.constant 1.280000e+02 : f32
    %13 = vector.broadcast %cst_12 : f32 to vector<16x1xf32>
    %14 = arith.divf %12, %13 : vector<16x1xf32>
    %15 = vector.broadcast %14 : vector<16x1xf32> to vector<16x128xf32>
    %16 = arith.subf %8, %15 : vector<16x128xf32>
    %17 = arith.mulf %16, %16 : vector<16x128xf32>
    %cst_13 = arith.constant dense<0.000000e+00> : vector<16xf32>
    %18 = vector.multi_reduction <add>, %17, %cst_13 [1] : vector<16x128xf32> to vector<16xf32>
    %19 = vector.shape_cast %18 : vector<16xf32> to vector<16x1xf32>
    %cst_14 = arith.constant 1.280000e+02 : f32
    %20 = vector.broadcast %cst_14 : f32 to vector<16x1xf32>
    %21 = arith.divf %19, %20 : vector<16x1xf32>
    %22 = vector.broadcast %14 : vector<16x1xf32> to vector<16x128xf32>
    %23 = arith.subf %8, %22 : vector<16x128xf32>
    %cst_15 = arith.constant 9.99999974E-6 : f32
    %24 = vector.broadcast %cst_15 : f32 to vector<16x1xf32>
    %25 = arith.addf %21, %24 : vector<16x1xf32>
    %26 = math.rsqrt %25 : vector<16x1xf32>
    %27 = vector.broadcast %26 : vector<16x1xf32> to vector<16x128xf32>
    %28 = arith.mulf %23, %27 : vector<16x128xf32>
    %29 = vector.broadcast %9 : vector<1x128xf32> to vector<16x128xf32>
    %30 = arith.mulf %28, %29 : vector<16x128xf32>
    %31 = vector.broadcast %10 : vector<1x128xf32> to vector<16x128xf32>
    %32 = arith.addf %30, %31 : vector<16x128xf32>
    %33 = arith.truncf %32 : vector<16x128xf32> to vector<16x128xbf16>
    %c0_16 = arith.constant 0 : index
    %c0_17 = arith.constant 0 : index
    %34 = vector.load %arg7[%c0_16, %c0_17] : memref<16x128xbf16, #tpu.memory_space<vmem>>, vector<16x128xbf16>
    tpu.vector_store %arg7[%c0_16, %c0_17], %33 {strides = array<i32>} : memref<16x128xbf16, #tpu.memory_space<vmem>>, vector<16x128xbf16>,
    return
  }
  func.func @transform_0(%arg0: i32) -> (i32, i32) {
    %c0_i32 = arith.constant 0 : i32
    %c0_i32_0 = arith.constant 0 : i32
    return %arg0, %c0_i32 : i32, i32
  }
  func.func @transform_1(%arg0: i32) -> (i32, i32) {
    %c0_i32 = arith.constant 0 : i32
    %c0_i32_0 = arith.constant 0 : i32
    %c0_i32_1 = arith.constant 0 : i32
    return %c0_i32, %c0_i32_0 : i32, i32
  }
  func.func @transform_2(%arg0: i32) -> (i32, i32) {
    %c0_i32 = arith.constant 0 : i32
    %c0_i32_0 = arith.constant 0 : i32
    %c0_i32_1 = arith.constant 0 : i32
    return %c0_i32, %c0_i32_0 : i32, i32
  }
  func.func @transform_3(%arg0: i32) -> (i32, i32) {
    %c0_i32 = arith.constant 0 : i32
    %c0_i32_0 = arith.constant 0 : i32
    return %arg0, %c0_i32 : i32, i32
  }
  func.func @transform_4(%arg0: i32) -> (i32, i32) {
    %c0_i32 = arith.constant 0 : i32
    %c0_i32_0 = arith.constant 0 : i32
    %c0_i32_1 = arith.constant 0 : i32
    return %c0_i32, %c0_i32_0 : i32, i32
  }
  func.func @transform_5(%arg0: i32) -> (i32, i32) {
    %c0_i32 = arith.constant 0 : i32
    %c0_i32_0 = arith.constant 0 : i32
    %c0_i32_1 = arith.constant 0 : i32
    return %c0_i32, %c0_i32_0 : i32, i32
  }
  func.func @transform_6(%arg0: i32) -> (i32, i32) {
    %c0_i32 = arith.constant 0 : i32
    %c0_i32_0 = arith.constant 0 : i32
    return %arg0, %c0_i32 : i32, i32
  }
}

module attributes {stable_mosaic.version = 11 : i64} {
  func.func @_linear_kernel(%arg0: i32, %arg1: i32, %arg2: memref<16x128xbf16, #tpu.memory_space<vmem>>, %arg3: memref<128x128xbf16, #tpu.memory_space<vmem>>, %arg4: memref<1x128xf32, #tpu.memory_space<vmem>>, %arg5: memref<16x128xbf16, #tpu.memory_space<vmem>>) attributes {dimension_semantics = [#tpu.dimension_semantics<parallel>, #tpu.dimension_semantics<parallel>], iteration_bounds = array<i64: 1, 1>, scalar_prefetch = 0 : i64, scratch_operands = 0 : i64, tpu.core_type = #tpu.core_type<tc>, window_params = [{transform_indices = @transform_0, window_bounds = array<i64: 16, 128>}, {transform_indices = @transform_1, window_bounds = array<i64: 128, 128>}, {transform_indices = @transform_2, window_bounds = array<i64: 1, 128>}, {transform_indices = @transform_3, window_bounds = array<i64: 16, 128>}]} {
    %c0 = arith.constant 0 : index
    %c0_0 = arith.constant 0 : index
    %0 = vector.load %arg2[%c0, %c0_0] : memref<16x128xbf16, #tpu.memory_space<vmem>>, vector<16x128xbf16>
    %c0_1 = arith.constant 0 : index
    %c0_2 = arith.constant 0 : index
    %1 = vector.load %arg3[%c0_1, %c0_2] : memref<128x128xbf16, #tpu.memory_space<vmem>>, vector<128x128xbf16>
    %cst = arith.constant dense<0.000000e+00> : vector<16x128xf32>
    %2 = tpu.matmul %0, %1, %cst {dimension_numbers = #tpu.dot_dimension_numbers<[1], [0], [0], [1], [0, 0, 1, 1], [], []>} : vector<16x128xbf16>, vector<128x128xbf16>, vector<16x128xf32> -> vector<16x128xf32>
    %c0_3 = arith.constant 0 : index
    %c0_4 = arith.constant 0 : index
    %3 = vector.load %arg4[%c0_3, %c0_4] : memref<1x128xf32, #tpu.memory_space<vmem>>, vector<1x128xf32>
    %4 = vector.broadcast %3 : vector<1x128xf32> to vector<16x128xf32>
    %5 = arith.addf %2, %4 : vector<16x128xf32>
    %6 = arith.truncf %5 : vector<16x128xf32> to vector<16x128xbf16>
    %c0_5 = arith.constant 0 : index
    %c0_6 = arith.constant 0 : index
    %7 = vector.load %arg5[%c0_5, %c0_6] : memref<16x128xbf16, #tpu.memory_space<vmem>>, vector<16x128xbf16>
    tpu.vector_store %arg5[%c0_5, %c0_6], %6 {strides = array<i32>} : memref<16x128xbf16, #tpu.memory_space<vmem>>, vector<16x128xbf16>,
    return
  }
  func.func @transform_0(%arg0: i32, %arg1: i32) -> (i32, i32) {
    %c0_i32 = arith.constant 0 : i32
    %c0_i32_0 = arith.constant 0 : i32
    return %arg0, %c0_i32 : i32, i32
  }
  func.func @transform_1(%arg0: i32, %arg1: i32) -> (i32, i32) {
    %c0_i32 = arith.constant 0 : i32
    %c0_i32_0 = arith.constant 0 : i32
    return %c0_i32, %arg1 : i32, i32
  }
  func.func @transform_2(%arg0: i32, %arg1: i32) -> (i32, i32) {
    %c0_i32 = arith.constant 0 : i32
    %c0_i32_0 = arith.constant 0 : i32
    return %c0_i32, %arg1 : i32, i32
  }
  func.func @transform_3(%arg0: i32, %arg1: i32) -> (i32, i32) {
    %c0_i32 = arith.constant 0 : i32
    return %arg0, %arg1 : i32, i32
  }
}

module attributes {stable_mosaic.version = 11 : i64} {
  func.func @_ffn_res_ln_kernel(%arg0: i32, %arg1: i32, %arg2: memref<16x128xbf16, #tpu.memory_space<vmem>>, %arg3: memref<128x256xbf16, #tpu.memory_space<vmem>>, %arg4: memref<1x256xf32, #tpu.memory_space<vmem>>, %arg5: memref<256x128xbf16, #tpu.memory_space<vmem>>, %arg6: memref<1x128xf32, #tpu.memory_space<vmem>>, %arg7: memref<1x128xf32, #tpu.memory_space<vmem>>, %arg8: memref<1x128xf32, #tpu.memory_space<vmem>>, %arg9: memref<16x128xbf16, #tpu.memory_space<vmem>>, %arg10: memref<16x128xf32, #tpu.memory_space<vmem>>) attributes {dimension_semantics = [#tpu.dimension_semantics<parallel>, #tpu.dimension_semantics<arbitrary>], iteration_bounds = array<i64: 1, 1>, scalar_prefetch = 0 : i64, scratch_operands = 1 : i64, tpu.core_type = #tpu.core_type<tc>, window_params = [{transform_indices = @transform_0, window_bounds = array<i64: 16, 128>}, {transform_indices = @transform_1, window_bounds = array<i64: 128, 256>}, {transform_indices = @transform_2, window_bounds = array<i64: 1, 256>}, {transform_indices = @transform_3, window_bounds = array<i64: 256, 128>}, {pipeline_mode = #tpu.pipeline_mode<synchronous>, transform_indices = @transform_4, window_bounds = array<i64: 1, 128>}, {pipeline_mode = #tpu.pipeline_mode<synchronous>, transform_indices = @transform_5, window_bounds = array<i64: 1, 128>}, {pipeline_mode = #tpu.pipeline_mode<synchronous>, transform_indices = @transform_6, window_bounds = array<i64: 1, 128>}, {transform_indices = @transform_7, window_bounds = array<i64: 16, 128>}]} {
    %c0_i32 = arith.constant 0 : i32
    %0 = arith.cmpi eq, %arg1, %c0_i32 : i32
    %1 = arith.extui %0 : i1 to i32
    %c0_i32_0 = arith.constant 0 : i32
    %2 = arith.cmpi ne, %1, %c0_i32_0 : i32
    scf.if %2 {
      %c0_16 = arith.constant 0 : index
      %c0_17 = arith.constant 0 : index
      %20 = vector.load %arg6[%c0_16, %c0_17] : memref<1x128xf32, #tpu.memory_space<vmem>>, vector<1x128xf32>
      %21 = vector.shape_cast %20 : vector<1x128xf32> to vector<1x128xf32>
      %22 = vector.broadcast %21 : vector<1x128xf32> to vector<16x128xf32>
      %c0_18 = arith.constant 0 : index
      %c0_19 = arith.constant 0 : index
      %23 = vector.load %arg10[%c0_18, %c0_19] : memref<16x128xf32, #tpu.memory_space<vmem>>, vector<16x128xf32>
      tpu.vector_store %arg10[%c0_18, %c0_19], %22 {strides = array<i32>} : memref<16x128xf32, #tpu.memory_space<vmem>>, vector<16x128xf32>,
    } else {
    }
    %c0 = arith.constant 0 : index
    %c0_1 = arith.constant 0 : index
    %3 = vector.load %arg2[%c0, %c0_1] : memref<16x128xbf16, #tpu.memory_space<vmem>>, vector<16x128xbf16>
    %c0_2 = arith.constant 0 : index
    %c0_3 = arith.constant 0 : index
    %4 = vector.load %arg3[%c0_2, %c0_3] : memref<128x256xbf16, #tpu.memory_space<vmem>>, vector<128x256xbf16>
    %cst = arith.constant dense<0.000000e+00> : vector<16x256xf32>
    %5 = tpu.matmul %3, %4, %cst {dimension_numbers = #tpu.dot_dimension_numbers<[1], [0], [0], [1], [0, 0, 1, 1], [], []>} : vector<16x128xbf16>, vector<128x256xbf16>, vector<16x256xf32> -> vector<16x256xf32>
    %c0_4 = arith.constant 0 : index
    %c0_5 = arith.constant 0 : index
    %6 = vector.load %arg4[%c0_4, %c0_5] : memref<1x256xf32, #tpu.memory_space<vmem>>, vector<1x256xf32>
    %7 = vector.broadcast %6 : vector<1x256xf32> to vector<16x256xf32>
    %8 = arith.addf %5, %7 : vector<16x256xf32>
    %cst_6 = arith.constant 0.000000e+00 : f32
    %9 = vector.broadcast %cst_6 : f32 to vector<16x256xf32>
    %10 = arith.maximumf %8, %9 : vector<16x256xf32>
    %11 = arith.truncf %10 : vector<16x256xf32> to vector<16x256xbf16>
    %c0_7 = arith.constant 0 : index
    %c0_8 = arith.constant 0 : index
    %12 = vector.load %arg10[%c0_7, %c0_8] : memref<16x128xf32, #tpu.memory_space<vmem>>, vector<16x128xf32>
    %c0_9 = arith.constant 0 : index
    %c0_10 = arith.constant 0 : index
    %13 = vector.load %arg5[%c0_9, %c0_10] : memref<256x128xbf16, #tpu.memory_space<vmem>>, vector<256x128xbf16>
    %cst_11 = arith.constant dense<0.000000e+00> : vector<16x128xf32>
    %14 = tpu.matmul %11, %13, %cst_11 {dimension_numbers = #tpu.dot_dimension_numbers<[1], [0], [0], [1], [0, 0, 1, 1], [], []>} : vector<16x256xbf16>, vector<256x128xbf16>, vector<16x128xf32> -> vector<16x128xf32>
    %15 = arith.addf %12, %14 : vector<16x128xf32>
    %c0_12 = arith.constant 0 : index
    %c0_13 = arith.constant 0 : index
    %16 = vector.load %arg10[%c0_12, %c0_13] : memref<16x128xf32, #tpu.memory_space<vmem>>, vector<16x128xf32>
    tpu.vector_store %arg10[%c0_12, %c0_13], %15 {strides = array<i32>} : memref<16x128xf32, #tpu.memory_space<vmem>>, vector<16x128xf32>,
    %c0_i32_14 = arith.constant 0 : i32
    %17 = arith.cmpi eq, %arg1, %c0_i32_14 : i32
    %18 = arith.extui %17 : i1 to i32
    %c0_i32_15 = arith.constant 0 : i32
    %19 = arith.cmpi ne, %18, %c0_i32_15 : i32
    scf.if %19 {
      %c0_16 = arith.constant 0 : index
      %c0_17 = arith.constant 0 : index
      %20 = vector.load %arg10[%c0_16, %c0_17] : memref<16x128xf32, #tpu.memory_space<vmem>>, vector<16x128xf32>
      %c0_18 = arith.constant 0 : index
      %c0_19 = arith.constant 0 : index
      %21 = vector.load %arg2[%c0_18, %c0_19] : memref<16x128xbf16, #tpu.memory_space<vmem>>, vector<16x128xbf16>
      %22 = arith.extf %21 : vector<16x128xbf16> to vector<16x128xf32>
      %23 = arith.addf %20, %22 : vector<16x128xf32>
      %c0_20 = arith.constant 0 : index
      %c0_21 = arith.constant 0 : index
      %24 = vector.load %arg7[%c0_20, %c0_21] : memref<1x128xf32, #tpu.memory_space<vmem>>, vector<1x128xf32>
      %c0_22 = arith.constant 0 : index
      %c0_23 = arith.constant 0 : index
      %25 = vector.load %arg8[%c0_22, %c0_23] : memref<1x128xf32, #tpu.memory_space<vmem>>, vector<1x128xf32>
      %cst_24 = arith.constant dense<0.000000e+00> : vector<16xf32>
      %26 = vector.multi_reduction <add>, %23, %cst_24 [1] : vector<16x128xf32> to vector<16xf32>
      %27 = vector.shape_cast %26 : vector<16xf32> to vector<16x1xf32>
      %cst_25 = arith.constant 1.280000e+02 : f32
      %28 = vector.broadcast %cst_25 : f32 to vector<16x1xf32>
      %29 = arith.divf %27, %28 : vector<16x1xf32>
      %30 = vector.broadcast %29 : vector<16x1xf32> to vector<16x128xf32>
      %31 = arith.subf %23, %30 : vector<16x128xf32>
      %32 = arith.mulf %31, %31 : vector<16x128xf32>
      %cst_26 = arith.constant dense<0.000000e+00> : vector<16xf32>
      %33 = vector.multi_reduction <add>, %32, %cst_26 [1] : vector<16x128xf32> to vector<16xf32>
      %34 = vector.shape_cast %33 : vector<16xf32> to vector<16x1xf32>
      %cst_27 = arith.constant 1.280000e+02 : f32
      %35 = vector.broadcast %cst_27 : f32 to vector<16x1xf32>
      %36 = arith.divf %34, %35 : vector<16x1xf32>
      %37 = vector.broadcast %29 : vector<16x1xf32> to vector<16x128xf32>
      %38 = arith.subf %23, %37 : vector<16x128xf32>
      %cst_28 = arith.constant 9.99999974E-6 : f32
      %39 = vector.broadcast %cst_28 : f32 to vector<16x1xf32>
      %40 = arith.addf %36, %39 : vector<16x1xf32>
      %41 = math.rsqrt %40 : vector<16x1xf32>
      %42 = vector.broadcast %41 : vector<16x1xf32> to vector<16x128xf32>
      %43 = arith.mulf %38, %42 : vector<16x128xf32>
      %44 = vector.broadcast %24 : vector<1x128xf32> to vector<16x128xf32>
      %45 = arith.mulf %43, %44 : vector<16x128xf32>
      %46 = vector.broadcast %25 : vector<1x128xf32> to vector<16x128xf32>
      %47 = arith.addf %45, %46 : vector<16x128xf32>
      %48 = arith.truncf %47 : vector<16x128xf32> to vector<16x128xbf16>
      %c0_29 = arith.constant 0 : index
      %c0_30 = arith.constant 0 : index
      %49 = vector.load %arg9[%c0_29, %c0_30] : memref<16x128xbf16, #tpu.memory_space<vmem>>, vector<16x128xbf16>
      tpu.vector_store %arg9[%c0_29, %c0_30], %48 {strides = array<i32>} : memref<16x128xbf16, #tpu.memory_space<vmem>>, vector<16x128xbf16>,
    } else {
    }
    return
  }
  func.func @transform_0(%arg0: i32, %arg1: i32) -> (i32, i32) {
    %c0_i32 = arith.constant 0 : i32
    %c0_i32_0 = arith.constant 0 : i32
    return %arg0, %c0_i32 : i32, i32
  }
  func.func @transform_1(%arg0: i32, %arg1: i32) -> (i32, i32) {
    %c0_i32 = arith.constant 0 : i32
    %c0_i32_0 = arith.constant 0 : i32
    return %c0_i32, %arg1 : i32, i32
  }
  func.func @transform_2(%arg0: i32, %arg1: i32) -> (i32, i32) {
    %c0_i32 = arith.constant 0 : i32
    %c0_i32_0 = arith.constant 0 : i32
    return %c0_i32, %arg1 : i32, i32
  }
  func.func @transform_3(%arg0: i32, %arg1: i32) -> (i32, i32) {
    %c0_i32 = arith.constant 0 : i32
    %c0_i32_0 = arith.constant 0 : i32
    return %arg1, %c0_i32 : i32, i32
  }
  func.func @transform_4(%arg0: i32, %arg1: i32) -> (i32, i32) {
    %c0_i32 = arith.constant 0 : i32
    %c0_i32_0 = arith.constant 0 : i32
    %c0_i32_1 = arith.constant 0 : i32
    return %c0_i32, %c0_i32_0 : i32, i32
  }
  func.func @transform_5(%arg0: i32, %arg1: i32) -> (i32, i32) {
    %c0_i32 = arith.constant 0 : i32
    %c0_i32_0 = arith.constant 0 : i32
    %c0_i32_1 = arith.constant 0 : i32
    return %c0_i32, %c0_i32_0 : i32, i32
  }
  func.func @transform_6(%arg0: i32, %arg1: i32) -> (i32, i32) {
    %c0_i32 = arith.constant 0 : i32
    %c0_i32_0 = arith.constant 0 : i32
    %c0_i32_1 = arith.constant 0 : i32
    return %c0_i32, %c0_i32_0 : i32, i32
  }
  func.func @transform_7(%arg0: i32, %arg1: i32) -> (i32, i32) {
    %c0_i32 = arith.constant 0 : i32
    %c0_i32_0 = arith.constant 0 : i32
    return %arg0, %c0_i32 : i32, i32
  }
}

module attributes {stable_mosaic.version = 11 : i64} {
  func.func @_linear_res_ln_kernel(%arg0: i32, %arg1: memref<16x128xbf16, #tpu.memory_space<vmem>>, %arg2: memref<128x128xbf16, #tpu.memory_space<vmem>>, %arg3: memref<1x128xf32, #tpu.memory_space<vmem>>, %arg4: memref<16x128xbf16, #tpu.memory_space<vmem>>, %arg5: memref<1x128xf32, #tpu.memory_space<vmem>>, %arg6: memref<1x128xf32, #tpu.memory_space<vmem>>, %arg7: memref<16x128xbf16, #tpu.memory_space<vmem>>) attributes {dimension_semantics = [#tpu.dimension_semantics<parallel>], iteration_bounds = array<i64: 1>, scalar_prefetch = 0 : i64, scratch_operands = 0 : i64, tpu.core_type = #tpu.core_type<tc>, window_params = [{transform_indices = @transform_0, window_bounds = array<i64: 16, 128>}, {pipeline_mode = #tpu.pipeline_mode<synchronous>, transform_indices = @transform_1, window_bounds = array<i64: 128, 128>}, {pipeline_mode = #tpu.pipeline_mode<synchronous>, transform_indices = @transform_2, window_bounds = array<i64: 1, 128>}, {transform_indices = @transform_3, window_bounds = array<i64: 16, 128>}, {pipeline_mode = #tpu.pipeline_mode<synchronous>, transform_indices = @transform_4, window_bounds = array<i64: 1, 128>}, {pipeline_mode = #tpu.pipeline_mode<synchronous>, transform_indices = @transform_5, window_bounds = array<i64: 1, 128>}, {transform_indices = @transform_6, window_bounds = array<i64: 16, 128>}]} {
    %c0 = arith.constant 0 : index
    %c0_0 = arith.constant 0 : index
    %0 = vector.load %arg1[%c0, %c0_0] : memref<16x128xbf16, #tpu.memory_space<vmem>>, vector<16x128xbf16>
    %c0_1 = arith.constant 0 : index
    %c0_2 = arith.constant 0 : index
    %1 = vector.load %arg2[%c0_1, %c0_2] : memref<128x128xbf16, #tpu.memory_space<vmem>>, vector<128x128xbf16>
    %cst = arith.constant dense<0.000000e+00> : vector<16x128xf32>
    %2 = tpu.matmul %0, %1, %cst {dimension_numbers = #tpu.dot_dimension_numbers<[1], [0], [0], [1], [0, 0, 1, 1], [], []>} : vector<16x128xbf16>, vector<128x128xbf16>, vector<16x128xf32> -> vector<16x128xf32>
    %c0_3 = arith.constant 0 : index
    %c0_4 = arith.constant 0 : index
    %3 = vector.load %arg3[%c0_3, %c0_4] : memref<1x128xf32, #tpu.memory_space<vmem>>, vector<1x128xf32>
    %4 = vector.broadcast %3 : vector<1x128xf32> to vector<16x128xf32>
    %5 = arith.addf %2, %4 : vector<16x128xf32>
    %c0_5 = arith.constant 0 : index
    %c0_6 = arith.constant 0 : index
    %6 = vector.load %arg4[%c0_5, %c0_6] : memref<16x128xbf16, #tpu.memory_space<vmem>>, vector<16x128xbf16>
    %7 = arith.extf %6 : vector<16x128xbf16> to vector<16x128xf32>
    %8 = arith.addf %5, %7 : vector<16x128xf32>
    %c0_7 = arith.constant 0 : index
    %c0_8 = arith.constant 0 : index
    %9 = vector.load %arg5[%c0_7, %c0_8] : memref<1x128xf32, #tpu.memory_space<vmem>>, vector<1x128xf32>
    %c0_9 = arith.constant 0 : index
    %c0_10 = arith.constant 0 : index
    %10 = vector.load %arg6[%c0_9, %c0_10] : memref<1x128xf32, #tpu.memory_space<vmem>>, vector<1x128xf32>
    %cst_11 = arith.constant dense<0.000000e+00> : vector<16xf32>
    %11 = vector.multi_reduction <add>, %8, %cst_11 [1] : vector<16x128xf32> to vector<16xf32>
    %12 = vector.shape_cast %11 : vector<16xf32> to vector<16x1xf32>
    %cst_12 = arith.constant 1.280000e+02 : f32
    %13 = vector.broadcast %cst_12 : f32 to vector<16x1xf32>
    %14 = arith.divf %12, %13 : vector<16x1xf32>
    %15 = vector.broadcast %14 : vector<16x1xf32> to vector<16x128xf32>
    %16 = arith.subf %8, %15 : vector<16x128xf32>
    %17 = arith.mulf %16, %16 : vector<16x128xf32>
    %cst_13 = arith.constant dense<0.000000e+00> : vector<16xf32>
    %18 = vector.multi_reduction <add>, %17, %cst_13 [1] : vector<16x128xf32> to vector<16xf32>
    %19 = vector.shape_cast %18 : vector<16xf32> to vector<16x1xf32>
    %cst_14 = arith.constant 1.280000e+02 : f32
    %20 = vector.broadcast %cst_14 : f32 to vector<16x1xf32>
    %21 = arith.divf %19, %20 : vector<16x1xf32>
    %22 = vector.broadcast %14 : vector<16x1xf32> to vector<16x128xf32>
    %23 = arith.subf %8, %22 : vector<16x128xf32>
    %cst_15 = arith.constant 9.99999974E-6 : f32
    %24 = vector.broadcast %cst_15 : f32 to vector<16x1xf32>
    %25 = arith.addf %21, %24 : vector<16x1xf32>
    %26 = math.rsqrt %25 : vector<16x1xf32>
    %27 = vector.broadcast %26 : vector<16x1xf32> to vector<16x128xf32>
    %28 = arith.mulf %23, %27 : vector<16x128xf32>
    %29 = vector.broadcast %9 : vector<1x128xf32> to vector<16x128xf32>
    %30 = arith.mulf %28, %29 : vector<16x128xf32>
    %31 = vector.broadcast %10 : vector<1x128xf32> to vector<16x128xf32>
    %32 = arith.addf %30, %31 : vector<16x128xf32>
    %33 = arith.truncf %32 : vector<16x128xf32> to vector<16x128xbf16>
    %c0_16 = arith.constant 0 : index
    %c0_17 = arith.constant 0 : index
    %34 = vector.load %arg7[%c0_16, %c0_17] : memref<16x128xbf16, #tpu.memory_space<vmem>>, vector<16x128xbf16>
    tpu.vector_store %arg7[%c0_16, %c0_17], %33 {strides = array<i32>} : memref<16x128xbf16, #tpu.memory_space<vmem>>, vector<16x128xbf16>,
    return
  }
  func.func @transform_0(%arg0: i32) -> (i32, i32) {
    %c0_i32 = arith.constant 0 : i32
    %c0_i32_0 = arith.constant 0 : i32
    return %arg0, %c0_i32 : i32, i32
  }
  func.func @transform_1(%arg0: i32) -> (i32, i32) {
    %c0_i32 = arith.constant 0 : i32
    %c0_i32_0 = arith.constant 0 : i32
    %c0_i32_1 = arith.constant 0 : i32
    return %c0_i32, %c0_i32_0 : i32, i32
  }
  func.func @transform_2(%arg0: i32) -> (i32, i32) {
    %c0_i32 = arith.constant 0 : i32
    %c0_i32_0 = arith.constant 0 : i32
    %c0_i32_1 = arith.constant 0 : i32
    return %c0_i32, %c0_i32_0 : i32, i32
  }
  func.func @transform_3(%arg0: i32) -> (i32, i32) {
    %c0_i32 = arith.constant 0 : i32
    %c0_i32_0 = arith.constant 0 : i32
    return %arg0, %c0_i32 : i32, i32
  }
  func.func @transform_4(%arg0: i32) -> (i32, i32) {
    %c0_i32 = arith.constant 0 : i32
    %c0_i32_0 = arith.constant 0 : i32
    %c0_i32_1 = arith.constant 0 : i32
    return %c0_i32, %c0_i32_0 : i32, i32
  }
  func.func @transform_5(%arg0: i32) -> (i32, i32) {
    %c0_i32 = arith.constant 0 : i32
    %c0_i32_0 = arith.constant 0 : i32
    %c0_i32_1 = arith.constant 0 : i32
    return %c0_i32, %c0_i32_0 : i32, i32
  }
  func.func @transform_6(%arg0: i32) -> (i32, i32) {
    %c0_i32 = arith.constant 0 : i32
    %c0_i32_0 = arith.constant 0 : i32
    return %arg0, %c0_i32 : i32, i32
  }
}

module attributes {stable_mosaic.version = 11 : i64} {
  func.func @_ffn_res_ln_kernel(%arg0: i32, %arg1: i32, %arg2: memref<16x128xbf16, #tpu.memory_space<vmem>>, %arg3: memref<128x256xbf16, #tpu.memory_space<vmem>>, %arg4: memref<1x256xf32, #tpu.memory_space<vmem>>, %arg5: memref<256x128xbf16, #tpu.memory_space<vmem>>, %arg6: memref<1x128xf32, #tpu.memory_space<vmem>>, %arg7: memref<1x128xf32, #tpu.memory_space<vmem>>, %arg8: memref<1x128xf32, #tpu.memory_space<vmem>>, %arg9: memref<16x128xbf16, #tpu.memory_space<vmem>>, %arg10: memref<16x128xf32, #tpu.memory_space<vmem>>) attributes {dimension_semantics = [#tpu.dimension_semantics<parallel>, #tpu.dimension_semantics<arbitrary>], iteration_bounds = array<i64: 1, 1>, scalar_prefetch = 0 : i64, scratch_operands = 1 : i64, tpu.core_type = #tpu.core_type<tc>, window_params = [{transform_indices = @transform_0, window_bounds = array<i64: 16, 128>}, {transform_indices = @transform_1, window_bounds = array<i64: 128, 256>}, {transform_indices = @transform_2, window_bounds = array<i64: 1, 256>}, {transform_indices = @transform_3, window_bounds = array<i64: 256, 128>}, {pipeline_mode = #tpu.pipeline_mode<synchronous>, transform_indices = @transform_4, window_bounds = array<i64: 1, 128>}, {pipeline_mode = #tpu.pipeline_mode<synchronous>, transform_indices = @transform_5, window_bounds = array<i64: 1, 128>}, {pipeline_mode = #tpu.pipeline_mode<synchronous>, transform_indices = @transform_6, window_bounds = array<i64: 1, 128>}, {transform_indices = @transform_7, window_bounds = array<i64: 16, 128>}]} {
    %c0_i32 = arith.constant 0 : i32
    %0 = arith.cmpi eq, %arg1, %c0_i32 : i32
    %1 = arith.extui %0 : i1 to i32
    %c0_i32_0 = arith.constant 0 : i32
    %2 = arith.cmpi ne, %1, %c0_i32_0 : i32
    scf.if %2 {
      %c0_16 = arith.constant 0 : index
      %c0_17 = arith.constant 0 : index
      %20 = vector.load %arg6[%c0_16, %c0_17] : memref<1x128xf32, #tpu.memory_space<vmem>>, vector<1x128xf32>
      %21 = vector.shape_cast %20 : vector<1x128xf32> to vector<1x128xf32>
      %22 = vector.broadcast %21 : vector<1x128xf32> to vector<16x128xf32>
      %c0_18 = arith.constant 0 : index
      %c0_19 = arith.constant 0 : index
      %23 = vector.load %arg10[%c0_18, %c0_19] : memref<16x128xf32, #tpu.memory_space<vmem>>, vector<16x128xf32>
      tpu.vector_store %arg10[%c0_18, %c0_19], %22 {strides = array<i32>} : memref<16x128xf32, #tpu.memory_space<vmem>>, vector<16x128xf32>,
    } else {
    }
    %c0 = arith.constant 0 : index
    %c0_1 = arith.constant 0 : index
    %3 = vector.load %arg2[%c0, %c0_1] : memref<16x128xbf16, #tpu.memory_space<vmem>>, vector<16x128xbf16>
    %c0_2 = arith.constant 0 : index
    %c0_3 = arith.constant 0 : index
    %4 = vector.load %arg3[%c0_2, %c0_3] : memref<128x256xbf16, #tpu.memory_space<vmem>>, vector<128x256xbf16>
    %cst = arith.constant dense<0.000000e+00> : vector<16x256xf32>
    %5 = tpu.matmul %3, %4, %cst {dimension_numbers = #tpu.dot_dimension_numbers<[1], [0], [0], [1], [0, 0, 1, 1], [], []>} : vector<16x128xbf16>, vector<128x256xbf16>, vector<16x256xf32> -> vector<16x256xf32>
    %c0_4 = arith.constant 0 : index
    %c0_5 = arith.constant 0 : index
    %6 = vector.load %arg4[%c0_4, %c0_5] : memref<1x256xf32, #tpu.memory_space<vmem>>, vector<1x256xf32>
    %7 = vector.broadcast %6 : vector<1x256xf32> to vector<16x256xf32>
    %8 = arith.addf %5, %7 : vector<16x256xf32>
    %cst_6 = arith.constant 0.000000e+00 : f32
    %9 = vector.broadcast %cst_6 : f32 to vector<16x256xf32>
    %10 = arith.maximumf %8, %9 : vector<16x256xf32>
    %11 = arith.truncf %10 : vector<16x256xf32> to vector<16x256xbf16>
    %c0_7 = arith.constant 0 : index
    %c0_8 = arith.constant 0 : index
    %12 = vector.load %arg10[%c0_7, %c0_8] : memref<16x128xf32, #tpu.memory_space<vmem>>, vector<16x128xf32>
    %c0_9 = arith.constant 0 : index
    %c0_10 = arith.constant 0 : index
    %13 = vector.load %arg5[%c0_9, %c0_10] : memref<256x128xbf16, #tpu.memory_space<vmem>>, vector<256x128xbf16>
    %cst_11 = arith.constant dense<0.000000e+00> : vector<16x128xf32>
    %14 = tpu.matmul %11, %13, %cst_11 {dimension_numbers = #tpu.dot_dimension_numbers<[1], [0], [0], [1], [0, 0, 1, 1], [], []>} : vector<16x256xbf16>, vector<256x128xbf16>, vector<16x128xf32> -> vector<16x128xf32>
    %15 = arith.addf %12, %14 : vector<16x128xf32>
    %c0_12 = arith.constant 0 : index
    %c0_13 = arith.constant 0 : index
    %16 = vector.load %arg10[%c0_12, %c0_13] : memref<16x128xf32, #tpu.memory_space<vmem>>, vector<16x128xf32>
    tpu.vector_store %arg10[%c0_12, %c0_13], %15 {strides = array<i32>} : memref<16x128xf32, #tpu.memory_space<vmem>>, vector<16x128xf32>,
    %c0_i32_14 = arith.constant 0 : i32
    %17 = arith.cmpi eq, %arg1, %c0_i32_14 : i32
    %18 = arith.extui %17 : i1 to i32
    %c0_i32_15 = arith.constant 0 : i32
    %19 = arith.cmpi ne, %18, %c0_i32_15 : i32
    scf.if %19 {
      %c0_16 = arith.constant 0 : index
      %c0_17 = arith.constant 0 : index
      %20 = vector.load %arg10[%c0_16, %c0_17] : memref<16x128xf32, #tpu.memory_space<vmem>>, vector<16x128xf32>
      %c0_18 = arith.constant 0 : index
      %c0_19 = arith.constant 0 : index
      %21 = vector.load %arg2[%c0_18, %c0_19] : memref<16x128xbf16, #tpu.memory_space<vmem>>, vector<16x128xbf16>
      %22 = arith.extf %21 : vector<16x128xbf16> to vector<16x128xf32>
      %23 = arith.addf %20, %22 : vector<16x128xf32>
      %c0_20 = arith.constant 0 : index
      %c0_21 = arith.constant 0 : index
      %24 = vector.load %arg7[%c0_20, %c0_21] : memref<1x128xf32, #tpu.memory_space<vmem>>, vector<1x128xf32>
      %c0_22 = arith.constant 0 : index
      %c0_23 = arith.constant 0 : index
      %25 = vector.load %arg8[%c0_22, %c0_23] : memref<1x128xf32, #tpu.memory_space<vmem>>, vector<1x128xf32>
      %cst_24 = arith.constant dense<0.000000e+00> : vector<16xf32>
      %26 = vector.multi_reduction <add>, %23, %cst_24 [1] : vector<16x128xf32> to vector<16xf32>
      %27 = vector.shape_cast %26 : vector<16xf32> to vector<16x1xf32>
      %cst_25 = arith.constant 1.280000e+02 : f32
      %28 = vector.broadcast %cst_25 : f32 to vector<16x1xf32>
      %29 = arith.divf %27, %28 : vector<16x1xf32>
      %30 = vector.broadcast %29 : vector<16x1xf32> to vector<16x128xf32>
      %31 = arith.subf %23, %30 : vector<16x128xf32>
      %32 = arith.mulf %31, %31 : vector<16x128xf32>
      %cst_26 = arith.constant dense<0.000000e+00> : vector<16xf32>
      %33 = vector.multi_reduction <add>, %32, %cst_26 [1] : vector<16x128xf32> to vector<16xf32>
      %34 = vector.shape_cast %33 : vector<16xf32> to vector<16x1xf32>
      %cst_27 = arith.constant 1.280000e+02 : f32
      %35 = vector.broadcast %cst_27 : f32 to vector<16x1xf32>
      %36 = arith.divf %34, %35 : vector<16x1xf32>
      %37 = vector.broadcast %29 : vector<16x1xf32> to vector<16x128xf32>
      %38 = arith.subf %23, %37 : vector<16x128xf32>
      %cst_28 = arith.constant 9.99999974E-6 : f32
      %39 = vector.broadcast %cst_28 : f32 to vector<16x1xf32>
      %40 = arith.addf %36, %39 : vector<16x1xf32>
      %41 = math.rsqrt %40 : vector<16x1xf32>
      %42 = vector.broadcast %41 : vector<16x1xf32> to vector<16x128xf32>
      %43 = arith.mulf %38, %42 : vector<16x128xf32>
      %44 = vector.broadcast %24 : vector<1x128xf32> to vector<16x128xf32>
      %45 = arith.mulf %43, %44 : vector<16x128xf32>
      %46 = vector.broadcast %25 : vector<1x128xf32> to vector<16x128xf32>
      %47 = arith.addf %45, %46 : vector<16x128xf32>
      %48 = arith.truncf %47 : vector<16x128xf32> to vector<16x128xbf16>
      %c0_29 = arith.constant 0 : index
      %c0_30 = arith.constant 0 : index
      %49 = vector.load %arg9[%c0_29, %c0_30] : memref<16x128xbf16, #tpu.memory_space<vmem>>, vector<16x128xbf16>
      tpu.vector_store %arg9[%c0_29, %c0_30], %48 {strides = array<i32>} : memref<16x128xbf16, #tpu.memory_space<vmem>>, vector<16x128xbf16>,
    } else {
    }
    return
  }
  func.func @transform_0(%arg0: i32, %arg1: i32) -> (i32, i32) {
    %c0_i32 = arith.constant 0 : i32
    %c0_i32_0 = arith.constant 0 : i32
    return %arg0, %c0_i32 : i32, i32
  }
  func.func @transform_1(%arg0: i32, %arg1: i32) -> (i32, i32) {
    %c0_i32 = arith.constant 0 : i32
    %c0_i32_0 = arith.constant 0 : i32
    return %c0_i32, %arg1 : i32, i32
  }
  func.func @transform_2(%arg0: i32, %arg1: i32) -> (i32, i32) {
    %c0_i32 = arith.constant 0 : i32
    %c0_i32_0 = arith.constant 0 : i32
    return %c0_i32, %arg1 : i32, i32
  }
  func.func @transform_3(%arg0: i32, %arg1: i32) -> (i32, i32) {
    %c0_i32 = arith.constant 0 : i32
    %c0_i32_0 = arith.constant 0 : i32
    return %arg1, %c0_i32 : i32, i32
  }
  func.func @transform_4(%arg0: i32, %arg1: i32) -> (i32, i32) {
    %c0_i32 = arith.constant 0 : i32
    %c0_i32_0 = arith.constant 0 : i32
    %c0_i32_1 = arith.constant 0 : i32
    return %c0_i32, %c0_i32_0 : i32, i32
  }
  func.func @transform_5(%arg0: i32, %arg1: i32) -> (i32, i32) {
    %c0_i32 = arith.constant 0 : i32
    %c0_i32_0 = arith.constant 0 : i32
    %c0_i32_1 = arith.constant 0 : i32
    return %c0_i32, %c0_i32_0 : i32, i32
  }
  func.func @transform_6(%arg0: i32, %arg1: i32) -> (i32, i32) {
    %c0_i32 = arith.constant 0 : i32
    %c0_i32_0 = arith.constant 0 : i32
    %c0_i32_1 = arith.constant 0 : i32
    return %c0_i32, %c0_i32_0 : i32, i32
  }
  func.func @transform_7(%arg0: i32, %arg1: i32) -> (i32, i32) {
    %c0_i32 = arith.constant 0 : i32
    %c0_i32_0 = arith.constant 0 : i32
    return %arg0, %c0_i32 : i32, i32
  }
}

module attributes {stable_mosaic.version = 11 : i64} {
  func.func @_linear_kernel(%arg0: i32, %arg1: i32, %arg2: memref<16x128xbf16, #tpu.memory_space<vmem>>, %arg3: memref<128x128xbf16, #tpu.memory_space<vmem>>, %arg4: memref<1x128xf32, #tpu.memory_space<vmem>>, %arg5: memref<16x128xf32, #tpu.memory_space<vmem>>) attributes {dimension_semantics = [#tpu.dimension_semantics<parallel>, #tpu.dimension_semantics<parallel>], iteration_bounds = array<i64: 1, 1>, scalar_prefetch = 0 : i64, scratch_operands = 0 : i64, tpu.core_type = #tpu.core_type<tc>, window_params = [{transform_indices = @transform_0, window_bounds = array<i64: 16, 128>}, {transform_indices = @transform_1, window_bounds = array<i64: 128, 128>}, {transform_indices = @transform_2, window_bounds = array<i64: 1, 128>}, {transform_indices = @transform_3, window_bounds = array<i64: 16, 128>}]} {
    %c0 = arith.constant 0 : index
    %c0_0 = arith.constant 0 : index
    %0 = vector.load %arg2[%c0, %c0_0] : memref<16x128xbf16, #tpu.memory_space<vmem>>, vector<16x128xbf16>
    %c0_1 = arith.constant 0 : index
    %c0_2 = arith.constant 0 : index
    %1 = vector.load %arg3[%c0_1, %c0_2] : memref<128x128xbf16, #tpu.memory_space<vmem>>, vector<128x128xbf16>
    %cst = arith.constant dense<0.000000e+00> : vector<16x128xf32>
    %2 = tpu.matmul %0, %1, %cst {dimension_numbers = #tpu.dot_dimension_numbers<[1], [0], [0], [1], [0, 0, 1, 1], [], []>} : vector<16x128xbf16>, vector<128x128xbf16>, vector<16x128xf32> -> vector<16x128xf32>
    %c0_3 = arith.constant 0 : index
    %c0_4 = arith.constant 0 : index
    %3 = vector.load %arg4[%c0_3, %c0_4] : memref<1x128xf32, #tpu.memory_space<vmem>>, vector<1x128xf32>
    %4 = vector.broadcast %3 : vector<1x128xf32> to vector<16x128xf32>
    %5 = arith.addf %2, %4 : vector<16x128xf32>
    %c0_5 = arith.constant 0 : index
    %c0_6 = arith.constant 0 : index
    %6 = vector.load %arg5[%c0_5, %c0_6] : memref<16x128xf32, #tpu.memory_space<vmem>>, vector<16x128xf32>
    tpu.vector_store %arg5[%c0_5, %c0_6], %5 {strides = array<i32>} : memref<16x128xf32, #tpu.memory_space<vmem>>, vector<16x128xf32>,
    return
  }
  func.func @transform_0(%arg0: i32, %arg1: i32) -> (i32, i32) {
    %c0_i32 = arith.constant 0 : i32
    %c0_i32_0 = arith.constant 0 : i32
    return %arg0, %c0_i32 : i32, i32
  }
  func.func @transform_1(%arg0: i32, %arg1: i32) -> (i32, i32) {
    %c0_i32 = arith.constant 0 : i32
    %c0_i32_0 = arith.constant 0 : i32
    return %c0_i32, %arg1 : i32, i32
  }
  func.func @transform_2(%arg0: i32, %arg1: i32) -> (i32, i32) {
    %c0_i32 = arith.constant 0 : i32
    %c0_i32_0 = arith.constant 0 : i32
    return %c0_i32, %arg1 : i32, i32
  }
  func.func @transform_3(%arg0: i32, %arg1: i32) -> (i32, i32) {
    %c0_i32 = arith.constant 0 : i32
    return %arg0, %arg1 : i32, i32
  }
}

</mosaic_0001>

<llo_original>
// kernel: transformer_forward.35
$region0: #{transformer_forward.35}
  #allocation0 [shape = 'u32[]', space=smem, size = 0x4, offset = 0x4, fixed_abs, tag = 'smem constant byte address 0x4 - core index']
  #allocation1 [shape = 'u32[72,128]{1,0:T(1,128)}', space=vmem, size = 0x9000, scoped, tag = 'internal scratch']
  %s0 = inlined_call_operand.vmem [shape: bf16[16,128], index: 0, kind: input, shape index: {}]
  %s1 = inlined_call_operand.vmem [shape: bf16[128,128], index: 1, kind: input, shape index: {}]
  %s2 = inlined_call_operand.vmem [shape: f32[1,128], index: 2, kind: input, shape index: {}]
  %s3 = inlined_call_operand.vmem [shape: bf16[16,128], index: 3, kind: input, shape index: {}]
  %s4 = inlined_call_operand.vmem [shape: f32[1,128], index: 4, kind: input, shape index: {}]
  %s5 = inlined_call_operand.vmem [shape: f32[1,128], index: 5, kind: input, shape index: {}]
  %s6 = inlined_call_operand.vmem [shape: bf16[16,128], index: 6, kind: output, shape index: {}]
  %s7 = sld [smem:[#allocation0]]
  $region34: #{transformer_forward.35} parent=0
    _
  %s9 = ssub.s32 1, %s7
  %s10 = scalar_select 0, %s9, %s7
  // Predicated region
  $region2: #{transformer_forward.35} parent=0 // pred_check
    _
  $region3: #{transformer_forward.35} parent=0 // pred_check_branch
    %12 = sbr.rel (0) target = $region5
  $region4: #{transformer_forward.35} parent=0 // pred_region
    _
  $region5: #{transformer_forward.35} parent=0 // pred_fallthru
    _
  // Predicated region
  $region6: #{transformer_forward.35} parent=0 // pred_check
    _
  $region7: #{transformer_forward.35} parent=0 // pred_check_branch
    %14 = sbr.rel (0) target = $region9
  $region8: #{transformer_forward.35} parent=0 // pred_region
    _
  $region9: #{transformer_forward.35} parent=0 // pred_fallthru
    _
  // Predicated region
  $region10: #{transformer_forward.35} parent=0 // pred_check
    _
  $region11: #{transformer_forward.35} parent=0 // pred_check_branch
    %16 = sbr.rel (0) target = $region13
  $region12: #{transformer_forward.35} parent=0 // pred_region
    _
  $region13: #{transformer_forward.35} parent=0 // pred_fallthru
    _
  // Predicated region
  $region14: #{transformer_forward.35} parent=0 // pred_check
    _
  $region15: #{transformer_forward.35} parent=0 // pred_check_branch
    %18 = sbr.rel (0) target = $region17
  $region16: #{transformer_forward.35} parent=0 // pred_region
    _
  $region17: #{transformer_forward.35} parent=0 // pred_fallthru
    _
  // Predicated region
  $region18: #{transformer_forward.35} parent=0 // pred_check
    _
  $region19: #{transformer_forward.35} parent=0 // pred_check_branch
    %20 = sbr.rel (0) target = $region21
  $region20: #{transformer_forward.35} parent=0 // pred_region
    _
  $region21: #{transformer_forward.35} parent=0 // pred_fallthru
    _
  // Predicated region
  $region22: #{transformer_forward.35} parent=0 // pred_check
    _
  $region23: #{transformer_forward.35} parent=0 // pred_check_branch
    %22 = sbr.rel (0) target = $region25
  $region24: #{transformer_forward.35} parent=0 // pred_region
    _
  $region25: #{transformer_forward.35} parent=0 // pred_fallthru
    _
  %v23 = vld [vmem:[%s0] sm:$0xf]
  %v24 = vld [vmem:[%s0 + $0x4] sm:$0xf]
  %v25 = vld [vmem:[%s1] sm:$0xf]
  %v26 = vld [vmem:[%s1 + $0x4] sm:$0xf]
  %v27 = vld [vmem:[%s1 + $0x8] sm:$0xf]
  %v28 = vld [vmem:[%s1 + $0xc] sm:$0xf]
  %v29 = vld [vmem:[%s1 + $0x10] sm:$0xf]
  %v30 = vld [vmem:[%s1 + $0x14] sm:$0xf]
  %v31 = vld [vmem:[%s1 + $0x18] sm:$0xf]
  %v32 = vld [vmem:[%s1 + $0x1c] sm:$0xf]
  %v33 = vld [vmem:[%s1 + $0x20] sm:$0xf]
  %v34 = vld [vmem:[%s1 + $0x24] sm:$0xf]
  %v35 = vld [vmem:[%s1 + $0x28] sm:$0xf]
  %v36 = vld [vmem:[%s1 + $0x2c] sm:$0xf]
  %v37 = vld [vmem:[%s1 + $0x30] sm:$0xf]
  %v38 = vld [vmem:[%s1 + $0x34] sm:$0xf]
  %v39 = vld [vmem:[%s1 + $0x38] sm:$0xf]
  %v40 = vld [vmem:[%s1 + $0x3c] sm:$0xf]
  %v41 = vld [vmem:[%s2] sm:$0x1]
  %v43 = vperm.slane %v41, 0
  %v47 = vunpack.c.l.b16 %v23
  %v48 = vunpack.c.l.b16 %v24
  %v49 = vpack.c.b16 %v48, %v47
  %v67 = vunpack.c.l.b16 %v25
  %v68 = vunpack.c.l.b16 %v26
  %v69 = vunpack.c.l.b16 %v27
  %v70 = vunpack.c.l.b16 %v28
  %v71 = vunpack.c.l.b16 %v29
  %v72 = vunpack.c.l.b16 %v30
  %v73 = vunpack.c.l.b16 %v31
  %v74 = vunpack.c.l.b16 %v32
  %v75 = vunpack.c.l.b16 %v33
  %v76 = vunpack.c.l.b16 %v34
  %v77 = vunpack.c.l.b16 %v35
  %v78 = vunpack.c.l.b16 %v36
  %v79 = vunpack.c.l.b16 %v37
  %v80 = vunpack.c.l.b16 %v38
  %v81 = vunpack.c.l.b16 %v39
  %v82 = vunpack.c.l.b16 %v40
  %v83 = vpack.c.b16 %v68, %v67
  %v84 = vpack.c.b16 %v70, %v69
  %v85 = vpack.c.b16 %v72, %v71
  %v86 = vpack.c.b16 %v74, %v73
  %v87 = vpack.c.b16 %v76, %v75
  %v88 = vpack.c.b16 %v78, %v77
  %v89 = vpack.c.b16 %v80, %v79
  %v90 = vpack.c.b16 %v82, %v81
  %99 = vmatpush.bf16.msra.mxu0 %v90
  %100 = vmatpush.bf16.msra.mxu0 %v89
  %101 = vmatpush.bf16.msra.mxu0 %v88
  %102 = vmatpush.bf16.msra.mxu0 %v87
  %103 = vmatpush.bf16.msra.mxu0 %v86
  %104 = vmatpush.bf16.msra.mxu0 %v85
  %105 = vmatpush.bf16.msra.mxu0 %v84
  %106 = vmatpush.bf16.msra.mxu0 %v83
  %107 = vmatmul.bf16.gmra.mxu0 %v49
  %v108 = vpop.f32.mrf.mxu0
  %v109 = vadd.f32 %v43, %v108
  %v110 = vpop.f32.mrf.mxu0
  %v111 = vadd.f32 %v43, %v110
  %112 = vdwg.mxu0
  %v113 = vld [vmem:[%s3] sm:$0xf]
  %v114 = vld [vmem:[%s3 + $0x4] sm:$0xf]
  %v115 = vunpack.c.l.bf16 %v113
  %v116 = vunpack.c.l.bf16 %v114
  %v117 = vadd.f32 %v109, %v115
  %v118 = vadd.f32 %v111, %v116
  %v119 = vld [vmem:[%s4] sm:$0x1]
  %v120 = vld [vmem:[%s5] sm:$0x1]
  %121 = vadd.xlane.f32.xlu0 %v117
  %v122 = vpop.xlane.xlu0 %121
  %123 = vadd.xlane.f32.xlu0 %v118
  %v124 = vpop.xlane.xlu0 %123
  %v125 = vrcp.pop 128.0
  %v126 = vmul.f32 128.0, %v125
  %v127 = vsub.f32 1.0, %v126
  %v128 = vmul.f32 %v125, %v127
  %v129 = vadd.f32 %v125, %v128
  %vm130 = vweird.f32 %v125
  %v131 = vsel %vm130, %v125, %v129
  %v132 = vmul.f32 %v122, %v131
  %v133 = vmul.f32 %v124, %v131
  %v134 = vsub.f32 %v117, %v132
  %v135 = vsub.f32 %v118, %v133
  %v136 = vmul.f32 %v134, %v134
  %v137 = vmul.f32 %v135, %v135
  %138 = vadd.xlane.f32.xlu0 %v136
  %v139 = vpop.xlane.xlu0 %138
  %140 = vadd.xlane.f32.xlu0 %v137
  %v141 = vpop.xlane.xlu0 %140
  %v142 = vmul.f32 %v139, %v131
  %v143 = vmul.f32 %v141, %v131
  %v144 = vadd.f32 %v142, 1e-05
  %v145 = vadd.f32 %v143, 1e-05
  %v146 = vrsqrt.pop %v144
  %v147 = vmul.f32 %v146, %v144
  %v148 = vmul.f32 %v147, %v146
  %v149 = vmul.f32 0.5, %v148
  %v150 = vsub.f32 1.5, %v149
  %v151 = vmul.f32 %v146, %v150
  %vm152 = vweird.f32 %v144
  %vm153 = vweird.f32 %v146
  %vm154 = vmor %vm152, %vm153
  %v155 = vsel %vm154, %v146, %v151
  %v156 = vrsqrt.pop %v145
  %v157 = vmul.f32 %v156, %v145
  %v158 = vmul.f32 %v157, %v156
  %v159 = vmul.f32 0.5, %v158
  %v160 = vsub.f32 1.5, %v159
  %v161 = vmul.f32 %v156, %v160
  %vm162 = vweird.f32 %v145
  %vm163 = vweird.f32 %v156
  %vm164 = vmor %vm162, %vm163
  %v165 = vsel %vm164, %v156, %v161
  %v166 = vmul.f32 %v134, %v155
  %v167 = vmul.f32 %v135, %v165
  %v169 = vperm.slane %v119, 0
  %v171 = vmul.f32 %v166, %v169
  %v172 = vmul.f32 %v167, %v169
  %v174 = vperm.slane %v120, 0
  %v176 = vadd.f32 %v171, %v174
  %v177 = vadd.f32 %v172, %v174
  %v178 = vpack.c.bf16 %v176, %v176
  %v179 = vpack.c.bf16 %v177, %v177
  %180 = vst [vmem:[%s6] sm:$0xf] %v178
  %181 = vst [vmem:[%s6 + $0x4] sm:$0xf] %v179
  // Predicated region
  $region26: #{transformer_forward.35} parent=0 // pred_check
    _
  $region27: #{transformer_forward.35} parent=0 // pred_check_branch
    %183 = sbr.rel (0) target = $region29
  $region28: #{transformer_forward.35} parent=0 // pred_region
    _
  $region29: #{transformer_forward.35} parent=0 // pred_fallthru
    _
  // Predicated region
  $region30: #{transformer_forward.35} parent=0 // pred_check
    _
  $region31: #{transformer_forward.35} parent=0 // pred_check_branch
    %185 = sbr.rel (0) target = $region33
  $region32: #{transformer_forward.35} parent=0 // pred_region
    _
  $region33: #{transformer_forward.35} parent=0 // pred_fallthru
    _

// kernel: transformer_forward.36
$region0: #{transformer_forward.36}
  #allocation0 [shape = 'u32[]', space=smem, size = 0x4, offset = 0x4, fixed_abs, tag = 'smem constant byte address 0x4 - core index']
  #allocation1 [shape = 'u32[72,128]{1,0:T(1,128)}', space=vmem, size = 0x9000, scoped, tag = 'internal scratch']
  %s0 = inlined_call_operand.vmem [shape: bf16[16,128], index: 0, kind: input, shape index: {}]
  %s1 = inlined_call_operand.hbm [shape: bf16[128,128], index: 1, kind: input, shape index: {}]
  %s2 = inlined_call_operand.vmem [shape: f32[1,128], index: 2, kind: input, shape index: {}]
  %s3 = inlined_call_operand.vmem [shape: bf16[16,128], index: 3, kind: output, shape index: {}]
  %s4 = sld [smem:[#allocation0]]
  $region26: #{transformer_forward.36} parent=0
    _
  %s6 = ssub.s32 1, %s4
  %s7 = scalar_select 0, %s6, %s4
  $region1: #{transformer_forward.36} parent=0
    #allocation2 [shape = 'u8[32768]{0}', space=vmem, size = 0x8000, scoped, tag = 'input window, operand 1, single buffered']
    #allocation3 [shape = 's32[1]{0}', space=sflag, size = 0x4, scoped, tag = 'scoped memory for transformer_forward.36']
    %8 = vsyncpa [#allocation3], 0
    // Predicated region
    $region2: #{transformer_forward.36} parent=1 // pred_check
      _
    $region3: #{transformer_forward.36} parent=1 // pred_check_branch
      %10 = sbr.rel (0) target = $region5
    $region4: #{transformer_forward.36} parent=1 // pred_region
      _
    $region5: #{transformer_forward.36} parent=1 // pred_fallthru
      _
    // Predicated region
    $region6: #{transformer_forward.36} parent=1 // pred_check
      _
    $region7: #{transformer_forward.36} parent=1 // pred_check_branch
      %12 = sbr.rel (0) target = $region9
    $region8: #{transformer_forward.36} parent=1 // pred_region
      %14 = vsyncadd [#allocation3], 0
      %s15 = sshll.u32 %s1, 4
      %s16 = int_to_ptr.hbm [resolvable:$true] %s15
      %s17 = sshll.u32 [#allocation2], 4
      %s18 = int_to_ptr.vmem [resolvable:$true] %s17
      %23 = dma.hbm_to_vmem [thread:$0]  %s16, 1024, %s18, [#allocation3], 64, 64, 4
    $region9: #{transformer_forward.36} parent=1 // pred_fallthru
      _
    // Predicated region
    $region10: #{transformer_forward.36} parent=1 // pred_check
      _
    $region11: #{transformer_forward.36} parent=1 // pred_check_branch
      %25 = sbr.rel (0) target = $region13
    $region12: #{transformer_forward.36} parent=1 // pred_region
      _
    $region13: #{transformer_forward.36} parent=1 // pred_fallthru
      _
    // Predicated region
    $region14: #{transformer_forward.36} parent=1 // pred_check
      _
    $region15: #{transformer_forward.36} parent=1 // pred_check_branch
      %27 = sbr.rel (0) target = $region17
    $region16: #{transformer_forward.36} parent=1 // pred_region
      %29 = dma.done [#allocation3], 1024
    $region17: #{transformer_forward.36} parent=1 // pred_fallthru
      _
    %v30 = vld [vmem:[%s0] sm:$0xf]
    %v31 = vld [vmem:[%s0 + $0x4] sm:$0xf]
    %v32 = vld [vmem:[#allocation2] sm:$0xf]
    %v33 = vld [vmem:[#allocation2 + $0x4] sm:$0xf]
    %v34 = vld [vmem:[#allocation2 + $0x8] sm:$0xf]
    %v35 = vld [vmem:[#allocation2 + $0xc] sm:$0xf]
    %v36 = vld [vmem:[#allocation2 + $0x10] sm:$0xf]
    %v37 = vld [vmem:[#allocation2 + $0x14] sm:$0xf]
    %v38 = vld [vmem:[#allocation2 + $0x18] sm:$0xf]
    %v39 = vld [vmem:[#allocation2 + $0x1c] sm:$0xf]
    %v40 = vld [vmem:[#allocation2 + $0x20] sm:$0xf]
    %v41 = vld [vmem:[#allocation2 + $0x24] sm:$0xf]
    %v42 = vld [vmem:[#allocation2 + $0x28] sm:$0xf]
    %v43 = vld [vmem:[#allocation2 + $0x2c] sm:$0xf]
    %v44 = vld [vmem:[#allocation2 + $0x30] sm:$0xf]
    %v45 = vld [vmem:[#allocation2 + $0x34] sm:$0xf]
    %v46 = vld [vmem:[#allocation2 + $0x38] sm:$0xf]
    %v47 = vld [vmem:[#allocation2 + $0x3c] sm:$0xf]
    %v48 = vld [vmem:[%s2] sm:$0x1]
    %v50 = vperm.slane %v48, 0
    %v54 = vunpack.c.l.b16 %v30
    %v55 = vunpack.c.l.b16 %v31
    %v56 = vpack.c.b16 %v55, %v54
    %v74 = vunpack.c.l.b16 %v32
    %v75 = vunpack.c.l.b16 %v33
    %v76 = vunpack.c.l.b16 %v34
    %v77 = vunpack.c.l.b16 %v35
    %v78 = vunpack.c.l.b16 %v36
    %v79 = vunpack.c.l.b16 %v37
    %v80 = vunpack.c.l.b16 %v38
    %v81 = vunpack.c.l.b16 %v39
    %v82 = vunpack.c.l.b16 %v40
    %v83 = vunpack.c.l.b16 %v41
    %v84 = vunpack.c.l.b16 %v42
    %v85 = vunpack.c.l.b16 %v43
    %v86 = vunpack.c.l.b16 %v44
    %v87 = vunpack.c.l.b16 %v45
    %v88 = vunpack.c.l.b16 %v46
    %v89 = vunpack.c.l.b16 %v47
    %v90 = vpack.c.b16 %v75, %v74
    %v91 = vpack.c.b16 %v77, %v76
    %v92 = vpack.c.b16 %v79, %v78
    %v93 = vpack.c.b16 %v81, %v80
    %v94 = vpack.c.b16 %v83, %v82
    %v95 = vpack.c.b16 %v85, %v84
    %v96 = vpack.c.b16 %v87, %v86
    %v97 = vpack.c.b16 %v89, %v88
    %106 = vmatpush.bf16.msra.mxu0 %v97
    %107 = vmatpush.bf16.msra.mxu0 %v96
    %108 = vmatpush.bf16.msra.mxu0 %v95
    %109 = vmatpush.bf16.msra.mxu0 %v94
    %110 = vmatpush.bf16.msra.mxu0 %v93
    %111 = vmatpush.bf16.msra.mxu0 %v92
    %112 = vmatpush.bf16.msra.mxu0 %v91
    %113 = vmatpush.bf16.msra.mxu0 %v90
    %114 = vmatmul.bf16.gmra.mxu0 %v56
    %v115 = vpop.f32.mrf.mxu0
    %v116 = vadd.f32 %v50, %v115
    %v117 = vpop.f32.mrf.mxu0
    %v118 = vadd.f32 %v50, %v117
    %119 = vdwg.mxu0
    %v120 = vpack.c.bf16 %v116, %v116
    %v121 = vpack.c.bf16 %v118, %v118
    %122 = vst [vmem:[%s3] sm:$0xf] %v120
    %123 = vst [vmem:[%s3 + $0x4] sm:$0xf] %v121
    // Predicated region
    $region18: #{transformer_forward.36} parent=1 // pred_check
      _
    $region19: #{transformer_forward.36} parent=1 // pred_check_branch
      %125 = sbr.rel (0) target = $region21
    $region20: #{transformer_forward.36} parent=1 // pred_region
      _
    $region21: #{transformer_forward.36} parent=1 // pred_fallthru
      _
    // Predicated region
    $region22: #{transformer_forward.36} parent=1 // pred_check
      _
    $region23: #{transformer_forward.36} parent=1 // pred_check_branch
      %127 = sbr.rel (0) target = $region25
    $region24: #{transformer_forward.36} parent=1 // pred_region
      _
    $region25: #{transformer_forward.36} parent=1 // pred_fallthru
      _
    %128 = vsyncpa [#allocation3], 1

// kernel: transformer_forward.33
$region0: #{transformer_forward.33}
  #allocation0 [shape = 'u32[]', space=smem, size = 0x4, offset = 0x4, fixed_abs, tag = 'smem constant byte address 0x4 - core index']
  #allocation1 [shape = 'u32[72,128]{1,0:T(1,128)}', space=vmem, size = 0x9000, scoped, tag = 'internal scratch']
  %s0 = inlined_call_operand.vmem [shape: bf16[16,128], index: 0, kind: input, shape index: {}]
  %s1 = inlined_call_operand.vmem [shape: bf16[128,384], index: 1, kind: input, shape index: {}]
  %s2 = inlined_call_operand.vmem [shape: f32[1,384], index: 2, kind: input, shape index: {}]
  %s3 = inlined_call_operand.vmem [shape: bf16[16,384], index: 3, kind: output, shape index: {}]
  %s4 = sld [smem:[#allocation0]]
  $region22: #{transformer_forward.33} parent=0
    _
  %s6 = ssub.s32 1, %s4
  %s7 = scalar_select 0, %s6, %s4
  // Predicated region
  $region2: #{transformer_forward.33} parent=0 // pred_check
    _
  $region3: #{transformer_forward.33} parent=0 // pred_check_branch
    %9 = sbr.rel (0) target = $region5
  $region4: #{transformer_forward.33} parent=0 // pred_region
    _
  $region5: #{transformer_forward.33} parent=0 // pred_fallthru
    _
  // Predicated region
  $region6: #{transformer_forward.33} parent=0 // pred_check
    _
  $region7: #{transformer_forward.33} parent=0 // pred_check_branch
    %11 = sbr.rel (0) target = $region9
  $region8: #{transformer_forward.33} parent=0 // pred_region
    _
  $region9: #{transformer_forward.33} parent=0 // pred_fallthru
    _
  // Predicated region
  $region10: #{transformer_forward.33} parent=0 // pred_check
    _
  $region11: #{transformer_forward.33} parent=0 // pred_check_branch
    %13 = sbr.rel (0) target = $region13
  $region12: #{transformer_forward.33} parent=0 // pred_region
    _
  $region13: #{transformer_forward.33} parent=0 // pred_fallthru
    _
  %v14 = vld [vmem:[%s0] sm:$0xf]
  %v15 = vld [vmem:[%s0 + $0x4] sm:$0xf]
  %v16 = vld [vmem:[%s1] sm:$0xff]
  %v17 = vld [vmem:[%s1 + $0x8] sm:$0xf]
  %v18 = vld [vmem:[%s1 + $0xc] sm:$0xff]
  %v19 = vld [vmem:[%s1 + $0x14] sm:$0xf]
  %v20 = vld [vmem:[%s1 + $0x18] sm:$0xff]
  %v21 = vld [vmem:[%s1 + $0x20] sm:$0xf]
  %v22 = vld [vmem:[%s1 + $0x24] sm:$0xff]
  %v23 = vld [vmem:[%s1 + $0x2c] sm:$0xf]
  %v24 = vld [vmem:[%s1 + $0x30] sm:$0xff]
  %v25 = vld [vmem:[%s1 + $0x38] sm:$0xf]
  %v26 = vld [vmem:[%s1 + $0x3c] sm:$0xff]
  %v27 = vld [vmem:[%s1 + $0x44] sm:$0xf]
  %v28 = vld [vmem:[%s1 + $0x48] sm:$0xff]
  %v29 = vld [vmem:[%s1 + $0x50] sm:$0xf]
  %v30 = vld [vmem:[%s1 + $0x54] sm:$0xff]
  %v31 = vld [vmem:[%s1 + $0x5c] sm:$0xf]
  %v32 = vld [vmem:[%s1 + $0x60] sm:$0xff]
  %v33 = vld [vmem:[%s1 + $0x68] sm:$0xf]
  %v34 = vld [vmem:[%s1 + $0x6c] sm:$0xff]
  %v35 = vld [vmem:[%s1 + $0x74] sm:$0xf]
  %v36 = vld [vmem:[%s1 + $0x78] sm:$0xff]
  %v37 = vld [vmem:[%s1 + $0x80] sm:$0xf]
  %v38 = vld [vmem:[%s1 + $0x84] sm:$0xff]
  %v39 = vld [vmem:[%s1 + $0x8c] sm:$0xf]
  %v40 = vld [vmem:[%s1 + $0x90] sm:$0xff]
  %v41 = vld [vmem:[%s1 + $0x98] sm:$0xf]
  %v42 = vld [vmem:[%s1 + $0x9c] sm:$0xff]
  %v43 = vld [vmem:[%s1 + $0xa4] sm:$0xf]
  %v44 = vld [vmem:[%s1 + $0xa8] sm:$0xff]
  %v45 = vld [vmem:[%s1 + $0xb0] sm:$0xf]
  %v46 = vld [vmem:[%s1 + $0xb4] sm:$0xff]
  %v47 = vld [vmem:[%s1 + $0xbc] sm:$0xf]
  %v48 = vld [vmem:[%s2] sm:$0x7]
  %v50 = vperm.slane %v48, 0
  %v51 = vperm.slane %v48, 1
  %v52 = vperm.slane %v48, 2
  %v58 = vunpack.c.l.b16 %v14
  %v59 = vunpack.c.l.b16 %v15
  %v60 = vpack.c.b16 %v59, %v58
  %v94 = vunpack.c.l.b16 %v16
  %v95 = vunpack.c.h.b16 %v16
  %v96 = vunpack.c.l.b16 %v17
  %v97 = vunpack.c.l.b16 %v18
  %v98 = vunpack.c.h.b16 %v18
  %v99 = vunpack.c.l.b16 %v19
  %v100 = vunpack.c.l.b16 %v20
  %v101 = vunpack.c.h.b16 %v20
  %v102 = vunpack.c.l.b16 %v21
  %v103 = vunpack.c.l.b16 %v22
  %v104 = vunpack.c.h.b16 %v22
  %v105 = vunpack.c.l.b16 %v23
  %v106 = vunpack.c.l.b16 %v24
  %v107 = vunpack.c.h.b16 %v24
  %v108 = vunpack.c.l.b16 %v25
  %v109 = vunpack.c.l.b16 %v26
  %v110 = vunpack.c.h.b16 %v26
  %v111 = vunpack.c.l.b16 %v27
  %v112 = vunpack.c.l.b16 %v28
  %v113 = vunpack.c.h.b16 %v28
  %v114 = vunpack.c.l.b16 %v29
  %v115 = vunpack.c.l.b16 %v30
  %v116 = vunpack.c.h.b16 %v30
  %v117 = vunpack.c.l.b16 %v31
  %v118 = vunpack.c.l.b16 %v32
  %v119 = vunpack.c.h.b16 %v32
  %v120 = vunpack.c.l.b16 %v33
  %v121 = vunpack.c.l.b16 %v34
  %v122 = vunpack.c.h.b16 %v34
  %v123 = vunpack.c.l.b16 %v35
  %v124 = vunpack.c.l.b16 %v36
  %v125 = vunpack.c.h.b16 %v36
  %v126 = vunpack.c.l.b16 %v37
  %v127 = vunpack.c.l.b16 %v38
  %v128 = vunpack.c.h.b16 %v38
  %v129 = vunpack.c.l.b16 %v39
  %v130 = vunpack.c.l.b16 %v40
  %v131 = vunpack.c.h.b16 %v40
  %v132 = vunpack.c.l.b16 %v41
  %v133 = vunpack.c.l.b16 %v42
  %v134 = vunpack.c.h.b16 %v42
  %v135 = vunpack.c.l.b16 %v43
  %v136 = vunpack.c.l.b16 %v44
  %v137 = vunpack.c.h.b16 %v44
  %v138 = vunpack.c.l.b16 %v45
  %v139 = vunpack.c.l.b16 %v46
  %v140 = vunpack.c.h.b16 %v46
  %v141 = vunpack.c.l.b16 %v47
  %v142 = vpack.c.b16 %v97, %v94
  %v143 = vpack.c.b16 %v98, %v95
  %v144 = vpack.c.b16 %v99, %v96
  %v145 = vpack.c.b16 %v103, %v100
  %v146 = vpack.c.b16 %v104, %v101
  %v147 = vpack.c.b16 %v105, %v102
  %v148 = vpack.c.b16 %v109, %v106
  %v149 = vpack.c.b16 %v110, %v107
  %v150 = vpack.c.b16 %v111, %v108
  %v151 = vpack.c.b16 %v115, %v112
  %v152 = vpack.c.b16 %v116, %v113
  %v153 = vpack.c.b16 %v117, %v114
  %v154 = vpack.c.b16 %v121, %v118
  %v155 = vpack.c.b16 %v122, %v119
  %v156 = vpack.c.b16 %v123, %v120
  %v157 = vpack.c.b16 %v127, %v124
  %v158 = vpack.c.b16 %v128, %v125
  %v159 = vpack.c.b16 %v129, %v126
  %v160 = vpack.c.b16 %v133, %v130
  %v161 = vpack.c.b16 %v134, %v131
  %v162 = vpack.c.b16 %v135, %v132
  %v163 = vpack.c.b16 %v139, %v136
  %v164 = vpack.c.b16 %v140, %v137
  %v165 = vpack.c.b16 %v141, %v138
  %190 = vmatpush.bf16.msra.mxu0 %v163
  %191 = vmatpush.bf16.msra.mxu0 %v160
  %192 = vmatpush.bf16.msra.mxu0 %v157
  %193 = vmatpush.bf16.msra.mxu0 %v154
  %194 = vmatpush.bf16.msra.mxu0 %v151
  %195 = vmatpush.bf16.msra.mxu0 %v148
  %196 = vmatpush.bf16.msra.mxu0 %v145
  %197 = vmatpush.bf16.msra.mxu0 %v142
  %198 = vmatmul.bf16.gmra.mxu0 %v60
  %v199 = vpop.f32.mrf.mxu0
  %v200 = vadd.f32 %v50, %v199
  %v201 = vpop.f32.mrf.mxu0
  %v202 = vadd.f32 %v50, %v201
  %203 = vdwg.mxu0
  %204 = vmatpush.bf16.msra.mxu0 %v164
  %205 = vmatpush.bf16.msra.mxu0 %v161
  %206 = vmatpush.bf16.msra.mxu0 %v158
  %207 = vmatpush.bf16.msra.mxu0 %v155
  %208 = vmatpush.bf16.msra.mxu0 %v152
  %209 = vmatpush.bf16.msra.mxu0 %v149
  %210 = vmatpush.bf16.msra.mxu0 %v146
  %211 = vmatpush.bf16.msra.mxu0 %v143
  %212 = vmatmul.bf16.gmra.mxu0 %v60
  %v213 = vpop.f32.mrf.mxu0
  %v214 = vadd.f32 %v51, %v213
  %v215 = vpop.f32.mrf.mxu0
  %v216 = vadd.f32 %v51, %v215
  %217 = vdwg.mxu0
  %218 = vmatpush.bf16.msra.mxu0 %v165
  %219 = vmatpush.bf16.msra.mxu0 %v162
  %220 = vmatpush.bf16.msra.mxu0 %v159
  %221 = vmatpush.bf16.msra.mxu0 %v156
  %222 = vmatpush.bf16.msra.mxu0 %v153
  %223 = vmatpush.bf16.msra.mxu0 %v150
  %224 = vmatpush.bf16.msra.mxu0 %v147
  %225 = vmatpush.bf16.msra.mxu0 %v144
  %226 = vmatmul.bf16.gmra.mxu0 %v60
  %v227 = vpop.f32.mrf.mxu0
  %v228 = vadd.f32 %v52, %v227
  %v229 = vpop.f32.mrf.mxu0
  %v230 = vadd.f32 %v52, %v229
  %231 = vdwg.mxu0
  %v232 = vpack.c.bf16 %v214, %v200
  %v233 = vpack.c.bf16 %v228, %v228
  %v234 = vpack.c.bf16 %v216, %v202
  %v235 = vpack.c.bf16 %v230, %v230
  %236 = vst [vmem:[%s3] sm:$0xff] %v232
  %237 = vst [vmem:[%s3 + $0x8] sm:$0xf] %v233
  %238 = vst [vmem:[%s3 + $0xc] sm:$0xff] %v234
  %239 = vst [vmem:[%s3 + $0x14] sm:$0xf] %v235
  // Predicated region
  $region14: #{transformer_forward.33} parent=0 // pred_check
    _
  $region15: #{transformer_forward.33} parent=0 // pred_check_branch
    %241 = sbr.rel (0) target = $region17
  $region16: #{transformer_forward.33} parent=0 // pred_region
    _
  $region17: #{transformer_forward.33} parent=0 // pred_fallthru
    _
  // Predicated region
  $region18: #{transformer_forward.33} parent=0 // pred_check
    _
  $region19: #{transformer_forward.33} parent=0 // pred_check_branch
    %243 = sbr.rel (0) target = $region21
  $region20: #{transformer_forward.33} parent=0 // pred_region
    _
  $region21: #{transformer_forward.33} parent=0 // pred_fallthru
    _

// kernel: transformer_forward.34
$region0: #{transformer_forward.34}
  #allocation0 [shape = 'u32[]', space=smem, size = 0x4, offset = 0x4, fixed_abs, tag = 'smem constant byte address 0x4 - core index']
  #allocation1 [shape = 'u32[72,128]{1,0:T(1,128)}', space=vmem, size = 0x9000, scoped, tag = 'internal scratch']
  %s0 = inlined_call_operand.vmem [shape: bf16[2,4,8,32], index: 0, kind: input, shape index: {}]
  %s1 = inlined_call_operand.vmem [shape: bf16[2,4,8,32], index: 1, kind: input, shape index: {}]
  %s2 = inlined_call_operand.vmem [shape: bf16[2,4,8,32], index: 2, kind: input, shape index: {}]
  %s3 = inlined_call_operand.vmem [shape: bf16[2,4,8,32], index: 3, kind: output, shape index: {}]
  %s4 = sld [smem:[#allocation0]]
  $region45: #{transformer_forward.34} parent=0
    _
  %s6 = ssub.s32 1, %s4
  %s7 = scalar_select 0, %s6, %s4
  loop: start=0, step=1, limit=4
  $region2: #{transformer_forward.34} parent=0 // loop_pre_header
    _
  $region3: #{transformer_forward.34} parent=0 // loop_header
    %s9 = sphi 0, %s13
    %p10 = scmp.ge.s32.totalorder %s9, 4
    %s19 = sphi 0, %s21
    %s22 = sphi 0, %s19
    %s23 = sphi 0, %s22
    %s39 = sphi 0, %s23
    %s45 = sphi 0, %s47
    %s48 = sphi 0, %s45
    %s49 = sphi 0, %s48
    %s65 = sphi 0, %s49
    %s71 = sphi 0, %s73
    %s74 = sphi 0, %s71
    %s75 = sphi 0, %s74
    %s91 = sphi 0, %s75
    %s97 = sphi 0, %s99
    %s100 = sphi 0, %s97
    %s101 = sphi 0, %s100
    %s117 = sphi 0, %s101
  $region4: #{transformer_forward.34} parent=0 // loop_header_branch
    %12 = sbr.rel (%p10) target = $region8
  $region5: #{transformer_forward.34} parent=0 // loop_body
    %s14 = ssub.s32 %s9, 1
    %s15 = ssub.s32 %s9, 2
    %s16 = sadd.s32 %s9, 1
    %s17 = ssub.s32 %s9, %s16
    %p18 = scmp.eq.s32.totalorder %s17, 0
    %s20 = sadd.s32 %s19, 1
    %s21 = scalar_select %p18, %s19, %s20
    %p24 = pneg %p18
    %p25 = scmp.eq.s32.totalorder %s9, 1
    %p26 = por %p24, %p25
    %p27 = scmp.ne.s32.totalorder %s19, %s22
    %p28 = scmp.eq.s32.totalorder %s9, 0
    %p29 = por %p27, %p28
    %p30 = scmp.ne.s32.totalorder %s19, %s22
    %p31 = scmp.eq.s32.totalorder %s14, 1
    %p32 = por %p30, %p31
    %p33 = scmp.ne.s32.totalorder %s22, %s23
    %p34 = scmp.eq.s32.totalorder %s14, 0
    %p35 = por %p33, %p34
    %p36 = scmp.ne.s32.totalorder %s22, %s23
    %p37 = scmp.eq.s32.totalorder %s15, 1
    %p38 = por %p36, %p37
    %p40 = scmp.ne.s32.totalorder %s23, %s39
    %p41 = scmp.eq.s32.totalorder %s15, 0
    %p42 = por %p40, %p41
    %s43 = ssub.s32 %s9, %s16
    %p44 = scmp.eq.s32.totalorder %s43, 0
    %s46 = sadd.s32 %s45, 1
    %s47 = scalar_select %p44, %s45, %s46
    %p50 = pneg %p44
    %p51 = scmp.eq.s32.totalorder %s9, 1
    %p52 = por %p50, %p51
    %p53 = scmp.ne.s32.totalorder %s45, %s48
    %p54 = scmp.eq.s32.totalorder %s9, 0
    %p55 = por %p53, %p54
    %p56 = scmp.ne.s32.totalorder %s45, %s48
    %p57 = scmp.eq.s32.totalorder %s14, 1
    %p58 = por %p56, %p57
    %p59 = scmp.ne.s32.totalorder %s48, %s49
    %p60 = scmp.eq.s32.totalorder %s14, 0
    %p61 = por %p59, %p60
    %p62 = scmp.ne.s32.totalorder %s48, %s49
    %p63 = scmp.eq.s32.totalorder %s15, 1
    %p64 = por %p62, %p63
    %p66 = scmp.ne.s32.totalorder %s49, %s65
    %p67 = scmp.eq.s32.totalorder %s15, 0
    %p68 = por %p66, %p67
    %s69 = ssub.s32 %s9, %s16
    %p70 = scmp.eq.s32.totalorder %s69, 0
    %s72 = sadd.s32 %s71, 1
    %s73 = scalar_select %p70, %s71, %s72
    %p76 = pneg %p70
    %p77 = scmp.eq.s32.totalorder %s9, 1
    %p78 = por %p76, %p77
    %p79 = scmp.ne.s32.totalorder %s71, %s74
    %p80 = scmp.eq.s32.totalorder %s9, 0
    %p81 = por %p79, %p80
    %p82 = scmp.ne.s32.totalorder %s71, %s74
    %p83 = scmp.eq.s32.totalorder %s14, 1
    %p84 = por %p82, %p83
    %p85 = scmp.ne.s32.totalorder %s74, %s75
    %p86 = scmp.eq.s32.totalorder %s14, 0
    %p87 = por %p85, %p86
    %p88 = scmp.ne.s32.totalorder %s74, %s75
    %p89 = scmp.eq.s32.totalorder %s15, 1
    %p90 = por %p88, %p89
    %p92 = scmp.ne.s32.totalorder %s75, %s91
    %p93 = scmp.eq.s32.totalorder %s15, 0
    %p94 = por %p92, %p93
    %s95 = ssub.s32 %s9, %s16
    %p96 = scmp.eq.s32.totalorder %s95, 0
    %s98 = sadd.s32 %s97, 1
    %s99 = scalar_select %p96, %s97, %s98
    %p102 = pneg %p96
    %p103 = scmp.eq.s32.totalorder %s9, 1
    %p104 = por %p102, %p103
    %p105 = scmp.ne.s32.totalorder %s97, %s100
    %p106 = scmp.eq.s32.totalorder %s9, 0
    %p107 = por %p105, %p106
    %p108 = scmp.ne.s32.totalorder %s97, %s100
    %p109 = scmp.eq.s32.totalorder %s14, 1
    %p110 = por %p108, %p109
    %p111 = scmp.ne.s32.totalorder %s100, %s101
    %p112 = scmp.eq.s32.totalorder %s14, 0
    %p113 = por %p111, %p112
    %p114 = scmp.ne.s32.totalorder %s100, %s101
    %p115 = scmp.eq.s32.totalorder %s15, 1
    %p116 = por %p114, %p115
    %p118 = scmp.ne.s32.totalorder %s101, %s117
    %p119 = scmp.eq.s32.totalorder %s15, 0
    %p120 = por %p118, %p119
    %p121 = scmp.le.s32.totalorder 1, %s9
    %p122 = scmp.lt.s32.totalorder %s9, 3
    %p123 = pnand %p121, %p122
    %p124 = pneg %p123
    // Predicated region
    $region9: #{transformer_forward.34} parent=5 // pred_check
      _
    $region10: #{transformer_forward.34} parent=5 // pred_check_branch
      %126 = sbr.rel (%p123) target = $region12
    $region11: #{transformer_forward.34} parent=5 // pred_region
      %s127 = ssub.s32 %s9, 1
    $region12: #{transformer_forward.34} parent=5 // pred_fallthru
      _
    %p128 = scmp.lt.s32.totalorder %s9, 2
    // Predicated region
    $region13: #{transformer_forward.34} parent=5 // pred_check
      %p129 = pneg %p128
    $region14: #{transformer_forward.34} parent=5 // pred_check_branch
      %131 = sbr.rel (%p129) target = $region16
    $region15: #{transformer_forward.34} parent=5 // pred_region
      // Predicated region
      $region17: #{transformer_forward.34} parent=15 // pred_check
        %p132 = pneg %p29
      $region18: #{transformer_forward.34} parent=15 // pred_check_branch
        %134 = sbr.rel (%p132) target = $region20
      $region19: #{transformer_forward.34} parent=15 // pred_region
        %p135 = scmp.lt.s32.totalorder %s9, 1
        %s136 = scalar_select %p135, %s9, 1
        %s137 = smul.addr %s136, 4
        %s138 = smul.addr %s137, 4
        %s139 = scalar_lea.vmem %s0, %s138
      $region20: #{transformer_forward.34} parent=15 // pred_fallthru
        _
      // Predicated region
      $region21: #{transformer_forward.34} parent=15 // pred_check
        %p140 = pneg %p55
      $region22: #{transformer_forward.34} parent=15 // pred_check_branch
        %142 = sbr.rel (%p140) target = $region24
      $region23: #{transformer_forward.34} parent=15 // pred_region
        %p143 = scmp.lt.s32.totalorder %s9, 1
        %s144 = scalar_select %p143, %s9, 1
        %s145 = smul.addr %s144, 4
        %s146 = smul.addr %s145, 4
        %s147 = scalar_lea.vmem %s1, %s146
      $region24: #{transformer_forward.34} parent=15 // pred_fallthru
        _
      // Predicated region
      $region25: #{transformer_forward.34} parent=15 // pred_check
        %p148 = pneg %p81
      $region26: #{transformer_forward.34} parent=15 // pred_check_branch
        %150 = sbr.rel (%p148) target = $region28
      $region27: #{transformer_forward.34} parent=15 // pred_region
        %p151 = scmp.lt.s32.totalorder %s9, 1
        %s152 = scalar_select %p151, %s9, 1
        %s153 = smul.addr %s152, 4
        %s154 = smul.addr %s153, 4
        %s155 = scalar_lea.vmem %s2, %s154
      $region28: #{transformer_forward.34} parent=15 // pred_fallthru
        _
    $region16: #{transformer_forward.34} parent=5 // pred_fallthru
      _
    %p156 = scmp.le.s32.totalorder 1, %s9
    %p157 = scmp.lt.s32.totalorder %s9, 3
    %p158 = pnand %p156, %p157
    %p159 = pneg %p158
    // Predicated region
    $region29: #{transformer_forward.34} parent=5 // pred_check
      _
    $region30: #{transformer_forward.34} parent=5 // pred_check_branch
      %161 = sbr.rel (%p158) target = $region32
    $region31: #{transformer_forward.34} parent=5 // pred_region
      %s162 = ssub.s32 %s9, 1
      %p163 = scmp.lt.s32.totalorder %s14, 1
      %s164 = scalar_select %p163, %s14, 1
      %s165 = smul.addr %s164, 4
      %s166 = smul.addr %s165, 4
      %s167 = scalar_lea.vmem %s0, %s166
      %p168 = pneg %p35
      %p169 = pneg %p32
      %p170 = scmp.lt.s32.totalorder %s14, 1
      %s171 = scalar_select %p170, %s14, 1
      %s172 = smul.addr %s171, 4
      %s173 = smul.addr %s172, 4
      %s174 = scalar_lea.vmem %s1, %s173
      %p175 = pneg %p61
      %p176 = pneg %p58
      %p177 = scmp.lt.s32.totalorder %s14, 1
      %s178 = scalar_select %p177, %s14, 1
      %s179 = smul.addr %s178, 4
      %s180 = smul.addr %s179, 4
      %s181 = scalar_lea.vmem %s2, %s180
      %p182 = pneg %p87
      %p183 = pneg %p84
      %p184 = pneg %p113
      %p185 = pneg %p110
      %p186 = scmp.lt.s32.totalorder %s14, 1
      %s187 = scalar_select %p186, %s14, 1
      %s188 = smul.addr %s187, 4
      %s189 = smul.addr %s188, 4
      %s190 = scalar_lea.vmem %s3, %s189
      %p191 = scmp.lt.s32.totalorder %s14, 1
      %s192 = scalar_select %p191, %s14, 1
      %s193 = smul.addr %s192, 4
      %s194 = smul.addr %s193, 4
      %s195 = scalar_lea.vmem %s0, %s194
      %p196 = scmp.lt.s32.totalorder %s14, 1
      %s197 = scalar_select %p196, %s14, 1
      %s198 = smul.addr %s197, 4
      %s199 = smul.addr %s198, 4
      %s200 = scalar_lea.vmem %s1, %s199
      %p201 = scmp.lt.s32.totalorder %s14, 1
      %s202 = scalar_select %p201, %s14, 1
      %s203 = smul.addr %s202, 4
      %s204 = smul.addr %s203, 4
      %s205 = scalar_lea.vmem %s2, %s204
      %p206 = scmp.lt.s32.totalorder %s14, 1
      %s207 = scalar_select %p206, %s14, 1
      %s208 = smul.addr %s207, 4
      %s209 = smul.addr %s208, 4
      %s210 = scalar_lea.vmem %s3, %s209
      %v212 = vlaneseq
      %v213 = vshrl.u32 %v212, 7
      %v214 = vlaneseq
      %v215 = vand.u32 %v214, 127
      %vm216 = vcmp.ge.s32.totalorder %v213, %v215
      %v217 = vsel %vm216, 0.0, -1e+09
      %v218 = vld [vmem:[%s195] sm:$0xf]
      %v219 = vld [vmem:[%s195 + $0x4] sm:$0xf]
      %v220 = vld [vmem:[%s195 + $0x8] sm:$0xf]
      %v221 = vld [vmem:[%s195 + $0xc] sm:$0xf]
      %v222 = vld [vmem:[%s200] sm:$0xf]
      %v223 = vld [vmem:[%s200 + $0x4] sm:$0xf]
      %v224 = vld [vmem:[%s200 + $0x8] sm:$0xf]
      %v225 = vld [vmem:[%s200 + $0xc] sm:$0xf]
      %v226 = vld [vmem:[%s205] sm:$0xf]
      %v227 = vld [vmem:[%s205 + $0x4] sm:$0xf]
      %v228 = vld [vmem:[%s205 + $0x8] sm:$0xf]
      %v229 = vld [vmem:[%s205 + $0xc] sm:$0xf]
      %vm230 = vcmask 261120
      %v232 = vsel %vm230, %v218, 0
      %v235 = vsel %vm230, %v222, 0
      %237 = vmatpush.bf16.xpose.msra.mxu0 0
      %238 = vmatpush.bf16.xpose.msra.mxu0 0
      %239 = vmatpush.bf16.xpose.msra.mxu0 0
      %240 = vmatpush.bf16.xpose.msra.mxu0 0
      %241 = vmatpush.bf16.xpose.msra.mxu0 0
      %242 = vmatpush.bf16.xpose.msra.mxu0 0
      %243 = vmatpush.bf16.xpose.msra.mxu0 0
      %244 = vmatpush.bf16.xpose.msra.mxu0 %v235
      %245 = vmatmul.bf16.gmra.mxu0 %v232
      %v246 = vpop.f32.mrf.mxu0
      %v247 = vadd.f32 0.0, %v246
      %v248 = vpop.f32.mrf.mxu0
      %249 = vdwg.mxu0
      %v251 = vsel %vm230, %v219, 0
      %v254 = vsel %vm230, %v223, 0
      %256 = vmatpush.bf16.xpose.msra.mxu0 0
      %257 = vmatpush.bf16.xpose.msra.mxu0 0
      %258 = vmatpush.bf16.xpose.msra.mxu0 0
      %259 = vmatpush.bf16.xpose.msra.mxu0 0
      %260 = vmatpush.bf16.xpose.msra.mxu0 0
      %261 = vmatpush.bf16.xpose.msra.mxu0 0
      %262 = vmatpush.bf16.xpose.msra.mxu0 0
      %263 = vmatpush.bf16.xpose.msra.mxu0 %v254
      %264 = vmatmul.bf16.gmra.mxu0 %v251
      %v265 = vpop.f32.mrf.mxu0
      %v266 = vadd.f32 0.0, %v265
      %v267 = vpop.f32.mrf.mxu0
      %268 = vdwg.mxu0
      %v270 = vsel %vm230, %v220, 0
      %v273 = vsel %vm230, %v224, 0
      %275 = vmatpush.bf16.xpose.msra.mxu0 0
      %276 = vmatpush.bf16.xpose.msra.mxu0 0
      %277 = vmatpush.bf16.xpose.msra.mxu0 0
      %278 = vmatpush.bf16.xpose.msra.mxu0 0
      %279 = vmatpush.bf16.xpose.msra.mxu0 0
      %280 = vmatpush.bf16.xpose.msra.mxu0 0
      %281 = vmatpush.bf16.xpose.msra.mxu0 0
      %282 = vmatpush.bf16.xpose.msra.mxu0 %v273
      %283 = vmatmul.bf16.gmra.mxu0 %v270
      %v284 = vpop.f32.mrf.mxu0
      %v285 = vadd.f32 0.0, %v284
      %v286 = vpop.f32.mrf.mxu0
      %287 = vdwg.mxu0
      %v289 = vsel %vm230, %v221, 0
      %v292 = vsel %vm230, %v225, 0
      %294 = vmatpush.bf16.xpose.msra.mxu0 0
      %295 = vmatpush.bf16.xpose.msra.mxu0 0
      %296 = vmatpush.bf16.xpose.msra.mxu0 0
      %297 = vmatpush.bf16.xpose.msra.mxu0 0
      %298 = vmatpush.bf16.xpose.msra.mxu0 0
      %299 = vmatpush.bf16.xpose.msra.mxu0 0
      %300 = vmatpush.bf16.xpose.msra.mxu0 0
      %301 = vmatpush.bf16.xpose.msra.mxu0 %v292
      %302 = vmatmul.bf16.gmra.mxu0 %v289
      %v303 = vpop.f32.mrf.mxu0
      %v304 = vadd.f32 0.0, %v303
      %v305 = vpop.f32.mrf.mxu0
      %306 = vdwg.mxu0
      %v307 = vmul.f32 %v247, 0.17677669
      %v308 = vmul.f32 %v266, 0.17677669
      %v309 = vmul.f32 %v285, 0.17677669
      %v310 = vmul.f32 %v304, 0.17677669
      %v311 = vadd.f32 %v307, %v217
      %v312 = vadd.f32 %v308, %v217
      %v313 = vadd.f32 %v309, %v217
      %v314 = vadd.f32 %v310, %v217
      %vm315 = vcmask 64512
      %v316 = vsel %vm315, %v311, -inf
      %317 = vmax.xlane.f32.xlu0 %v316
      %v318 = vpop.xlane.xlu0 %317
      %v319 = vsel %vm315, %v312, -inf
      %320 = vmax.xlane.f32.xlu0 %v319
      %v321 = vpop.xlane.xlu0 %320
      %v322 = vsel %vm315, %v313, -inf
      %323 = vmax.xlane.f32.xlu0 %v322
      %v324 = vpop.xlane.xlu0 %323
      %v325 = vsel %vm315, %v314, -inf
      %326 = vmax.xlane.f32.xlu0 %v325
      %v327 = vpop.xlane.xlu0 %326
      %v328 = vsub.f32 %v311, %v318
      %v329 = vsub.f32 %v312, %v321
      %v330 = vsub.f32 %v313, %v324
      %v331 = vsub.f32 %v314, %v327
      %v332 = vmul.f32 %v328, 1.442695
      %v333 = vpow.pop %v332
      %v334 = vmul.f32 %v329, 1.442695
      %v335 = vpow.pop %v334
      %v336 = vmul.f32 %v330, 1.442695
      %v337 = vpow.pop %v336
      %v338 = vmul.f32 %v331, 1.442695
      %v339 = vpow.pop %v338
      %v340 = vsel %vm315, %v333, 0.0
      %341 = vadd.xlane.f32.xlu0 %v340
      %v342 = vpop.xlane.xlu0 %341
      %v343 = vsel %vm315, %v335, 0.0
      %344 = vadd.xlane.f32.xlu0 %v343
      %v345 = vpop.xlane.xlu0 %344
      %v346 = vsel %vm315, %v337, 0.0
      %347 = vadd.xlane.f32.xlu0 %v346
      %v348 = vpop.xlane.xlu0 %347
      %v349 = vsel %vm315, %v339, 0.0
      %350 = vadd.xlane.f32.xlu0 %v349
      %v351 = vpop.xlane.xlu0 %350
      %v352 = vrcp.pop %v342
      %v353 = vrcp.pop %v345
      %v354 = vrcp.pop %v348
      %v355 = vrcp.pop %v351
      %v356 = vmul.f32 %v333, %v352
      %v357 = vmul.f32 %v335, %v353
      %v358 = vmul.f32 %v337, %v354
      %v359 = vmul.f32 %v339, %v355
      %v360 = vpack.c.bf16 %v356, %v356
      %v361 = vpack.c.bf16 %v357, %v357
      %v362 = vpack.c.bf16 %v358, %v358
      %v363 = vpack.c.bf16 %v359, %v359
      %v365 = vsel %vm315, %v360, 0
      %vm367 = vcmask 1043456
      %v369 = vsel %vm367, %v226, 0
      %371 = vmatpush.bf16.msra.mxu0 0
      %372 = vmatpush.bf16.msra.mxu0 0
      %373 = vmatpush.bf16.msra.mxu0 0
      %374 = vmatpush.bf16.msra.mxu0 0
      %375 = vmatpush.bf16.msra.mxu0 0
      %376 = vmatpush.bf16.msra.mxu0 0
      %377 = vmatpush.bf16.msra.mxu0 0
      %378 = vmatpush.bf16.msra.mxu0 %v369
      %379 = vmatmul.bf16.gmra.mxu0 %v365
      %v380 = vpop.f32.mrf.mxu0
      %v381 = vadd.f32 0.0, %v380
      %v382 = vpop.f32.mrf.mxu0
      %383 = vdwg.mxu0
      %v385 = vsel %vm315, %v361, 0
      %v388 = vsel %vm367, %v227, 0
      %390 = vmatpush.bf16.msra.mxu0 0
      %391 = vmatpush.bf16.msra.mxu0 0
      %392 = vmatpush.bf16.msra.mxu0 0
      %393 = vmatpush.bf16.msra.mxu0 0
      %394 = vmatpush.bf16.msra.mxu0 0
      %395 = vmatpush.bf16.msra.mxu0 0
      %396 = vmatpush.bf16.msra.mxu0 0
      %397 = vmatpush.bf16.msra.mxu0 %v388
      %398 = vmatmul.bf16.gmra.mxu0 %v385
      %v399 = vpop.f32.mrf.mxu0
      %v400 = vadd.f32 0.0, %v399
      %v401 = vpop.f32.mrf.mxu0
      %402 = vdwg.mxu0
      %v404 = vsel %vm315, %v362, 0
      %v407 = vsel %vm367, %v228, 0
      %409 = vmatpush.bf16.msra.mxu0 0
      %410 = vmatpush.bf16.msra.mxu0 0
      %411 = vmatpush.bf16.msra.mxu0 0
      %412 = vmatpush.bf16.msra.mxu0 0
      %413 = vmatpush.bf16.msra.mxu0 0
      %414 = vmatpush.bf16.msra.mxu0 0
      %415 = vmatpush.bf16.msra.mxu0 0
      %416 = vmatpush.bf16.msra.mxu0 %v407
      %417 = vmatmul.bf16.gmra.mxu0 %v404
      %v418 = vpop.f32.mrf.mxu0
      %v419 = vadd.f32 0.0, %v418
      %v420 = vpop.f32.mrf.mxu0
      %421 = vdwg.mxu0
      %v423 = vsel %vm315, %v363, 0
      %v426 = vsel %vm367, %v229, 0
      %428 = vmatpush.bf16.msra.mxu0 0
      %429 = vmatpush.bf16.msra.mxu0 0
      %430 = vmatpush.bf16.msra.mxu0 0
      %431 = vmatpush.bf16.msra.mxu0 0
      %432 = vmatpush.bf16.msra.mxu0 0
      %433 = vmatpush.bf16.msra.mxu0 0
      %434 = vmatpush.bf16.msra.mxu0 0
      %435 = vmatpush.bf16.msra.mxu0 %v426
      %436 = vmatmul.bf16.gmra.mxu0 %v423
      %v437 = vpop.f32.mrf.mxu0
      %v438 = vadd.f32 0.0, %v437
      %v439 = vpop.f32.mrf.mxu0
      %440 = vdwg.mxu0
      %v441 = vpack.c.bf16 %v381, %v381
      %v442 = vpack.c.bf16 %v400, %v400
      %v443 = vpack.c.bf16 %v419, %v419
      %v444 = vpack.c.bf16 %v438, %v438
      %vm445 = vcmask 257024
      %446 = vst.msk [vmem:[%s210] sm:$0xf] %vm445, %v441
      %447 = vst.msk [vmem:[%s210 + $0x4] sm:$0xf] %vm445, %v442
      %448 = vst.msk [vmem:[%s210 + $0x8] sm:$0xf] %vm445, %v443
      %449 = vst.msk [vmem:[%s210 + $0xc] sm:$0xf] %vm445, %v444
      %p450 = scmp.lt.s32.totalorder %s14, 1
      %s451 = scalar_select %p450, %s14, 1
      %s452 = smul.addr %s451, 4
      %s453 = smul.addr %s452, 4
      %s454 = scalar_lea.vmem %s3, %s453
      // Predicated region
      $region33: #{transformer_forward.34} parent=31 // pred_check
        %p455 = pneg %p110
      $region34: #{transformer_forward.34} parent=31 // pred_check_branch
        %457 = sbr.rel (%p455) target = $region36
      $region35: #{transformer_forward.34} parent=31 // pred_region
        _
      $region36: #{transformer_forward.34} parent=31 // pred_fallthru
        _
    $region32: #{transformer_forward.34} parent=5 // pred_fallthru
      _
    %p458 = scmp.le.s32.totalorder 2, %s9
    // Predicated region
    $region37: #{transformer_forward.34} parent=5 // pred_check
      %p459 = pneg %p458
    $region38: #{transformer_forward.34} parent=5 // pred_check_branch
      %461 = sbr.rel (%p459) target = $region40
    $region39: #{transformer_forward.34} parent=5 // pred_region
      %s462 = ssub.s32 %s9, 2
      // Predicated region
      $region41: #{transformer_forward.34} parent=39 // pred_check
        %p463 = pneg %p116
      $region42: #{transformer_forward.34} parent=39 // pred_check_branch
        %465 = sbr.rel (%p463) target = $region44
      $region43: #{transformer_forward.34} parent=39 // pred_region
        %p466 = scmp.lt.s32.totalorder %s15, 1
        %s467 = scalar_select %p466, %s15, 1
        %s468 = smul.addr %s467, 4
        %s469 = smul.addr %s468, 4
        %s470 = scalar_lea.vmem %s3, %s469
      $region44: #{transformer_forward.34} parent=39 // pred_fallthru
        _
    $region40: #{transformer_forward.34} parent=5 // pred_fallthru
      _
  $region6: #{transformer_forward.34} parent=0 // loop_footer
    %s13 = sadd.s32 1, %s9
  $region7: #{transformer_forward.34} parent=0 // loop_footer_branch
    %8 = sbr.rel target = $region3
  $region8: #{transformer_forward.34} parent=0 // loop_exit
    _

// kernel: transformer_forward.37
$region0: #{transformer_forward.37}
  #allocation0 [shape = 'u32[]', space=smem, size = 0x4, offset = 0x4, fixed_abs, tag = 'smem constant byte address 0x4 - core index']
  #allocation1 [shape = 'u32[72,128]{1,0:T(1,128)}', space=vmem, size = 0x9000, scoped, tag = 'internal scratch']
  %s0 = inlined_call_operand.vmem [shape: bf16[16,128], index: 0, kind: input, shape index: {}]
  %s1 = inlined_call_operand.vmem [shape: bf16[128,256], index: 1, kind: input, shape index: {}]
  %s2 = inlined_call_operand.vmem [shape: f32[1,256], index: 2, kind: input, shape index: {}]
  %s3 = inlined_call_operand.vmem [shape: bf16[16,256], index: 3, kind: output, shape index: {}]
  %s4 = sld [smem:[#allocation0]]
  $region22: #{transformer_forward.37} parent=0
    _
  %s6 = ssub.s32 1, %s4
  %s7 = scalar_select 0, %s6, %s4
  // Predicated region
  $region2: #{transformer_forward.37} parent=0 // pred_check
    _
  $region3: #{transformer_forward.37} parent=0 // pred_check_branch
    %9 = sbr.rel (0) target = $region5
  $region4: #{transformer_forward.37} parent=0 // pred_region
    _
  $region5: #{transformer_forward.37} parent=0 // pred_fallthru
    _
  // Predicated region
  $region6: #{transformer_forward.37} parent=0 // pred_check
    _
  $region7: #{transformer_forward.37} parent=0 // pred_check_branch
    %11 = sbr.rel (0) target = $region9
  $region8: #{transformer_forward.37} parent=0 // pred_region
    _
  $region9: #{transformer_forward.37} parent=0 // pred_fallthru
    _
  // Predicated region
  $region10: #{transformer_forward.37} parent=0 // pred_check
    _
  $region11: #{transformer_forward.37} parent=0 // pred_check_branch
    %13 = sbr.rel (0) target = $region13
  $region12: #{transformer_forward.37} parent=0 // pred_region
    _
  $region13: #{transformer_forward.37} parent=0 // pred_fallthru
    _
  %v14 = vld [vmem:[%s0] sm:$0xf]
  %v15 = vld [vmem:[%s0 + $0x4] sm:$0xf]
  %v16 = vld [vmem:[%s1] sm:$0xff]
  %v17 = vld [vmem:[%s1 + $0x8] sm:$0xff]
  %v18 = vld [vmem:[%s1 + $0x10] sm:$0xff]
  %v19 = vld [vmem:[%s1 + $0x18] sm:$0xff]
  %v20 = vld [vmem:[%s1 + $0x20] sm:$0xff]
  %v21 = vld [vmem:[%s1 + $0x28] sm:$0xff]
  %v22 = vld [vmem:[%s1 + $0x30] sm:$0xff]
  %v23 = vld [vmem:[%s1 + $0x38] sm:$0xff]
  %v24 = vld [vmem:[%s1 + $0x40] sm:$0xff]
  %v25 = vld [vmem:[%s1 + $0x48] sm:$0xff]
  %v26 = vld [vmem:[%s1 + $0x50] sm:$0xff]
  %v27 = vld [vmem:[%s1 + $0x58] sm:$0xff]
  %v28 = vld [vmem:[%s1 + $0x60] sm:$0xff]
  %v29 = vld [vmem:[%s1 + $0x68] sm:$0xff]
  %v30 = vld [vmem:[%s1 + $0x70] sm:$0xff]
  %v31 = vld [vmem:[%s1 + $0x78] sm:$0xff]
  %v32 = vld [vmem:[%s2] sm:$0x3]
  %v34 = vperm.slane %v32, 0
  %v35 = vperm.slane %v32, 1
  %v40 = vunpack.c.l.b16 %v14
  %v41 = vunpack.c.l.b16 %v15
  %v42 = vpack.c.b16 %v41, %v40
  %v60 = vunpack.c.l.b16 %v16
  %v61 = vunpack.c.h.b16 %v16
  %v62 = vunpack.c.l.b16 %v17
  %v63 = vunpack.c.h.b16 %v17
  %v64 = vunpack.c.l.b16 %v18
  %v65 = vunpack.c.h.b16 %v18
  %v66 = vunpack.c.l.b16 %v19
  %v67 = vunpack.c.h.b16 %v19
  %v68 = vunpack.c.l.b16 %v20
  %v69 = vunpack.c.h.b16 %v20
  %v70 = vunpack.c.l.b16 %v21
  %v71 = vunpack.c.h.b16 %v21
  %v72 = vunpack.c.l.b16 %v22
  %v73 = vunpack.c.h.b16 %v22
  %v74 = vunpack.c.l.b16 %v23
  %v75 = vunpack.c.h.b16 %v23
  %v76 = vunpack.c.l.b16 %v24
  %v77 = vunpack.c.h.b16 %v24
  %v78 = vunpack.c.l.b16 %v25
  %v79 = vunpack.c.h.b16 %v25
  %v80 = vunpack.c.l.b16 %v26
  %v81 = vunpack.c.h.b16 %v26
  %v82 = vunpack.c.l.b16 %v27
  %v83 = vunpack.c.h.b16 %v27
  %v84 = vunpack.c.l.b16 %v28
  %v85 = vunpack.c.h.b16 %v28
  %v86 = vunpack.c.l.b16 %v29
  %v87 = vunpack.c.h.b16 %v29
  %v88 = vunpack.c.l.b16 %v30
  %v89 = vunpack.c.h.b16 %v30
  %v90 = vunpack.c.l.b16 %v31
  %v91 = vunpack.c.h.b16 %v31
  %v92 = vpack.c.b16 %v62, %v60
  %v93 = vpack.c.b16 %v63, %v61
  %v94 = vpack.c.b16 %v66, %v64
  %v95 = vpack.c.b16 %v67, %v65
  %v96 = vpack.c.b16 %v70, %v68
  %v97 = vpack.c.b16 %v71, %v69
  %v98 = vpack.c.b16 %v74, %v72
  %v99 = vpack.c.b16 %v75, %v73
  %v100 = vpack.c.b16 %v78, %v76
  %v101 = vpack.c.b16 %v79, %v77
  %v102 = vpack.c.b16 %v82, %v80
  %v103 = vpack.c.b16 %v83, %v81
  %v104 = vpack.c.b16 %v86, %v84
  %v105 = vpack.c.b16 %v87, %v85
  %v106 = vpack.c.b16 %v90, %v88
  %v107 = vpack.c.b16 %v91, %v89
  %124 = vmatpush.bf16.msra.mxu0 %v106
  %125 = vmatpush.bf16.msra.mxu0 %v104
  %126 = vmatpush.bf16.msra.mxu0 %v102
  %127 = vmatpush.bf16.msra.mxu0 %v100
  %128 = vmatpush.bf16.msra.mxu0 %v98
  %129 = vmatpush.bf16.msra.mxu0 %v96
  %130 = vmatpush.bf16.msra.mxu0 %v94
  %131 = vmatpush.bf16.msra.mxu0 %v92
  %132 = vmatmul.bf16.gmra.mxu0 %v42
  %v133 = vpop.f32.mrf.mxu0
  %v134 = vadd.f32 %v34, %v133
  %v135 = vpop.f32.mrf.mxu0
  %v136 = vadd.f32 %v34, %v135
  %137 = vdwg.mxu0
  %138 = vmatpush.bf16.msra.mxu0 %v107
  %139 = vmatpush.bf16.msra.mxu0 %v105
  %140 = vmatpush.bf16.msra.mxu0 %v103
  %141 = vmatpush.bf16.msra.mxu0 %v101
  %142 = vmatpush.bf16.msra.mxu0 %v99
  %143 = vmatpush.bf16.msra.mxu0 %v97
  %144 = vmatpush.bf16.msra.mxu0 %v95
  %145 = vmatpush.bf16.msra.mxu0 %v93
  %146 = vmatmul.bf16.gmra.mxu0 %v42
  %v147 = vpop.f32.mrf.mxu0
  %v148 = vadd.f32 %v35, %v147
  %v149 = vpop.f32.mrf.mxu0
  %v150 = vadd.f32 %v35, %v149
  %151 = vdwg.mxu0
  %v152 = vpack.c.bf16 %v148, %v134
  %v153 = vpack.c.bf16 %v150, %v136
  %154 = vst [vmem:[%s3] sm:$0xff] %v152
  %155 = vst [vmem:[%s3 + $0x8] sm:$0xff] %v153
  // Predicated region
  $region14: #{transformer_forward.37} parent=0 // pred_check
    _
  $region15: #{transformer_forward.37} parent=0 // pred_check_branch
    %157 = sbr.rel (0) target = $region17
  $region16: #{transformer_forward.37} parent=0 // pred_region
    _
  $region17: #{transformer_forward.37} parent=0 // pred_fallthru
    _
  // Predicated region
  $region18: #{transformer_forward.37} parent=0 // pred_check
    _
  $region19: #{transformer_forward.37} parent=0 // pred_check_branch
    %159 = sbr.rel (0) target = $region21
  $region20: #{transformer_forward.37} parent=0 // pred_region
    _
  $region21: #{transformer_forward.37} parent=0 // pred_fallthru
    _

// kernel: transformer_forward.27
$region0: #{transformer_forward.27}
  #allocation0 [shape = 'u32[]', space=smem, size = 0x4, offset = 0x4, fixed_abs, tag = 'smem constant byte address 0x4 - core index']
  #allocation1 [shape = 'u32[72,128]{1,0:T(1,128)}', space=vmem, size = 0x9000, scoped, tag = 'internal scratch']
  %s0 = inlined_call_operand.vmem [shape: bf16[16,128], index: 0, kind: input, shape index: {}]
  %s1 = inlined_call_operand.hbm [shape: bf16[128,128], index: 1, kind: input, shape index: {}]
  %s2 = inlined_call_operand.vmem [shape: f32[1,128], index: 2, kind: input, shape index: {}]
  %s3 = inlined_call_operand.vmem [shape: bf16[16,128], index: 3, kind: input, shape index: {}]
  %s4 = inlined_call_operand.vmem [shape: f32[1,128], index: 4, kind: input, shape index: {}]
  %s5 = inlined_call_operand.vmem [shape: f32[1,128], index: 5, kind: input, shape index: {}]
  %s6 = inlined_call_operand.vmem [shape: bf16[16,128], index: 6, kind: output, shape index: {}]
  %s7 = sld [smem:[#allocation0]]
  $region38: #{transformer_forward.27} parent=0
    _
  %s9 = ssub.s32 1, %s7
  %s10 = scalar_select 0, %s9, %s7
  $region1: #{transformer_forward.27} parent=0
    #allocation2 [shape = 'u8[32768]{0}', space=vmem, size = 0x8000, scoped, tag = 'input window, operand 1, single buffered']
    #allocation3 [shape = 's32[1]{0}', space=sflag, size = 0x4, scoped, tag = 'scoped memory for transformer_forward.27']
    %11 = vsyncpa [#allocation3], 0
    // Predicated region
    $region2: #{transformer_forward.27} parent=1 // pred_check
      _
    $region3: #{transformer_forward.27} parent=1 // pred_check_branch
      %13 = sbr.rel (0) target = $region5
    $region4: #{transformer_forward.27} parent=1 // pred_region
      _
    $region5: #{transformer_forward.27} parent=1 // pred_fallthru
      _
    // Predicated region
    $region6: #{transformer_forward.27} parent=1 // pred_check
      _
    $region7: #{transformer_forward.27} parent=1 // pred_check_branch
      %15 = sbr.rel (0) target = $region9
    $region8: #{transformer_forward.27} parent=1 // pred_region
      %17 = vsyncadd [#allocation3], 0
      %s18 = sshll.u32 %s1, 4
      %s19 = int_to_ptr.hbm [resolvable:$true] %s18
      %s20 = sshll.u32 [#allocation2], 4
      %s21 = int_to_ptr.vmem [resolvable:$true] %s20
      %26 = dma.hbm_to_vmem [thread:$0]  %s19, 1024, %s21, [#allocation3], 64, 64, 4
    $region9: #{transformer_forward.27} parent=1 // pred_fallthru
      _
    // Predicated region
    $region10: #{transformer_forward.27} parent=1 // pred_check
      _
    $region11: #{transformer_forward.27} parent=1 // pred_check_branch
      %28 = sbr.rel (0) target = $region13
    $region12: #{transformer_forward.27} parent=1 // pred_region
      _
    $region13: #{transformer_forward.27} parent=1 // pred_fallthru
      _
    // Predicated region
    $region14: #{transformer_forward.27} parent=1 // pred_check
      _
    $region15: #{transformer_forward.27} parent=1 // pred_check_branch
      %30 = sbr.rel (0) target = $region17
    $region16: #{transformer_forward.27} parent=1 // pred_region
      _
    $region17: #{transformer_forward.27} parent=1 // pred_fallthru
      _
    // Predicated region
    $region18: #{transformer_forward.27} parent=1 // pred_check
      _
    $region19: #{transformer_forward.27} parent=1 // pred_check_branch
      %32 = sbr.rel (0) target = $region21
    $region20: #{transformer_forward.27} parent=1 // pred_region
      _
    $region21: #{transformer_forward.27} parent=1 // pred_fallthru
      _
    // Predicated region
    $region22: #{transformer_forward.27} parent=1 // pred_check
      _
    $region23: #{transformer_forward.27} parent=1 // pred_check_branch
      %34 = sbr.rel (0) target = $region25
    $region24: #{transformer_forward.27} parent=1 // pred_region
      _
    $region25: #{transformer_forward.27} parent=1 // pred_fallthru
      _
    // Predicated region
    $region26: #{transformer_forward.27} parent=1 // pred_check
      _
    $region27: #{transformer_forward.27} parent=1 // pred_check_branch
      %36 = sbr.rel (0) target = $region29
    $region28: #{transformer_forward.27} parent=1 // pred_region
      %38 = dma.done [#allocation3], 1024
    $region29: #{transformer_forward.27} parent=1 // pred_fallthru
      _
    %v39 = vld [vmem:[%s0] sm:$0xf]
    %v40 = vld [vmem:[%s0 + $0x4] sm:$0xf]
    %v41 = vld [vmem:[#allocation2] sm:$0xf]
    %v42 = vld [vmem:[#allocation2 + $0x4] sm:$0xf]
    %v43 = vld [vmem:[#allocation2 + $0x8] sm:$0xf]
    %v44 = vld [vmem:[#allocation2 + $0xc] sm:$0xf]
    %v45 = vld [vmem:[#allocation2 + $0x10] sm:$0xf]
    %v46 = vld [vmem:[#allocation2 + $0x14] sm:$0xf]
    %v47 = vld [vmem:[#allocation2 + $0x18] sm:$0xf]
    %v48 = vld [vmem:[#allocation2 + $0x1c] sm:$0xf]
    %v49 = vld [vmem:[#allocation2 + $0x20] sm:$0xf]
    %v50 = vld [vmem:[#allocation2 + $0x24] sm:$0xf]
    %v51 = vld [vmem:[#allocation2 + $0x28] sm:$0xf]
    %v52 = vld [vmem:[#allocation2 + $0x2c] sm:$0xf]
    %v53 = vld [vmem:[#allocation2 + $0x30] sm:$0xf]
    %v54 = vld [vmem:[#allocation2 + $0x34] sm:$0xf]
    %v55 = vld [vmem:[#allocation2 + $0x38] sm:$0xf]
    %v56 = vld [vmem:[#allocation2 + $0x3c] sm:$0xf]
    %v57 = vld [vmem:[%s2] sm:$0x1]
    %v59 = vperm.slane %v57, 0
    %v63 = vunpack.c.l.b16 %v39
    %v64 = vunpack.c.l.b16 %v40
    %v65 = vpack.c.b16 %v64, %v63
    %v83 = vunpack.c.l.b16 %v41
    %v84 = vunpack.c.l.b16 %v42
    %v85 = vunpack.c.l.b16 %v43
    %v86 = vunpack.c.l.b16 %v44
    %v87 = vunpack.c.l.b16 %v45
    %v88 = vunpack.c.l.b16 %v46
    %v89 = vunpack.c.l.b16 %v47
    %v90 = vunpack.c.l.b16 %v48
    %v91 = vunpack.c.l.b16 %v49
    %v92 = vunpack.c.l.b16 %v50
    %v93 = vunpack.c.l.b16 %v51
    %v94 = vunpack.c.l.b16 %v52
    %v95 = vunpack.c.l.b16 %v53
    %v96 = vunpack.c.l.b16 %v54
    %v97 = vunpack.c.l.b16 %v55
    %v98 = vunpack.c.l.b16 %v56
    %v99 = vpack.c.b16 %v84, %v83
    %v100 = vpack.c.b16 %v86, %v85
    %v101 = vpack.c.b16 %v88, %v87
    %v102 = vpack.c.b16 %v90, %v89
    %v103 = vpack.c.b16 %v92, %v91
    %v104 = vpack.c.b16 %v94, %v93
    %v105 = vpack.c.b16 %v96, %v95
    %v106 = vpack.c.b16 %v98, %v97
    %115 = vmatpush.bf16.msra.mxu0 %v106
    %116 = vmatpush.bf16.msra.mxu0 %v105
    %117 = vmatpush.bf16.msra.mxu0 %v104
    %118 = vmatpush.bf16.msra.mxu0 %v103
    %119 = vmatpush.bf16.msra.mxu0 %v102
    %120 = vmatpush.bf16.msra.mxu0 %v101
    %121 = vmatpush.bf16.msra.mxu0 %v100
    %122 = vmatpush.bf16.msra.mxu0 %v99
    %123 = vmatmul.bf16.gmra.mxu0 %v65
    %v124 = vpop.f32.mrf.mxu0
    %v125 = vadd.f32 %v59, %v124
    %v126 = vpop.f32.mrf.mxu0
    %v127 = vadd.f32 %v59, %v126
    %128 = vdwg.mxu0
    %v129 = vld [vmem:[%s3] sm:$0xf]
    %v130 = vld [vmem:[%s3 + $0x4] sm:$0xf]
    %v131 = vunpack.c.l.bf16 %v129
    %v132 = vunpack.c.l.bf16 %v130
    %v133 = vadd.f32 %v125, %v131
    %v134 = vadd.f32 %v127, %v132
    %v135 = vld [vmem:[%s4] sm:$0x1]
    %v136 = vld [vmem:[%s5] sm:$0x1]
    %137 = vadd.xlane.f32.xlu0 %v133
    %v138 = vpop.xlane.xlu0 %137
    %139 = vadd.xlane.f32.xlu0 %v134
    %v140 = vpop.xlane.xlu0 %139
    %v141 = vrcp.pop 128.0
    %v142 = vmul.f32 128.0, %v141
    %v143 = vsub.f32 1.0, %v142
    %v144 = vmul.f32 %v141, %v143
    %v145 = vadd.f32 %v141, %v144
    %vm146 = vweird.f32 %v141
    %v147 = vsel %vm146, %v141, %v145
    %v148 = vmul.f32 %v138, %v147
    %v149 = vmul.f32 %v140, %v147
    %v150 = vsub.f32 %v133, %v148
    %v151 = vsub.f32 %v134, %v149
    %v152 = vmul.f32 %v150, %v150
    %v153 = vmul.f32 %v151, %v151
    %154 = vadd.xlane.f32.xlu0 %v152
    %v155 = vpop.xlane.xlu0 %154
    %156 = vadd.xlane.f32.xlu0 %v153
    %v157 = vpop.xlane.xlu0 %156
    %v158 = vmul.f32 %v155, %v147
    %v159 = vmul.f32 %v157, %v147
    %v160 = vadd.f32 %v158, 1e-05
    %v161 = vadd.f32 %v159, 1e-05
    %v162 = vrsqrt.pop %v160
    %v163 = vmul.f32 %v162, %v160
    %v164 = vmul.f32 %v163, %v162
    %v165 = vmul.f32 0.5, %v164
    %v166 = vsub.f32 1.5, %v165
    %v167 = vmul.f32 %v162, %v166
    %vm168 = vweird.f32 %v160
    %vm169 = vweird.f32 %v162
    %vm170 = vmor %vm168, %vm169
    %v171 = vsel %vm170, %v162, %v167
    %v172 = vrsqrt.pop %v161
    %v173 = vmul.f32 %v172, %v161
    %v174 = vmul.f32 %v173, %v172
    %v175 = vmul.f32 0.5, %v174
    %v176 = vsub.f32 1.5, %v175
    %v177 = vmul.f32 %v172, %v176
    %vm178 = vweird.f32 %v161
    %vm179 = vweird.f32 %v172
    %vm180 = vmor %vm178, %vm179
    %v181 = vsel %vm180, %v172, %v177
    %v182 = vmul.f32 %v150, %v171
    %v183 = vmul.f32 %v151, %v181
    %v185 = vperm.slane %v135, 0
    %v187 = vmul.f32 %v182, %v185
    %v188 = vmul.f32 %v183, %v185
    %v190 = vperm.slane %v136, 0
    %v192 = vadd.f32 %v187, %v190
    %v193 = vadd.f32 %v188, %v190
    %v194 = vpack.c.bf16 %v192, %v192
    %v195 = vpack.c.bf16 %v193, %v193
    %196 = vst [vmem:[%s6] sm:$0xf] %v194
    %197 = vst [vmem:[%s6 + $0x4] sm:$0xf] %v195
    // Predicated region
    $region30: #{transformer_forward.27} parent=1 // pred_check
      _
    $region31: #{transformer_forward.27} parent=1 // pred_check_branch
      %199 = sbr.rel (0) target = $region33
    $region32: #{transformer_forward.27} parent=1 // pred_region
      _
    $region33: #{transformer_forward.27} parent=1 // pred_fallthru
      _
    // Predicated region
    $region34: #{transformer_forward.27} parent=1 // pred_check
      _
    $region35: #{transformer_forward.27} parent=1 // pred_check_branch
      %201 = sbr.rel (0) target = $region37
    $region36: #{transformer_forward.27} parent=1 // pred_region
      _
    $region37: #{transformer_forward.27} parent=1 // pred_fallthru
      _
    %202 = vsyncpa [#allocation3], 1

// kernel: transformer_forward.26
$region0: #{transformer_forward.26}
  #allocation0 [shape = 'u32[]', space=smem, size = 0x4, offset = 0x4, fixed_abs, tag = 'smem constant byte address 0x4 - core index']
  #allocation1 [shape = 'u32[72,128]{1,0:T(1,128)}', space=vmem, size = 0x9000, scoped, tag = 'internal scratch']
  %s0 = inlined_call_operand.vmem [shape: bf16[2,4,8,32], index: 0, kind: input, shape index: {}]
  %s1 = inlined_call_operand.vmem [shape: bf16[2,4,8,32], index: 1, kind: input, shape index: {}]
  %s2 = inlined_call_operand.vmem [shape: bf16[2,4,8,32], index: 2, kind: input, shape index: {}]
  %s3 = inlined_call_operand.vmem [shape: s32[2,1,8], index: 3, kind: input, shape index: {}]
  %s4 = inlined_call_operand.vmem [shape: bf16[2,4,8,32], index: 4, kind: output, shape index: {}]
  %s5 = sld [smem:[#allocation0]]
  $region49: #{transformer_forward.26} parent=0
    _
  %s7 = ssub.s32 1, %s5
  %s8 = scalar_select 0, %s7, %s5
  loop: start=0, step=1, limit=4
  $region2: #{transformer_forward.26} parent=0 // loop_pre_header
    _
  $region3: #{transformer_forward.26} parent=0 // loop_header
    %s10 = sphi 0, %s14
    %p11 = scmp.ge.s32.totalorder %s10, 4
    %s20 = sphi 0, %s22
    %s23 = sphi 0, %s20
    %s24 = sphi 0, %s23
    %s40 = sphi 0, %s24
    %s46 = sphi 0, %s48
    %s49 = sphi 0, %s46
    %s50 = sphi 0, %s49
    %s66 = sphi 0, %s50
    %s72 = sphi 0, %s74
    %s75 = sphi 0, %s72
    %s76 = sphi 0, %s75
    %s92 = sphi 0, %s76
    %s98 = sphi 0, %s100
    %s101 = sphi 0, %s98
    %s102 = sphi 0, %s101
    %s118 = sphi 0, %s102
    %s124 = sphi 0, %s126
    %s127 = sphi 0, %s124
    %s128 = sphi 0, %s127
    %s144 = sphi 0, %s128
  $region4: #{transformer_forward.26} parent=0 // loop_header_branch
    %13 = sbr.rel (%p11) target = $region8
  $region5: #{transformer_forward.26} parent=0 // loop_body
    %s15 = ssub.s32 %s10, 1
    %s16 = ssub.s32 %s10, 2
    %s17 = sadd.s32 %s10, 1
    %s18 = ssub.s32 %s10, %s17
    %p19 = scmp.eq.s32.totalorder %s18, 0
    %s21 = sadd.s32 %s20, 1
    %s22 = scalar_select %p19, %s20, %s21
    %p25 = pneg %p19
    %p26 = scmp.eq.s32.totalorder %s10, 1
    %p27 = por %p25, %p26
    %p28 = scmp.ne.s32.totalorder %s20, %s23
    %p29 = scmp.eq.s32.totalorder %s10, 0
    %p30 = por %p28, %p29
    %p31 = scmp.ne.s32.totalorder %s20, %s23
    %p32 = scmp.eq.s32.totalorder %s15, 1
    %p33 = por %p31, %p32
    %p34 = scmp.ne.s32.totalorder %s23, %s24
    %p35 = scmp.eq.s32.totalorder %s15, 0
    %p36 = por %p34, %p35
    %p37 = scmp.ne.s32.totalorder %s23, %s24
    %p38 = scmp.eq.s32.totalorder %s16, 1
    %p39 = por %p37, %p38
    %p41 = scmp.ne.s32.totalorder %s24, %s40
    %p42 = scmp.eq.s32.totalorder %s16, 0
    %p43 = por %p41, %p42
    %s44 = ssub.s32 %s10, %s17
    %p45 = scmp.eq.s32.totalorder %s44, 0
    %s47 = sadd.s32 %s46, 1
    %s48 = scalar_select %p45, %s46, %s47
    %p51 = pneg %p45
    %p52 = scmp.eq.s32.totalorder %s10, 1
    %p53 = por %p51, %p52
    %p54 = scmp.ne.s32.totalorder %s46, %s49
    %p55 = scmp.eq.s32.totalorder %s10, 0
    %p56 = por %p54, %p55
    %p57 = scmp.ne.s32.totalorder %s46, %s49
    %p58 = scmp.eq.s32.totalorder %s15, 1
    %p59 = por %p57, %p58
    %p60 = scmp.ne.s32.totalorder %s49, %s50
    %p61 = scmp.eq.s32.totalorder %s15, 0
    %p62 = por %p60, %p61
    %p63 = scmp.ne.s32.totalorder %s49, %s50
    %p64 = scmp.eq.s32.totalorder %s16, 1
    %p65 = por %p63, %p64
    %p67 = scmp.ne.s32.totalorder %s50, %s66
    %p68 = scmp.eq.s32.totalorder %s16, 0
    %p69 = por %p67, %p68
    %s70 = ssub.s32 %s10, %s17
    %p71 = scmp.eq.s32.totalorder %s70, 0
    %s73 = sadd.s32 %s72, 1
    %s74 = scalar_select %p71, %s72, %s73
    %p77 = pneg %p71
    %p78 = scmp.eq.s32.totalorder %s10, 1
    %p79 = por %p77, %p78
    %p80 = scmp.ne.s32.totalorder %s72, %s75
    %p81 = scmp.eq.s32.totalorder %s10, 0
    %p82 = por %p80, %p81
    %p83 = scmp.ne.s32.totalorder %s72, %s75
    %p84 = scmp.eq.s32.totalorder %s15, 1
    %p85 = por %p83, %p84
    %p86 = scmp.ne.s32.totalorder %s75, %s76
    %p87 = scmp.eq.s32.totalorder %s15, 0
    %p88 = por %p86, %p87
    %p89 = scmp.ne.s32.totalorder %s75, %s76
    %p90 = scmp.eq.s32.totalorder %s16, 1
    %p91 = por %p89, %p90
    %p93 = scmp.ne.s32.totalorder %s76, %s92
    %p94 = scmp.eq.s32.totalorder %s16, 0
    %p95 = por %p93, %p94
    %s96 = ssub.s32 %s10, %s17
    %p97 = scmp.eq.s32.totalorder %s96, 0
    %s99 = sadd.s32 %s98, 1
    %s100 = scalar_select %p97, %s98, %s99
    %p103 = pneg %p97
    %p104 = scmp.eq.s32.totalorder %s10, 1
    %p105 = por %p103, %p104
    %p106 = scmp.ne.s32.totalorder %s98, %s101
    %p107 = scmp.eq.s32.totalorder %s10, 0
    %p108 = por %p106, %p107
    %p109 = scmp.ne.s32.totalorder %s98, %s101
    %p110 = scmp.eq.s32.totalorder %s15, 1
    %p111 = por %p109, %p110
    %p112 = scmp.ne.s32.totalorder %s101, %s102
    %p113 = scmp.eq.s32.totalorder %s15, 0
    %p114 = por %p112, %p113
    %p115 = scmp.ne.s32.totalorder %s101, %s102
    %p116 = scmp.eq.s32.totalorder %s16, 1
    %p117 = por %p115, %p116
    %p119 = scmp.ne.s32.totalorder %s102, %s118
    %p120 = scmp.eq.s32.totalorder %s16, 0
    %p121 = por %p119, %p120
    %s122 = ssub.s32 %s10, %s17
    %p123 = scmp.eq.s32.totalorder %s122, 0
    %s125 = sadd.s32 %s124, 1
    %s126 = scalar_select %p123, %s124, %s125
    %p129 = pneg %p123
    %p130 = scmp.eq.s32.totalorder %s10, 1
    %p131 = por %p129, %p130
    %p132 = scmp.ne.s32.totalorder %s124, %s127
    %p133 = scmp.eq.s32.totalorder %s10, 0
    %p134 = por %p132, %p133
    %p135 = scmp.ne.s32.totalorder %s124, %s127
    %p136 = scmp.eq.s32.totalorder %s15, 1
    %p137 = por %p135, %p136
    %p138 = scmp.ne.s32.totalorder %s127, %s128
    %p139 = scmp.eq.s32.totalorder %s15, 0
    %p140 = por %p138, %p139
    %p141 = scmp.ne.s32.totalorder %s127, %s128
    %p142 = scmp.eq.s32.totalorder %s16, 1
    %p143 = por %p141, %p142
    %p145 = scmp.ne.s32.totalorder %s128, %s144
    %p146 = scmp.eq.s32.totalorder %s16, 0
    %p147 = por %p145, %p146
    %p148 = scmp.le.s32.totalorder 1, %s10
    %p149 = scmp.lt.s32.totalorder %s10, 3
    %p150 = pnand %p148, %p149
    %p151 = pneg %p150
    // Predicated region
    $region9: #{transformer_forward.26} parent=5 // pred_check
      _
    $region10: #{transformer_forward.26} parent=5 // pred_check_branch
      %153 = sbr.rel (%p150) target = $region12
    $region11: #{transformer_forward.26} parent=5 // pred_region
      %s154 = ssub.s32 %s10, 1
    $region12: #{transformer_forward.26} parent=5 // pred_fallthru
      _
    %p155 = scmp.lt.s32.totalorder %s10, 2
    // Predicated region
    $region13: #{transformer_forward.26} parent=5 // pred_check
      %p156 = pneg %p155
    $region14: #{transformer_forward.26} parent=5 // pred_check_branch
      %158 = sbr.rel (%p156) target = $region16
    $region15: #{transformer_forward.26} parent=5 // pred_region
      // Predicated region
      $region17: #{transformer_forward.26} parent=15 // pred_check
        %p159 = pneg %p30
      $region18: #{transformer_forward.26} parent=15 // pred_check_branch
        %161 = sbr.rel (%p159) target = $region20
      $region19: #{transformer_forward.26} parent=15 // pred_region
        %p162 = scmp.lt.s32.totalorder %s10, 1
        %s163 = scalar_select %p162, %s10, 1
        %s164 = smul.addr %s163, 4
        %s165 = smul.addr %s164, 4
        %s166 = scalar_lea.vmem %s0, %s165
      $region20: #{transformer_forward.26} parent=15 // pred_fallthru
        _
      // Predicated region
      $region21: #{transformer_forward.26} parent=15 // pred_check
        %p167 = pneg %p56
      $region22: #{transformer_forward.26} parent=15 // pred_check_branch
        %169 = sbr.rel (%p167) target = $region24
      $region23: #{transformer_forward.26} parent=15 // pred_region
        %p170 = scmp.lt.s32.totalorder %s10, 1
        %s171 = scalar_select %p170, %s10, 1
        %s172 = smul.addr %s171, 4
        %s173 = smul.addr %s172, 4
        %s174 = scalar_lea.vmem %s1, %s173
      $region24: #{transformer_forward.26} parent=15 // pred_fallthru
        _
      // Predicated region
      $region25: #{transformer_forward.26} parent=15 // pred_check
        %p175 = pneg %p82
      $region26: #{transformer_forward.26} parent=15 // pred_check_branch
        %177 = sbr.rel (%p175) target = $region28
      $region27: #{transformer_forward.26} parent=15 // pred_region
        %p178 = scmp.lt.s32.totalorder %s10, 1
        %s179 = scalar_select %p178, %s10, 1
        %s180 = smul.addr %s179, 4
        %s181 = smul.addr %s180, 4
        %s182 = scalar_lea.vmem %s2, %s181
      $region28: #{transformer_forward.26} parent=15 // pred_fallthru
        _
      // Predicated region
      $region29: #{transformer_forward.26} parent=15 // pred_check
        %p183 = pneg %p108
      $region30: #{transformer_forward.26} parent=15 // pred_check_branch
        %185 = sbr.rel (%p183) target = $region32
      $region31: #{transformer_forward.26} parent=15 // pred_region
        %p186 = scmp.lt.s32.totalorder %s10, 1
        %s187 = scalar_select %p186, %s10, 1
        %s188 = scalar_lea.vmem %s3, %s187
      $region32: #{transformer_forward.26} parent=15 // pred_fallthru
        _
    $region16: #{transformer_forward.26} parent=5 // pred_fallthru
      _
    %p189 = scmp.le.s32.totalorder 1, %s10
    %p190 = scmp.lt.s32.totalorder %s10, 3
    %p191 = pnand %p189, %p190
    %p192 = pneg %p191
    // Predicated region
    $region33: #{transformer_forward.26} parent=5 // pred_check
      _
    $region34: #{transformer_forward.26} parent=5 // pred_check_branch
      %194 = sbr.rel (%p191) target = $region36
    $region35: #{transformer_forward.26} parent=5 // pred_region
      %s195 = ssub.s32 %s10, 1
      %p196 = scmp.lt.s32.totalorder %s15, 1
      %s197 = scalar_select %p196, %s15, 1
      %s198 = smul.addr %s197, 4
      %s199 = smul.addr %s198, 4
      %s200 = scalar_lea.vmem %s0, %s199
      %p201 = pneg %p36
      %p202 = pneg %p33
      %p203 = scmp.lt.s32.totalorder %s15, 1
      %s204 = scalar_select %p203, %s15, 1
      %s205 = smul.addr %s204, 4
      %s206 = smul.addr %s205, 4
      %s207 = scalar_lea.vmem %s1, %s206
      %p208 = pneg %p62
      %p209 = pneg %p59
      %p210 = scmp.lt.s32.totalorder %s15, 1
      %s211 = scalar_select %p210, %s15, 1
      %s212 = smul.addr %s211, 4
      %s213 = smul.addr %s212, 4
      %s214 = scalar_lea.vmem %s2, %s213
      %p215 = pneg %p88
      %p216 = pneg %p85
      %p217 = scmp.lt.s32.totalorder %s15, 1
      %s218 = scalar_select %p217, %s15, 1
      %s219 = scalar_lea.vmem %s3, %s218
      %p220 = pneg %p114
      %p221 = pneg %p111
      %p222 = pneg %p140
      %p223 = pneg %p137
      %p224 = scmp.lt.s32.totalorder %s15, 1
      %s225 = scalar_select %p224, %s15, 1
      %s226 = smul.addr %s225, 4
      %s227 = smul.addr %s226, 4
      %s228 = scalar_lea.vmem %s4, %s227
      %p229 = scmp.lt.s32.totalorder %s15, 1
      %s230 = scalar_select %p229, %s15, 1
      %s231 = smul.addr %s230, 4
      %s232 = smul.addr %s231, 4
      %s233 = scalar_lea.vmem %s0, %s232
      %p234 = scmp.lt.s32.totalorder %s15, 1
      %s235 = scalar_select %p234, %s15, 1
      %s236 = smul.addr %s235, 4
      %s237 = smul.addr %s236, 4
      %s238 = scalar_lea.vmem %s1, %s237
      %p239 = scmp.lt.s32.totalorder %s15, 1
      %s240 = scalar_select %p239, %s15, 1
      %s241 = smul.addr %s240, 4
      %s242 = smul.addr %s241, 4
      %s243 = scalar_lea.vmem %s2, %s242
      %p244 = scmp.lt.s32.totalorder %s15, 1
      %s245 = scalar_select %p244, %s15, 1
      %s246 = scalar_lea.vmem %s3, %s245
      %p247 = scmp.lt.s32.totalorder %s15, 1
      %s248 = scalar_select %p247, %s15, 1
      %s249 = smul.addr %s248, 4
      %s250 = smul.addr %s249, 4
      %s251 = scalar_lea.vmem %s4, %s250
      %v253 = vld [vmem:[%s246] sm:$0x1]
      %vm254 = vcmp.eq.s32.totalorder %v253, 0
      %v255 = vsel %vm254, -1e+09, 0.0
      %v256 = vld [vmem:[%s233] sm:$0xf]
      %v257 = vld [vmem:[%s233 + $0x4] sm:$0xf]
      %v258 = vld [vmem:[%s233 + $0x8] sm:$0xf]
      %v259 = vld [vmem:[%s233 + $0xc] sm:$0xf]
      %v260 = vld [vmem:[%s238] sm:$0xf]
      %v261 = vld [vmem:[%s238 + $0x4] sm:$0xf]
      %v262 = vld [vmem:[%s238 + $0x8] sm:$0xf]
      %v263 = vld [vmem:[%s238 + $0xc] sm:$0xf]
      %v264 = vld [vmem:[%s243] sm:$0xf]
      %v265 = vld [vmem:[%s243 + $0x4] sm:$0xf]
      %v266 = vld [vmem:[%s243 + $0x8] sm:$0xf]
      %v267 = vld [vmem:[%s243 + $0xc] sm:$0xf]
      %vm268 = vcmask 261120
      %v270 = vsel %vm268, %v256, 0
      %v273 = vsel %vm268, %v260, 0
      %275 = vmatpush.bf16.xpose.msra.mxu0 0
      %276 = vmatpush.bf16.xpose.msra.mxu0 0
      %277 = vmatpush.bf16.xpose.msra.mxu0 0
      %278 = vmatpush.bf16.xpose.msra.mxu0 0
      %279 = vmatpush.bf16.xpose.msra.mxu0 0
      %280 = vmatpush.bf16.xpose.msra.mxu0 0
      %281 = vmatpush.bf16.xpose.msra.mxu0 0
      %282 = vmatpush.bf16.xpose.msra.mxu0 %v273
      %283 = vmatmul.bf16.gmra.mxu0 %v270
      %v284 = vpop.f32.mrf.mxu0
      %v285 = vadd.f32 0.0, %v284
      %v286 = vpop.f32.mrf.mxu0
      %287 = vdwg.mxu0
      %v289 = vsel %vm268, %v257, 0
      %v292 = vsel %vm268, %v261, 0
      %294 = vmatpush.bf16.xpose.msra.mxu0 0
      %295 = vmatpush.bf16.xpose.msra.mxu0 0
      %296 = vmatpush.bf16.xpose.msra.mxu0 0
      %297 = vmatpush.bf16.xpose.msra.mxu0 0
      %298 = vmatpush.bf16.xpose.msra.mxu0 0
      %299 = vmatpush.bf16.xpose.msra.mxu0 0
      %300 = vmatpush.bf16.xpose.msra.mxu0 0
      %301 = vmatpush.bf16.xpose.msra.mxu0 %v292
      %302 = vmatmul.bf16.gmra.mxu0 %v289
      %v303 = vpop.f32.mrf.mxu0
      %v304 = vadd.f32 0.0, %v303
      %v305 = vpop.f32.mrf.mxu0
      %306 = vdwg.mxu0
      %v308 = vsel %vm268, %v258, 0
      %v311 = vsel %vm268, %v262, 0
      %313 = vmatpush.bf16.xpose.msra.mxu0 0
      %314 = vmatpush.bf16.xpose.msra.mxu0 0
      %315 = vmatpush.bf16.xpose.msra.mxu0 0
      %316 = vmatpush.bf16.xpose.msra.mxu0 0
      %317 = vmatpush.bf16.xpose.msra.mxu0 0
      %318 = vmatpush.bf16.xpose.msra.mxu0 0
      %319 = vmatpush.bf16.xpose.msra.mxu0 0
      %320 = vmatpush.bf16.xpose.msra.mxu0 %v311
      %321 = vmatmul.bf16.gmra.mxu0 %v308
      %v322 = vpop.f32.mrf.mxu0
      %v323 = vadd.f32 0.0, %v322
      %v324 = vpop.f32.mrf.mxu0
      %325 = vdwg.mxu0
      %v327 = vsel %vm268, %v259, 0
      %v330 = vsel %vm268, %v263, 0
      %332 = vmatpush.bf16.xpose.msra.mxu0 0
      %333 = vmatpush.bf16.xpose.msra.mxu0 0
      %334 = vmatpush.bf16.xpose.msra.mxu0 0
      %335 = vmatpush.bf16.xpose.msra.mxu0 0
      %336 = vmatpush.bf16.xpose.msra.mxu0 0
      %337 = vmatpush.bf16.xpose.msra.mxu0 0
      %338 = vmatpush.bf16.xpose.msra.mxu0 0
      %339 = vmatpush.bf16.xpose.msra.mxu0 %v330
      %340 = vmatmul.bf16.gmra.mxu0 %v327
      %v341 = vpop.f32.mrf.mxu0
      %v342 = vadd.f32 0.0, %v341
      %v343 = vpop.f32.mrf.mxu0
      %344 = vdwg.mxu0
      %v345 = vmul.f32 %v285, 0.17677669
      %v346 = vmul.f32 %v304, 0.17677669
      %v347 = vmul.f32 %v323, 0.17677669
      %v348 = vmul.f32 %v342, 0.17677669
      %v350 = vperm.slane %v255, 0
      %v352 = vadd.f32 %v345, %v350
      %v353 = vadd.f32 %v346, %v350
      %v354 = vadd.f32 %v347, %v350
      %v355 = vadd.f32 %v348, %v350
      %vm356 = vcmask 64512
      %v357 = vsel %vm356, %v352, -inf
      %358 = vmax.xlane.f32.xlu0 %v357
      %v359 = vpop.xlane.xlu0 %358
      %v360 = vsel %vm356, %v353, -inf
      %361 = vmax.xlane.f32.xlu0 %v360
      %v362 = vpop.xlane.xlu0 %361
      %v363 = vsel %vm356, %v354, -inf
      %364 = vmax.xlane.f32.xlu0 %v363
      %v365 = vpop.xlane.xlu0 %364
      %v366 = vsel %vm356, %v355, -inf
      %367 = vmax.xlane.f32.xlu0 %v366
      %v368 = vpop.xlane.xlu0 %367
      %v369 = vsub.f32 %v352, %v359
      %v370 = vsub.f32 %v353, %v362
      %v371 = vsub.f32 %v354, %v365
      %v372 = vsub.f32 %v355, %v368
      %v373 = vmul.f32 %v369, 1.442695
      %v374 = vpow.pop %v373
      %v375 = vmul.f32 %v370, 1.442695
      %v376 = vpow.pop %v375
      %v377 = vmul.f32 %v371, 1.442695
      %v378 = vpow.pop %v377
      %v379 = vmul.f32 %v372, 1.442695
      %v380 = vpow.pop %v379
      %v381 = vsel %vm356, %v374, 0.0
      %382 = vadd.xlane.f32.xlu0 %v381
      %v383 = vpop.xlane.xlu0 %382
      %v384 = vsel %vm356, %v376, 0.0
      %385 = vadd.xlane.f32.xlu0 %v384
      %v386 = vpop.xlane.xlu0 %385
      %v387 = vsel %vm356, %v378, 0.0
      %388 = vadd.xlane.f32.xlu0 %v387
      %v389 = vpop.xlane.xlu0 %388
      %v390 = vsel %vm356, %v380, 0.0
      %391 = vadd.xlane.f32.xlu0 %v390
      %v392 = vpop.xlane.xlu0 %391
      %v393 = vrcp.pop %v383
      %v394 = vrcp.pop %v386
      %v395 = vrcp.pop %v389
      %v396 = vrcp.pop %v392
      %v397 = vmul.f32 %v374, %v393
      %v398 = vmul.f32 %v376, %v394
      %v399 = vmul.f32 %v378, %v395
      %v400 = vmul.f32 %v380, %v396
      %v401 = vpack.c.bf16 %v397, %v397
      %v402 = vpack.c.bf16 %v398, %v398
      %v403 = vpack.c.bf16 %v399, %v399
      %v404 = vpack.c.bf16 %v400, %v400
      %v406 = vsel %vm356, %v401, 0
      %vm408 = vcmask 1043456
      %v410 = vsel %vm408, %v264, 0
      %412 = vmatpush.bf16.msra.mxu0 0
      %413 = vmatpush.bf16.msra.mxu0 0
      %414 = vmatpush.bf16.msra.mxu0 0
      %415 = vmatpush.bf16.msra.mxu0 0
      %416 = vmatpush.bf16.msra.mxu0 0
      %417 = vmatpush.bf16.msra.mxu0 0
      %418 = vmatpush.bf16.msra.mxu0 0
      %419 = vmatpush.bf16.msra.mxu0 %v410
      %420 = vmatmul.bf16.gmra.mxu0 %v406
      %v421 = vpop.f32.mrf.mxu0
      %v422 = vadd.f32 0.0, %v421
      %v423 = vpop.f32.mrf.mxu0
      %424 = vdwg.mxu0
      %v426 = vsel %vm356, %v402, 0
      %v429 = vsel %vm408, %v265, 0
      %431 = vmatpush.bf16.msra.mxu0 0
      %432 = vmatpush.bf16.msra.mxu0 0
      %433 = vmatpush.bf16.msra.mxu0 0
      %434 = vmatpush.bf16.msra.mxu0 0
      %435 = vmatpush.bf16.msra.mxu0 0
      %436 = vmatpush.bf16.msra.mxu0 0
      %437 = vmatpush.bf16.msra.mxu0 0
      %438 = vmatpush.bf16.msra.mxu0 %v429
      %439 = vmatmul.bf16.gmra.mxu0 %v426
      %v440 = vpop.f32.mrf.mxu0
      %v441 = vadd.f32 0.0, %v440
      %v442 = vpop.f32.mrf.mxu0
      %443 = vdwg.mxu0
      %v445 = vsel %vm356, %v403, 0
      %v448 = vsel %vm408, %v266, 0
      %450 = vmatpush.bf16.msra.mxu0 0
      %451 = vmatpush.bf16.msra.mxu0 0
      %452 = vmatpush.bf16.msra.mxu0 0
      %453 = vmatpush.bf16.msra.mxu0 0
      %454 = vmatpush.bf16.msra.mxu0 0
      %455 = vmatpush.bf16.msra.mxu0 0
      %456 = vmatpush.bf16.msra.mxu0 0
      %457 = vmatpush.bf16.msra.mxu0 %v448
      %458 = vmatmul.bf16.gmra.mxu0 %v445
      %v459 = vpop.f32.mrf.mxu0
      %v460 = vadd.f32 0.0, %v459
      %v461 = vpop.f32.mrf.mxu0
      %462 = vdwg.mxu0
      %v464 = vsel %vm356, %v404, 0
      %v467 = vsel %vm408, %v267, 0
      %469 = vmatpush.bf16.msra.mxu0 0
      %470 = vmatpush.bf16.msra.mxu0 0
      %471 = vmatpush.bf16.msra.mxu0 0
      %472 = vmatpush.bf16.msra.mxu0 0
      %473 = vmatpush.bf16.msra.mxu0 0
      %474 = vmatpush.bf16.msra.mxu0 0
      %475 = vmatpush.bf16.msra.mxu0 0
      %476 = vmatpush.bf16.msra.mxu0 %v467
      %477 = vmatmul.bf16.gmra.mxu0 %v464
      %v478 = vpop.f32.mrf.mxu0
      %v479 = vadd.f32 0.0, %v478
      %v480 = vpop.f32.mrf.mxu0
      %481 = vdwg.mxu0
      %v482 = vpack.c.bf16 %v422, %v422
      %v483 = vpack.c.bf16 %v441, %v441
      %v484 = vpack.c.bf16 %v460, %v460
      %v485 = vpack.c.bf16 %v479, %v479
      %vm486 = vcmask 257024
      %487 = vst.msk [vmem:[%s251] sm:$0xf] %vm486, %v482
      %488 = vst.msk [vmem:[%s251 + $0x4] sm:$0xf] %vm486, %v483
      %489 = vst.msk [vmem:[%s251 + $0x8] sm:$0xf] %vm486, %v484
      %490 = vst.msk [vmem:[%s251 + $0xc] sm:$0xf] %vm486, %v485
      %p491 = scmp.lt.s32.totalorder %s15, 1
      %s492 = scalar_select %p491, %s15, 1
      %s493 = smul.addr %s492, 4
      %s494 = smul.addr %s493, 4
      %s495 = scalar_lea.vmem %s4, %s494
      // Predicated region
      $region37: #{transformer_forward.26} parent=35 // pred_check
        %p496 = pneg %p137
      $region38: #{transformer_forward.26} parent=35 // pred_check_branch
        %498 = sbr.rel (%p496) target = $region40
      $region39: #{transformer_forward.26} parent=35 // pred_region
        _
      $region40: #{transformer_forward.26} parent=35 // pred_fallthru
        _
    $region36: #{transformer_forward.26} parent=5 // pred_fallthru
      _
    %p499 = scmp.le.s32.totalorder 2, %s10
    // Predicated region
    $region41: #{transformer_forward.26} parent=5 // pred_check
      %p500 = pneg %p499
    $region42: #{transformer_forward.26} parent=5 // pred_check_branch
      %502 = sbr.rel (%p500) target = $region44
    $region43: #{transformer_forward.26} parent=5 // pred_region
      %s503 = ssub.s32 %s10, 2
      // Predicated region
      $region45: #{transformer_forward.26} parent=43 // pred_check
        %p504 = pneg %p143
      $region46: #{transformer_forward.26} parent=43 // pred_check_branch
        %506 = sbr.rel (%p504) target = $region48
      $region47: #{transformer_forward.26} parent=43 // pred_region
        %p507 = scmp.lt.s32.totalorder %s16, 1
        %s508 = scalar_select %p507, %s16, 1
        %s509 = smul.addr %s508, 4
        %s510 = smul.addr %s509, 4
        %s511 = scalar_lea.vmem %s4, %s510
      $region48: #{transformer_forward.26} parent=43 // pred_fallthru
        _
    $region44: #{transformer_forward.26} parent=5 // pred_fallthru
      _
  $region6: #{transformer_forward.26} parent=0 // loop_footer
    %s14 = sadd.s32 1, %s10
  $region7: #{transformer_forward.26} parent=0 // loop_footer_branch
    %9 = sbr.rel target = $region3
  $region8: #{transformer_forward.26} parent=0 // loop_exit
    _

// kernel: transformer_forward.28
$region0: #{transformer_forward.28}
  #allocation0 [shape = 'u32[]', space=smem, size = 0x4, offset = 0x4, fixed_abs, tag = 'smem constant byte address 0x4 - core index']
  #allocation1 [shape = 'u32[72,128]{1,0:T(1,128)}', space=vmem, size = 0x9000, scoped, tag = 'internal scratch']
  #allocation2 [shape = 'f32[16,128]{1,0:T(8,128)}', space=vmem, size = 0x2000, scoped, tag = 'scratch operand']
  %s0 = inlined_call_operand.vmem [shape: bf16[16,128], index: 0, kind: input, shape index: {}]
  %s1 = inlined_call_operand.vmem [shape: bf16[128,256], index: 1, kind: input, shape index: {}]
  %s2 = inlined_call_operand.vmem [shape: f32[1,256], index: 2, kind: input, shape index: {}]
  %s3 = inlined_call_operand.vmem [shape: bf16[256,128], index: 3, kind: input, shape index: {}]
  %s4 = inlined_call_operand.vmem [shape: f32[1,128], index: 4, kind: input, shape index: {}]
  %s5 = inlined_call_operand.vmem [shape: f32[1,128], index: 5, kind: input, shape index: {}]
  %s6 = inlined_call_operand.vmem [shape: f32[1,128], index: 6, kind: input, shape index: {}]
  %s7 = inlined_call_operand.vmem [shape: bf16[16,128], index: 7, kind: output, shape index: {}]
  %s8 = sld [smem:[#allocation0]]
  $region46: #{transformer_forward.28} parent=0
    _
  %s10 = ssub.s32 1, %s8
  %s11 = scalar_select 0, %s10, %s8
  // Predicated region
  $region2: #{transformer_forward.28} parent=0 // pred_check
    _
  $region3: #{transformer_forward.28} parent=0 // pred_check_branch
    %13 = sbr.rel (0) target = $region5
  $region4: #{transformer_forward.28} parent=0 // pred_region
    _
  $region5: #{transformer_forward.28} parent=0 // pred_fallthru
    _
  // Predicated region
  $region6: #{transformer_forward.28} parent=0 // pred_check
    _
  $region7: #{transformer_forward.28} parent=0 // pred_check_branch
    %15 = sbr.rel (0) target = $region9
  $region8: #{transformer_forward.28} parent=0 // pred_region
    _
  $region9: #{transformer_forward.28} parent=0 // pred_fallthru
    _
  // Predicated region
  $region10: #{transformer_forward.28} parent=0 // pred_check
    _
  $region11: #{transformer_forward.28} parent=0 // pred_check_branch
    %17 = sbr.rel (0) target = $region13
  $region12: #{transformer_forward.28} parent=0 // pred_region
    _
  $region13: #{transformer_forward.28} parent=0 // pred_fallthru
    _
  // Predicated region
  $region14: #{transformer_forward.28} parent=0 // pred_check
    _
  $region15: #{transformer_forward.28} parent=0 // pred_check_branch
    %19 = sbr.rel (0) target = $region17
  $region16: #{transformer_forward.28} parent=0 // pred_region
    _
  $region17: #{transformer_forward.28} parent=0 // pred_fallthru
    _
  // Predicated region
  $region18: #{transformer_forward.28} parent=0 // pred_check
    _
  $region19: #{transformer_forward.28} parent=0 // pred_check_branch
    %21 = sbr.rel (0) target = $region21
  $region20: #{transformer_forward.28} parent=0 // pred_region
    _
  $region21: #{transformer_forward.28} parent=0 // pred_fallthru
    _
  // Predicated region
  $region22: #{transformer_forward.28} parent=0 // pred_check
    _
  $region23: #{transformer_forward.28} parent=0 // pred_check_branch
    %23 = sbr.rel (0) target = $region25
  $region24: #{transformer_forward.28} parent=0 // pred_region
    _
  $region25: #{transformer_forward.28} parent=0 // pred_fallthru
    _
  // Predicated region
  $region26: #{transformer_forward.28} parent=0 // pred_check
    _
  $region27: #{transformer_forward.28} parent=0 // pred_check_branch
    %25 = sbr.rel (0) target = $region29
  $region28: #{transformer_forward.28} parent=0 // pred_region
    _
  $region29: #{transformer_forward.28} parent=0 // pred_fallthru
    _
  %p26 = scmp.eq.s32.totalorder 0, 0
  // Predicated region
  $region30: #{transformer_forward.28} parent=0 // pred_check
    %p27 = pneg %p26
  $region31: #{transformer_forward.28} parent=0 // pred_check_branch
    %29 = sbr.rel (%p27) target = $region33
  $region32: #{transformer_forward.28} parent=0 // pred_region
    %v30 = vld [vmem:[%s4] sm:$0x1]
    %v32 = vperm.slane %v30, 0
    %34 = vst [vmem:[#allocation2] sm:$0xff] %v32
    %35 = vst [vmem:[#allocation2 + $0x8] sm:$0xff] %v32
  $region33: #{transformer_forward.28} parent=0 // pred_fallthru
    _
  %v36 = vld [vmem:[%s0] sm:$0xf]
  %v37 = vld [vmem:[%s0 + $0x4] sm:$0xf]
  %v38 = vld [vmem:[%s1] sm:$0xff]
  %v39 = vld [vmem:[%s1 + $0x8] sm:$0xff]
  %v40 = vld [vmem:[%s1 + $0x10] sm:$0xff]
  %v41 = vld [vmem:[%s1 + $0x18] sm:$0xff]
  %v42 = vld [vmem:[%s1 + $0x20] sm:$0xff]
  %v43 = vld [vmem:[%s1 + $0x28] sm:$0xff]
  %v44 = vld [vmem:[%s1 + $0x30] sm:$0xff]
  %v45 = vld [vmem:[%s1 + $0x38] sm:$0xff]
  %v46 = vld [vmem:[%s1 + $0x40] sm:$0xff]
  %v47 = vld [vmem:[%s1 + $0x48] sm:$0xff]
  %v48 = vld [vmem:[%s1 + $0x50] sm:$0xff]
  %v49 = vld [vmem:[%s1 + $0x58] sm:$0xff]
  %v50 = vld [vmem:[%s1 + $0x60] sm:$0xff]
  %v51 = vld [vmem:[%s1 + $0x68] sm:$0xff]
  %v52 = vld [vmem:[%s1 + $0x70] sm:$0xff]
  %v53 = vld [vmem:[%s1 + $0x78] sm:$0xff]
  %v54 = vld [vmem:[%s2] sm:$0x3]
  %v56 = vperm.slane %v54, 0
  %v57 = vperm.slane %v54, 1
  %v62 = vunpack.c.l.b16 %v36
  %v63 = vunpack.c.l.b16 %v37
  %v64 = vpack.c.b16 %v63, %v62
  %v82 = vunpack.c.l.b16 %v38
  %v83 = vunpack.c.h.b16 %v38
  %v84 = vunpack.c.l.b16 %v39
  %v85 = vunpack.c.h.b16 %v39
  %v86 = vunpack.c.l.b16 %v40
  %v87 = vunpack.c.h.b16 %v40
  %v88 = vunpack.c.l.b16 %v41
  %v89 = vunpack.c.h.b16 %v41
  %v90 = vunpack.c.l.b16 %v42
  %v91 = vunpack.c.h.b16 %v42
  %v92 = vunpack.c.l.b16 %v43
  %v93 = vunpack.c.h.b16 %v43
  %v94 = vunpack.c.l.b16 %v44
  %v95 = vunpack.c.h.b16 %v44
  %v96 = vunpack.c.l.b16 %v45
  %v97 = vunpack.c.h.b16 %v45
  %v98 = vunpack.c.l.b16 %v46
  %v99 = vunpack.c.h.b16 %v46
  %v100 = vunpack.c.l.b16 %v47
  %v101 = vunpack.c.h.b16 %v47
  %v102 = vunpack.c.l.b16 %v48
  %v103 = vunpack.c.h.b16 %v48
  %v104 = vunpack.c.l.b16 %v49
  %v105 = vunpack.c.h.b16 %v49
  %v106 = vunpack.c.l.b16 %v50
  %v107 = vunpack.c.h.b16 %v50
  %v108 = vunpack.c.l.b16 %v51
  %v109 = vunpack.c.h.b16 %v51
  %v110 = vunpack.c.l.b16 %v52
  %v111 = vunpack.c.h.b16 %v52
  %v112 = vunpack.c.l.b16 %v53
  %v113 = vunpack.c.h.b16 %v53
  %v114 = vpack.c.b16 %v84, %v82
  %v115 = vpack.c.b16 %v85, %v83
  %v116 = vpack.c.b16 %v88, %v86
  %v117 = vpack.c.b16 %v89, %v87
  %v118 = vpack.c.b16 %v92, %v90
  %v119 = vpack.c.b16 %v93, %v91
  %v120 = vpack.c.b16 %v96, %v94
  %v121 = vpack.c.b16 %v97, %v95
  %v122 = vpack.c.b16 %v100, %v98
  %v123 = vpack.c.b16 %v101, %v99
  %v124 = vpack.c.b16 %v104, %v102
  %v125 = vpack.c.b16 %v105, %v103
  %v126 = vpack.c.b16 %v108, %v106
  %v127 = vpack.c.b16 %v109, %v107
  %v128 = vpack.c.b16 %v112, %v110
  %v129 = vpack.c.b16 %v113, %v111
  %146 = vmatpush.bf16.msra.mxu0 %v128
  %147 = vmatpush.bf16.msra.mxu0 %v126
  %148 = vmatpush.bf16.msra.mxu0 %v124
  %149 = vmatpush.bf16.msra.mxu0 %v122
  %150 = vmatpush.bf16.msra.mxu0 %v120
  %151 = vmatpush.bf16.msra.mxu0 %v118
  %152 = vmatpush.bf16.msra.mxu0 %v116
  %153 = vmatpush.bf16.msra.mxu0 %v114
  %154 = vmatmul.bf16.gmra.mxu0 %v64
  %v155 = vpop.f32.mrf.mxu0
  %v156 = vadd.f32 %v56, %v155
  %v157 = vpop.f32.mrf.mxu0
  %v158 = vadd.f32 %v56, %v157
  %159 = vdwg.mxu0
  %160 = vmatpush.bf16.msra.mxu0 %v129
  %161 = vmatpush.bf16.msra.mxu0 %v127
  %162 = vmatpush.bf16.msra.mxu0 %v125
  %163 = vmatpush.bf16.msra.mxu0 %v123
  %164 = vmatpush.bf16.msra.mxu0 %v121
  %165 = vmatpush.bf16.msra.mxu0 %v119
  %166 = vmatpush.bf16.msra.mxu0 %v117
  %167 = vmatpush.bf16.msra.mxu0 %v115
  %168 = vmatmul.bf16.gmra.mxu0 %v64
  %v169 = vpop.f32.mrf.mxu0
  %v170 = vadd.f32 %v57, %v169
  %v171 = vpop.f32.mrf.mxu0
  %v172 = vadd.f32 %v57, %v171
  %173 = vdwg.mxu0
  %v174 = vmax.f32 %v156, 0.0
  %v175 = vmax.f32 %v170, 0.0
  %v176 = vmax.f32 %v158, 0.0
  %v177 = vmax.f32 %v172, 0.0
  %v178 = vpack.c.bf16 %v176, %v174
  %v179 = vpack.c.bf16 %v177, %v175
  %v180 = vld [vmem:[#allocation2] sm:$0xff]
  %v181 = vld [vmem:[#allocation2 + $0x8] sm:$0xff]
  %v182 = vld [vmem:[%s3] sm:$0xf]
  %v183 = vld [vmem:[%s3 + $0x4] sm:$0xf]
  %v184 = vld [vmem:[%s3 + $0x8] sm:$0xf]
  %v185 = vld [vmem:[%s3 + $0xc] sm:$0xf]
  %v186 = vld [vmem:[%s3 + $0x10] sm:$0xf]
  %v187 = vld [vmem:[%s3 + $0x14] sm:$0xf]
  %v188 = vld [vmem:[%s3 + $0x18] sm:$0xf]
  %v189 = vld [vmem:[%s3 + $0x1c] sm:$0xf]
  %v190 = vld [vmem:[%s3 + $0x20] sm:$0xf]
  %v191 = vld [vmem:[%s3 + $0x24] sm:$0xf]
  %v192 = vld [vmem:[%s3 + $0x28] sm:$0xf]
  %v193 = vld [vmem:[%s3 + $0x2c] sm:$0xf]
  %v194 = vld [vmem:[%s3 + $0x30] sm:$0xf]
  %v195 = vld [vmem:[%s3 + $0x34] sm:$0xf]
  %v196 = vld [vmem:[%s3 + $0x38] sm:$0xf]
  %v197 = vld [vmem:[%s3 + $0x3c] sm:$0xf]
  %v198 = vld [vmem:[%s3 + $0x40] sm:$0xf]
  %v199 = vld [vmem:[%s3 + $0x44] sm:$0xf]
  %v200 = vld [vmem:[%s3 + $0x48] sm:$0xf]
  %v201 = vld [vmem:[%s3 + $0x4c] sm:$0xf]
  %v202 = vld [vmem:[%s3 + $0x50] sm:$0xf]
  %v203 = vld [vmem:[%s3 + $0x54] sm:$0xf]
  %v204 = vld [vmem:[%s3 + $0x58] sm:$0xf]
  %v205 = vld [vmem:[%s3 + $0x5c] sm:$0xf]
  %v206 = vld [vmem:[%s3 + $0x60] sm:$0xf]
  %v207 = vld [vmem:[%s3 + $0x64] sm:$0xf]
  %v208 = vld [vmem:[%s3 + $0x68] sm:$0xf]
  %v209 = vld [vmem:[%s3 + $0x6c] sm:$0xf]
  %v210 = vld [vmem:[%s3 + $0x70] sm:$0xf]
  %v211 = vld [vmem:[%s3 + $0x74] sm:$0xf]
  %v212 = vld [vmem:[%s3 + $0x78] sm:$0xf]
  %v213 = vld [vmem:[%s3 + $0x7c] sm:$0xf]
  %v246 = vunpack.c.l.b16 %v182
  %v247 = vunpack.c.l.b16 %v183
  %v248 = vunpack.c.l.b16 %v184
  %v249 = vunpack.c.l.b16 %v185
  %v250 = vunpack.c.l.b16 %v186
  %v251 = vunpack.c.l.b16 %v187
  %v252 = vunpack.c.l.b16 %v188
  %v253 = vunpack.c.l.b16 %v189
  %v254 = vunpack.c.l.b16 %v190
  %v255 = vunpack.c.l.b16 %v191
  %v256 = vunpack.c.l.b16 %v192
  %v257 = vunpack.c.l.b16 %v193
  %v258 = vunpack.c.l.b16 %v194
  %v259 = vunpack.c.l.b16 %v195
  %v260 = vunpack.c.l.b16 %v196
  %v261 = vunpack.c.l.b16 %v197
  %v262 = vunpack.c.l.b16 %v198
  %v263 = vunpack.c.l.b16 %v199
  %v264 = vunpack.c.l.b16 %v200
  %v265 = vunpack.c.l.b16 %v201
  %v266 = vunpack.c.l.b16 %v202
  %v267 = vunpack.c.l.b16 %v203
  %v268 = vunpack.c.l.b16 %v204
  %v269 = vunpack.c.l.b16 %v205
  %v270 = vunpack.c.l.b16 %v206
  %v271 = vunpack.c.l.b16 %v207
  %v272 = vunpack.c.l.b16 %v208
  %v273 = vunpack.c.l.b16 %v209
  %v274 = vunpack.c.l.b16 %v210
  %v275 = vunpack.c.l.b16 %v211
  %v276 = vunpack.c.l.b16 %v212
  %v277 = vunpack.c.l.b16 %v213
  %v278 = vpack.c.b16 %v247, %v246
  %v279 = vpack.c.b16 %v249, %v248
  %v280 = vpack.c.b16 %v251, %v250
  %v281 = vpack.c.b16 %v253, %v252
  %v282 = vpack.c.b16 %v255, %v254
  %v283 = vpack.c.b16 %v257, %v256
  %v284 = vpack.c.b16 %v259, %v258
  %v285 = vpack.c.b16 %v261, %v260
  %v286 = vpack.c.b16 %v263, %v262
  %v287 = vpack.c.b16 %v265, %v264
  %v288 = vpack.c.b16 %v267, %v266
  %v289 = vpack.c.b16 %v269, %v268
  %v290 = vpack.c.b16 %v271, %v270
  %v291 = vpack.c.b16 %v273, %v272
  %v292 = vpack.c.b16 %v275, %v274
  %v293 = vpack.c.b16 %v277, %v276
  %310 = vmatpush.bf16.msra.mxu0 %v285
  %311 = vmatpush.bf16.msra.mxu0 %v284
  %312 = vmatpush.bf16.msra.mxu0 %v283
  %313 = vmatpush.bf16.msra.mxu0 %v282
  %314 = vmatpush.bf16.msra.mxu0 %v281
  %315 = vmatpush.bf16.msra.mxu0 %v280
  %316 = vmatpush.bf16.msra.mxu0 %v279
  %317 = vmatpush.bf16.msra.mxu0 %v278
  %318 = vmatmul.bf16.gmra.mxu0 %v178
  %v319 = vpop.f32.mrf.mxu0
  %v320 = vadd.f32 0.0, %v319
  %v321 = vpop.f32.mrf.mxu0
  %v322 = vadd.f32 0.0, %v321
  %323 = vdwg.mxu0
  %324 = vmatpush.bf16.msra.mxu0 %v293
  %325 = vmatpush.bf16.msra.mxu0 %v292
  %326 = vmatpush.bf16.msra.mxu0 %v291
  %327 = vmatpush.bf16.msra.mxu0 %v290
  %328 = vmatpush.bf16.msra.mxu0 %v289
  %329 = vmatpush.bf16.msra.mxu0 %v288
  %330 = vmatpush.bf16.msra.mxu0 %v287
  %331 = vmatpush.bf16.msra.mxu0 %v286
  %332 = vmatmul.bf16.gmra.mxu0 %v179
  %v333 = vpop.f32.mrf.mxu0
  %v334 = vadd.f32 %v320, %v333
  %v335 = vpop.f32.mrf.mxu0
  %v336 = vadd.f32 %v322, %v335
  %337 = vdwg.mxu0
  %v338 = vadd.f32 %v180, %v334
  %v339 = vadd.f32 %v181, %v336
  %340 = vst [vmem:[#allocation2] sm:$0xff] %v338
  %341 = vst [vmem:[#allocation2 + $0x8] sm:$0xff] %v339
  // Predicated region
  $region34: #{transformer_forward.28} parent=0 // pred_check
    %p342 = pneg %p26
  $region35: #{transformer_forward.28} parent=0 // pred_check_branch
    %344 = sbr.rel (%p342) target = $region37
  $region36: #{transformer_forward.28} parent=0 // pred_region
    %v345 = vld [vmem:[#allocation2] sm:$0xff]
    %v346 = vld [vmem:[#allocation2 + $0x8] sm:$0xff]
    %v347 = vld [vmem:[%s0] sm:$0xf]
    %v348 = vld [vmem:[%s0 + $0x4] sm:$0xf]
    %v349 = vunpack.c.l.bf16 %v347
    %v350 = vunpack.c.l.bf16 %v348
    %v351 = vadd.f32 %v345, %v349
    %v352 = vadd.f32 %v346, %v350
    %v353 = vld [vmem:[%s5] sm:$0x1]
    %v354 = vld [vmem:[%s6] sm:$0x1]
    %355 = vadd.xlane.f32.xlu0 %v351
    %v356 = vpop.xlane.xlu0 %355
    %357 = vadd.xlane.f32.xlu0 %v352
    %v358 = vpop.xlane.xlu0 %357
    %v359 = vrcp.pop 128.0
    %v360 = vmul.f32 128.0, %v359
    %v361 = vsub.f32 1.0, %v360
    %v362 = vmul.f32 %v359, %v361
    %v363 = vadd.f32 %v359, %v362
    %vm364 = vweird.f32 %v359
    %v365 = vsel %vm364, %v359, %v363
    %v366 = vmul.f32 %v356, %v365
    %v367 = vmul.f32 %v358, %v365
    %v368 = vsub.f32 %v351, %v366
    %v369 = vsub.f32 %v352, %v367
    %v370 = vmul.f32 %v368, %v368
    %v371 = vmul.f32 %v369, %v369
    %372 = vadd.xlane.f32.xlu0 %v370
    %v373 = vpop.xlane.xlu0 %372
    %374 = vadd.xlane.f32.xlu0 %v371
    %v375 = vpop.xlane.xlu0 %374
    %v376 = vmul.f32 %v373, %v365
    %v377 = vmul.f32 %v375, %v365
    %v378 = vadd.f32 %v376, 1e-05
    %v379 = vadd.f32 %v377, 1e-05
    %v380 = vrsqrt.pop %v378
    %v381 = vmul.f32 %v380, %v378
    %v382 = vmul.f32 %v381, %v380
    %v383 = vmul.f32 0.5, %v382
    %v384 = vsub.f32 1.5, %v383
    %v385 = vmul.f32 %v380, %v384
    %vm386 = vweird.f32 %v378
    %vm387 = vweird.f32 %v380
    %vm388 = vmor %vm386, %vm387
    %v389 = vsel %vm388, %v380, %v385
    %v390 = vrsqrt.pop %v379
    %v391 = vmul.f32 %v390, %v379
    %v392 = vmul.f32 %v391, %v390
    %v393 = vmul.f32 0.5, %v392
    %v394 = vsub.f32 1.5, %v393
    %v395 = vmul.f32 %v390, %v394
    %vm396 = vweird.f32 %v379
    %vm397 = vweird.f32 %v390
    %vm398 = vmor %vm396, %vm397
    %v399 = vsel %vm398, %v390, %v395
    %v400 = vmul.f32 %v368, %v389
    %v401 = vmul.f32 %v369, %v399
    %v403 = vperm.slane %v353, 0
    %v405 = vmul.f32 %v400, %v403
    %v406 = vmul.f32 %v401, %v403
    %v408 = vperm.slane %v354, 0
    %v410 = vadd.f32 %v405, %v408
    %v411 = vadd.f32 %v406, %v408
    %v412 = vpack.c.bf16 %v410, %v410
    %v413 = vpack.c.bf16 %v411, %v411
    %414 = vst [vmem:[%s7] sm:$0xf] %v412
    %415 = vst [vmem:[%s7 + $0x4] sm:$0xf] %v413
  $region37: #{transformer_forward.28} parent=0 // pred_fallthru
    _
  // Predicated region
  $region38: #{transformer_forward.28} parent=0 // pred_check
    _
  $region39: #{transformer_forward.28} parent=0 // pred_check_branch
    %417 = sbr.rel (0) target = $region41
  $region40: #{transformer_forward.28} parent=0 // pred_region
    _
  $region41: #{transformer_forward.28} parent=0 // pred_fallthru
    _
  // Predicated region
  $region42: #{transformer_forward.28} parent=0 // pred_check
    _
  $region43: #{transformer_forward.28} parent=0 // pred_check_branch
    %419 = sbr.rel (0) target = $region45
  $region44: #{transformer_forward.28} parent=0 // pred_region
    _
  $region45: #{transformer_forward.28} parent=0 // pred_fallthru
    _

// kernel: transformer_forward.39
$region0: #{transformer_forward.39}
  #allocation0 [shape = 'u32[]', space=smem, size = 0x4, offset = 0x4, fixed_abs, tag = 'smem constant byte address 0x4 - core index']
  #allocation1 [shape = 'u32[72,128]{1,0:T(1,128)}', space=vmem, size = 0x9000, scoped, tag = 'internal scratch']
  %s0 = inlined_call_operand.vmem [shape: bf16[16,128], index: 0, kind: input, shape index: {}]
  %s1 = inlined_call_operand.hbm [shape: bf16[128,128], index: 1, kind: input, shape index: {}]
  %s2 = inlined_call_operand.vmem [shape: f32[1,128], index: 2, kind: input, shape index: {}]
  %s3 = inlined_call_operand.vmem [shape: bf16[16,128], index: 3, kind: input, shape index: {}]
  %s4 = inlined_call_operand.hbm [shape: f32[1,128], index: 4, kind: input, shape index: {}]
  %s5 = inlined_call_operand.hbm [shape: f32[1,128], index: 5, kind: input, shape index: {}]
  %s6 = inlined_call_operand.vmem [shape: bf16[16,128], index: 6, kind: output, shape index: {}]
  %s7 = sld [smem:[#allocation0]]
  $region46: #{transformer_forward.39} parent=0
    _
  %s9 = ssub.s32 1, %s7
  %s10 = scalar_select 0, %s9, %s7
  $region1: #{transformer_forward.39} parent=0
    #allocation2 [shape = 'u8[32768]{0}', space=vmem, size = 0x8000, scoped, tag = 'input window, operand 1, single buffered']
    #allocation3 [shape = 's32[1]{0}', space=sflag, size = 0x4, scoped, tag = 'scoped memory for transformer_forward.39']
    #allocation4 [shape = 'u8[512]{0}', space=vmem, size = 0x400, scoped, tag = 'input window, operand 4, single buffered']
    #allocation5 [shape = 's32[1]{0}', space=sflag, size = 0x4, scoped, tag = 'scoped memory for transformer_forward.39']
    #allocation6 [shape = 'u8[512]{0}', space=vmem, size = 0x400, scoped, tag = 'input window, operand 5, single buffered']
    %11 = vsyncpa [#allocation3], 0
    %12 = vsyncpa [#allocation5], 0
    // Predicated region
    $region2: #{transformer_forward.39} parent=1 // pred_check
      _
    $region3: #{transformer_forward.39} parent=1 // pred_check_branch
      %14 = sbr.rel (0) target = $region5
    $region4: #{transformer_forward.39} parent=1 // pred_region
      _
    $region5: #{transformer_forward.39} parent=1 // pred_fallthru
      _
    // Predicated region
    $region6: #{transformer_forward.39} parent=1 // pred_check
      _
    $region7: #{transformer_forward.39} parent=1 // pred_check_branch
      %16 = sbr.rel (0) target = $region9
    $region8: #{transformer_forward.39} parent=1 // pred_region
      %18 = vsyncadd [#allocation3], 0
      %s19 = sshll.u32 %s1, 4
      %s20 = int_to_ptr.hbm [resolvable:$true] %s19
      %s21 = sshll.u32 [#allocation2], 4
      %s22 = int_to_ptr.vmem [resolvable:$true] %s21
      %27 = dma.hbm_to_vmem [thread:$0]  %s20, 1024, %s22, [#allocation3], 64, 64, 4
    $region9: #{transformer_forward.39} parent=1 // pred_fallthru
      _
    // Predicated region
    $region10: #{transformer_forward.39} parent=1 // pred_check
      _
    $region11: #{transformer_forward.39} parent=1 // pred_check_branch
      %29 = sbr.rel (0) target = $region13
    $region12: #{transformer_forward.39} parent=1 // pred_region
      _
    $region13: #{transformer_forward.39} parent=1 // pred_fallthru
      _
    // Predicated region
    $region14: #{transformer_forward.39} parent=1 // pred_check
      _
    $region15: #{transformer_forward.39} parent=1 // pred_check_branch
      %31 = sbr.rel (0) target = $region17
    $region16: #{transformer_forward.39} parent=1 // pred_region
      _
    $region17: #{transformer_forward.39} parent=1 // pred_fallthru
      _
    // Predicated region
    $region18: #{transformer_forward.39} parent=1 // pred_check
      _
    $region19: #{transformer_forward.39} parent=1 // pred_check_branch
      %33 = sbr.rel (0) target = $region21
    $region20: #{transformer_forward.39} parent=1 // pred_region
      %35 = vsyncadd [#allocation5], 0
      %s37 = sshll.u32 %s4, 4
      %s38 = int_to_ptr.hbm [resolvable:$true] %s37
      %s39 = sshll.u32 [#allocation4], 4
      %s40 = int_to_ptr.vmem [resolvable:$true] %s39
      %42 = dma.hbm_to_vmem [thread:$0]  %s38, 16, %s40, [#allocation5]
    $region21: #{transformer_forward.39} parent=1 // pred_fallthru
      _
    // Predicated region
    $region22: #{transformer_forward.39} parent=1 // pred_check
      _
    $region23: #{transformer_forward.39} parent=1 // pred_check_branch
      %44 = sbr.rel (0) target = $region25
    $region24: #{transformer_forward.39} parent=1 // pred_region
      %46 = vsyncadd [#allocation5], 0
      %s48 = sshll.u32 %s5, 4
      %s49 = int_to_ptr.hbm [resolvable:$true] %s48
      %s50 = sshll.u32 [#allocation6], 4
      %s51 = int_to_ptr.vmem [resolvable:$true] %s50
      %53 = dma.hbm_to_vmem [thread:$0]  %s49, 16, %s51, [#allocation5]
    $region25: #{transformer_forward.39} parent=1 // pred_fallthru
      _
    // Predicated region
    $region26: #{transformer_forward.39} parent=1 // pred_check
      _
    $region27: #{transformer_forward.39} parent=1 // pred_check_branch
      %55 = sbr.rel (0) target = $region29
    $region28: #{transformer_forward.39} parent=1 // pred_region
      %57 = dma.done [#allocation3], 1024
    $region29: #{transformer_forward.39} parent=1 // pred_fallthru
      _
    // Predicated region
    $region30: #{transformer_forward.39} parent=1 // pred_check
      _
    $region31: #{transformer_forward.39} parent=1 // pred_check_branch
      %59 = sbr.rel (0) target = $region33
    $region32: #{transformer_forward.39} parent=1 // pred_region
      %61 = dma.done [#allocation5], 16
    $region33: #{transformer_forward.39} parent=1 // pred_fallthru
      _
    // Predicated region
    $region34: #{transformer_forward.39} parent=1 // pred_check
      _
    $region35: #{transformer_forward.39} parent=1 // pred_check_branch
      %63 = sbr.rel (0) target = $region37
    $region36: #{transformer_forward.39} parent=1 // pred_region
      %65 = dma.done [#allocation5], 16
    $region37: #{transformer_forward.39} parent=1 // pred_fallthru
      _
    %v66 = vld [vmem:[%s0] sm:$0xf]
    %v67 = vld [vmem:[%s0 + $0x4] sm:$0xf]
    %v68 = vld [vmem:[#allocation2] sm:$0xf]
    %v69 = vld [vmem:[#allocation2 + $0x4] sm:$0xf]
    %v70 = vld [vmem:[#allocation2 + $0x8] sm:$0xf]
    %v71 = vld [vmem:[#allocation2 + $0xc] sm:$0xf]
    %v72 = vld [vmem:[#allocation2 + $0x10] sm:$0xf]
    %v73 = vld [vmem:[#allocation2 + $0x14] sm:$0xf]
    %v74 = vld [vmem:[#allocation2 + $0x18] sm:$0xf]
    %v75 = vld [vmem:[#allocation2 + $0x1c] sm:$0xf]
    %v76 = vld [vmem:[#allocation2 + $0x20] sm:$0xf]
    %v77 = vld [vmem:[#allocation2 + $0x24] sm:$0xf]
    %v78 = vld [vmem:[#allocation2 + $0x28] sm:$0xf]
    %v79 = vld [vmem:[#allocation2 + $0x2c] sm:$0xf]
    %v80 = vld [vmem:[#allocation2 + $0x30] sm:$0xf]
    %v81 = vld [vmem:[#allocation2 + $0x34] sm:$0xf]
    %v82 = vld [vmem:[#allocation2 + $0x38] sm:$0xf]
    %v83 = vld [vmem:[#allocation2 + $0x3c] sm:$0xf]
    %v84 = vld [vmem:[%s2] sm:$0x1]
    %v86 = vperm.slane %v84, 0
    %v90 = vunpack.c.l.b16 %v66
    %v91 = vunpack.c.l.b16 %v67
    %v92 = vpack.c.b16 %v91, %v90
    %v110 = vunpack.c.l.b16 %v68
    %v111 = vunpack.c.l.b16 %v69
    %v112 = vunpack.c.l.b16 %v70
    %v113 = vunpack.c.l.b16 %v71
    %v114 = vunpack.c.l.b16 %v72
    %v115 = vunpack.c.l.b16 %v73
    %v116 = vunpack.c.l.b16 %v74
    %v117 = vunpack.c.l.b16 %v75
    %v118 = vunpack.c.l.b16 %v76
    %v119 = vunpack.c.l.b16 %v77
    %v120 = vunpack.c.l.b16 %v78
    %v121 = vunpack.c.l.b16 %v79
    %v122 = vunpack.c.l.b16 %v80
    %v123 = vunpack.c.l.b16 %v81
    %v124 = vunpack.c.l.b16 %v82
    %v125 = vunpack.c.l.b16 %v83
    %v126 = vpack.c.b16 %v111, %v110
    %v127 = vpack.c.b16 %v113, %v112
    %v128 = vpack.c.b16 %v115, %v114
    %v129 = vpack.c.b16 %v117, %v116
    %v130 = vpack.c.b16 %v119, %v118
    %v131 = vpack.c.b16 %v121, %v120
    %v132 = vpack.c.b16 %v123, %v122
    %v133 = vpack.c.b16 %v125, %v124
    %142 = vmatpush.bf16.msra.mxu0 %v133
    %143 = vmatpush.bf16.msra.mxu0 %v132
    %144 = vmatpush.bf16.msra.mxu0 %v131
    %145 = vmatpush.bf16.msra.mxu0 %v130
    %146 = vmatpush.bf16.msra.mxu0 %v129
    %147 = vmatpush.bf16.msra.mxu0 %v128
    %148 = vmatpush.bf16.msra.mxu0 %v127
    %149 = vmatpush.bf16.msra.mxu0 %v126
    %150 = vmatmul.bf16.gmra.mxu0 %v92
    %v151 = vpop.f32.mrf.mxu0
    %v152 = vadd.f32 %v86, %v151
    %v153 = vpop.f32.mrf.mxu0
    %v154 = vadd.f32 %v86, %v153
    %155 = vdwg.mxu0
    %v156 = vld [vmem:[%s3] sm:$0xf]
    %v157 = vld [vmem:[%s3 + $0x4] sm:$0xf]
    %v158 = vunpack.c.l.bf16 %v156
    %v159 = vunpack.c.l.bf16 %v157
    %v160 = vadd.f32 %v152, %v158
    %v161 = vadd.f32 %v154, %v159
    %v162 = vld [vmem:[#allocation4] sm:$0x1]
    %v163 = vld [vmem:[#allocation6] sm:$0x1]
    %164 = vadd.xlane.f32.xlu0 %v160
    %v165 = vpop.xlane.xlu0 %164
    %166 = vadd.xlane.f32.xlu0 %v161
    %v167 = vpop.xlane.xlu0 %166
    %v168 = vrcp.pop 128.0
    %v169 = vmul.f32 128.0, %v168
    %v170 = vsub.f32 1.0, %v169
    %v171 = vmul.f32 %v168, %v170
    %v172 = vadd.f32 %v168, %v171
    %vm173 = vweird.f32 %v168
    %v174 = vsel %vm173, %v168, %v172
    %v175 = vmul.f32 %v165, %v174
    %v176 = vmul.f32 %v167, %v174
    %v177 = vsub.f32 %v160, %v175
    %v178 = vsub.f32 %v161, %v176
    %v179 = vmul.f32 %v177, %v177
    %v180 = vmul.f32 %v178, %v178
    %181 = vadd.xlane.f32.xlu0 %v179
    %v182 = vpop.xlane.xlu0 %181
    %183 = vadd.xlane.f32.xlu0 %v180
    %v184 = vpop.xlane.xlu0 %183
    %v185 = vmul.f32 %v182, %v174
    %v186 = vmul.f32 %v184, %v174
    %v187 = vadd.f32 %v185, 1e-05
    %v188 = vadd.f32 %v186, 1e-05
    %v189 = vrsqrt.pop %v187
    %v190 = vmul.f32 %v189, %v187
    %v191 = vmul.f32 %v190, %v189
    %v192 = vmul.f32 0.5, %v191
    %v193 = vsub.f32 1.5, %v192
    %v194 = vmul.f32 %v189, %v193
    %vm195 = vweird.f32 %v187
    %vm196 = vweird.f32 %v189
    %vm197 = vmor %vm195, %vm196
    %v198 = vsel %vm197, %v189, %v194
    %v199 = vrsqrt.pop %v188
    %v200 = vmul.f32 %v199, %v188
    %v201 = vmul.f32 %v200, %v199
    %v202 = vmul.f32 0.5, %v201
    %v203 = vsub.f32 1.5, %v202
    %v204 = vmul.f32 %v199, %v203
    %vm205 = vweird.f32 %v188
    %vm206 = vweird.f32 %v199
    %vm207 = vmor %vm205, %vm206
    %v208 = vsel %vm207, %v199, %v204
    %v209 = vmul.f32 %v177, %v198
    %v210 = vmul.f32 %v178, %v208
    %v212 = vperm.slane %v162, 0
    %v214 = vmul.f32 %v209, %v212
    %v215 = vmul.f32 %v210, %v212
    %v217 = vperm.slane %v163, 0
    %v219 = vadd.f32 %v214, %v217
    %v220 = vadd.f32 %v215, %v217
    %v221 = vpack.c.bf16 %v219, %v219
    %v222 = vpack.c.bf16 %v220, %v220
    %223 = vst [vmem:[%s6] sm:$0xf] %v221
    %224 = vst [vmem:[%s6 + $0x4] sm:$0xf] %v222
    // Predicated region
    $region38: #{transformer_forward.39} parent=1 // pred_check
      _
    $region39: #{transformer_forward.39} parent=1 // pred_check_branch
      %226 = sbr.rel (0) target = $region41
    $region40: #{transformer_forward.39} parent=1 // pred_region
      _
    $region41: #{transformer_forward.39} parent=1 // pred_fallthru
      _
    // Predicated region
    $region42: #{transformer_forward.39} parent=1 // pred_check
      _
    $region43: #{transformer_forward.39} parent=1 // pred_check_branch
      %228 = sbr.rel (0) target = $region45
    $region44: #{transformer_forward.39} parent=1 // pred_region
      _
    $region45: #{transformer_forward.39} parent=1 // pred_fallthru
      _
    %229 = vsyncpa [#allocation3], 1
    %230 = vsyncpa [#allocation5], 1

// kernel: transformer_forward.43
$region0: #{transformer_forward.43}
  #allocation0 [shape = 'u32[]', space=smem, size = 0x4, offset = 0x4, fixed_abs, tag = 'smem constant byte address 0x4 - core index']
  #allocation1 [shape = 'u32[72,128]{1,0:T(1,128)}', space=vmem, size = 0x9000, scoped, tag = 'internal scratch']
  %s0 = inlined_call_operand.vmem [shape: bf16[16,128], index: 0, kind: input, shape index: {}]
  %s1 = inlined_call_operand.vmem [shape: bf16[128,128], index: 1, kind: input, shape index: {}]
  %s2 = inlined_call_operand.hbm [shape: f32[1,128], index: 2, kind: input, shape index: {}]
  %s3 = inlined_call_operand.vmem [shape: bf16[16,128], index: 3, kind: input, shape index: {}]
  %s4 = inlined_call_operand.hbm [shape: f32[1,128], index: 4, kind: input, shape index: {}]
  %s5 = inlined_call_operand.hbm [shape: f32[1,128], index: 5, kind: input, shape index: {}]
  %s6 = inlined_call_operand.vmem [shape: bf16[16,128], index: 6, kind: output, shape index: {}]
  %s7 = sld [smem:[#allocation0]]
  $region46: #{transformer_forward.43} parent=0
    _
  %s9 = ssub.s32 1, %s7
  %s10 = scalar_select 0, %s9, %s7
  $region1: #{transformer_forward.43} parent=0
    #allocation2 [shape = 'u8[512]{0}', space=vmem, size = 0x400, scoped, tag = 'input window, operand 2, single buffered']
    #allocation3 [shape = 's32[1]{0}', space=sflag, size = 0x4, scoped, tag = 'scoped memory for transformer_forward.43']
    #allocation4 [shape = 'u8[512]{0}', space=vmem, size = 0x400, scoped, tag = 'input window, operand 4, single buffered']
    #allocation5 [shape = 's32[1]{0}', space=sflag, size = 0x4, scoped, tag = 'scoped memory for transformer_forward.43']
    #allocation6 [shape = 'u8[512]{0}', space=vmem, size = 0x400, scoped, tag = 'input window, operand 5, single buffered']
    %11 = vsyncpa [#allocation3], 0
    %12 = vsyncpa [#allocation5], 0
    // Predicated region
    $region2: #{transformer_forward.43} parent=1 // pred_check
      _
    $region3: #{transformer_forward.43} parent=1 // pred_check_branch
      %14 = sbr.rel (0) target = $region5
    $region4: #{transformer_forward.43} parent=1 // pred_region
      _
    $region5: #{transformer_forward.43} parent=1 // pred_fallthru
      _
    // Predicated region
    $region6: #{transformer_forward.43} parent=1 // pred_check
      _
    $region7: #{transformer_forward.43} parent=1 // pred_check_branch
      %16 = sbr.rel (0) target = $region9
    $region8: #{transformer_forward.43} parent=1 // pred_region
      _
    $region9: #{transformer_forward.43} parent=1 // pred_fallthru
      _
    // Predicated region
    $region10: #{transformer_forward.43} parent=1 // pred_check
      _
    $region11: #{transformer_forward.43} parent=1 // pred_check_branch
      %18 = sbr.rel (0) target = $region13
    $region12: #{transformer_forward.43} parent=1 // pred_region
      %20 = vsyncadd [#allocation3], 0
      %s22 = sshll.u32 %s2, 4
      %s23 = int_to_ptr.hbm [resolvable:$true] %s22
      %s24 = sshll.u32 [#allocation2], 4
      %s25 = int_to_ptr.vmem [resolvable:$true] %s24
      %27 = dma.hbm_to_vmem [thread:$0]  %s23, 16, %s25, [#allocation3]
    $region13: #{transformer_forward.43} parent=1 // pred_fallthru
      _
    // Predicated region
    $region14: #{transformer_forward.43} parent=1 // pred_check
      _
    $region15: #{transformer_forward.43} parent=1 // pred_check_branch
      %29 = sbr.rel (0) target = $region17
    $region16: #{transformer_forward.43} parent=1 // pred_region
      _
    $region17: #{transformer_forward.43} parent=1 // pred_fallthru
      _
    // Predicated region
    $region18: #{transformer_forward.43} parent=1 // pred_check
      _
    $region19: #{transformer_forward.43} parent=1 // pred_check_branch
      %31 = sbr.rel (0) target = $region21
    $region20: #{transformer_forward.43} parent=1 // pred_region
      %33 = vsyncadd [#allocation5], 0
      %s35 = sshll.u32 %s4, 4
      %s36 = int_to_ptr.hbm [resolvable:$true] %s35
      %s37 = sshll.u32 [#allocation4], 4
      %s38 = int_to_ptr.vmem [resolvable:$true] %s37
      %40 = dma.hbm_to_vmem [thread:$0]  %s36, 16, %s38, [#allocation5]
    $region21: #{transformer_forward.43} parent=1 // pred_fallthru
      _
    // Predicated region
    $region22: #{transformer_forward.43} parent=1 // pred_check
      _
    $region23: #{transformer_forward.43} parent=1 // pred_check_branch
      %42 = sbr.rel (0) target = $region25
    $region24: #{transformer_forward.43} parent=1 // pred_region
      %44 = vsyncadd [#allocation5], 0
      %s46 = sshll.u32 %s5, 4
      %s47 = int_to_ptr.hbm [resolvable:$true] %s46
      %s48 = sshll.u32 [#allocation6], 4
      %s49 = int_to_ptr.vmem [resolvable:$true] %s48
      %51 = dma.hbm_to_vmem [thread:$0]  %s47, 16, %s49, [#allocation5]
    $region25: #{transformer_forward.43} parent=1 // pred_fallthru
      _
    // Predicated region
    $region26: #{transformer_forward.43} parent=1 // pred_check
      _
    $region27: #{transformer_forward.43} parent=1 // pred_check_branch
      %53 = sbr.rel (0) target = $region29
    $region28: #{transformer_forward.43} parent=1 // pred_region
      %55 = dma.done [#allocation3], 16
    $region29: #{transformer_forward.43} parent=1 // pred_fallthru
      _
    // Predicated region
    $region30: #{transformer_forward.43} parent=1 // pred_check
      _
    $region31: #{transformer_forward.43} parent=1 // pred_check_branch
      %57 = sbr.rel (0) target = $region33
    $region32: #{transformer_forward.43} parent=1 // pred_region
      %59 = dma.done [#allocation5], 16
    $region33: #{transformer_forward.43} parent=1 // pred_fallthru
      _
    // Predicated region
    $region34: #{transformer_forward.43} parent=1 // pred_check
      _
    $region35: #{transformer_forward.43} parent=1 // pred_check_branch
      %61 = sbr.rel (0) target = $region37
    $region36: #{transformer_forward.43} parent=1 // pred_region
      %63 = dma.done [#allocation5], 16
    $region37: #{transformer_forward.43} parent=1 // pred_fallthru
      _
    %v64 = vld [vmem:[%s0] sm:$0xf]
    %v65 = vld [vmem:[%s0 + $0x4] sm:$0xf]
    %v66 = vld [vmem:[%s1] sm:$0xf]
    %v67 = vld [vmem:[%s1 + $0x4] sm:$0xf]
    %v68 = vld [vmem:[%s1 + $0x8] sm:$0xf]
    %v69 = vld [vmem:[%s1 + $0xc] sm:$0xf]
    %v70 = vld [vmem:[%s1 + $0x10] sm:$0xf]
    %v71 = vld [vmem:[%s1 + $0x14] sm:$0xf]
    %v72 = vld [vmem:[%s1 + $0x18] sm:$0xf]
    %v73 = vld [vmem:[%s1 + $0x1c] sm:$0xf]
    %v74 = vld [vmem:[%s1 + $0x20] sm:$0xf]
    %v75 = vld [vmem:[%s1 + $0x24] sm:$0xf]
    %v76 = vld [vmem:[%s1 + $0x28] sm:$0xf]
    %v77 = vld [vmem:[%s1 + $0x2c] sm:$0xf]
    %v78 = vld [vmem:[%s1 + $0x30] sm:$0xf]
    %v79 = vld [vmem:[%s1 + $0x34] sm:$0xf]
    %v80 = vld [vmem:[%s1 + $0x38] sm:$0xf]
    %v81 = vld [vmem:[%s1 + $0x3c] sm:$0xf]
    %v82 = vld [vmem:[#allocation2] sm:$0x1]
    %v84 = vperm.slane %v82, 0
    %v88 = vunpack.c.l.b16 %v64
    %v89 = vunpack.c.l.b16 %v65
    %v90 = vpack.c.b16 %v89, %v88
    %v108 = vunpack.c.l.b16 %v66
    %v109 = vunpack.c.l.b16 %v67
    %v110 = vunpack.c.l.b16 %v68
    %v111 = vunpack.c.l.b16 %v69
    %v112 = vunpack.c.l.b16 %v70
    %v113 = vunpack.c.l.b16 %v71
    %v114 = vunpack.c.l.b16 %v72
    %v115 = vunpack.c.l.b16 %v73
    %v116 = vunpack.c.l.b16 %v74
    %v117 = vunpack.c.l.b16 %v75
    %v118 = vunpack.c.l.b16 %v76
    %v119 = vunpack.c.l.b16 %v77
    %v120 = vunpack.c.l.b16 %v78
    %v121 = vunpack.c.l.b16 %v79
    %v122 = vunpack.c.l.b16 %v80
    %v123 = vunpack.c.l.b16 %v81
    %v124 = vpack.c.b16 %v109, %v108
    %v125 = vpack.c.b16 %v111, %v110
    %v126 = vpack.c.b16 %v113, %v112
    %v127 = vpack.c.b16 %v115, %v114
    %v128 = vpack.c.b16 %v117, %v116
    %v129 = vpack.c.b16 %v119, %v118
    %v130 = vpack.c.b16 %v121, %v120
    %v131 = vpack.c.b16 %v123, %v122
    %140 = vmatpush.bf16.msra.mxu0 %v131
    %141 = vmatpush.bf16.msra.mxu0 %v130
    %142 = vmatpush.bf16.msra.mxu0 %v129
    %143 = vmatpush.bf16.msra.mxu0 %v128
    %144 = vmatpush.bf16.msra.mxu0 %v127
    %145 = vmatpush.bf16.msra.mxu0 %v126
    %146 = vmatpush.bf16.msra.mxu0 %v125
    %147 = vmatpush.bf16.msra.mxu0 %v124
    %148 = vmatmul.bf16.gmra.mxu0 %v90
    %v149 = vpop.f32.mrf.mxu0
    %v150 = vadd.f32 %v84, %v149
    %v151 = vpop.f32.mrf.mxu0
    %v152 = vadd.f32 %v84, %v151
    %153 = vdwg.mxu0
    %v154 = vld [vmem:[%s3] sm:$0xf]
    %v155 = vld [vmem:[%s3 + $0x4] sm:$0xf]
    %v156 = vunpack.c.l.bf16 %v154
    %v157 = vunpack.c.l.bf16 %v155
    %v158 = vadd.f32 %v150, %v156
    %v159 = vadd.f32 %v152, %v157
    %v160 = vld [vmem:[#allocation4] sm:$0x1]
    %v161 = vld [vmem:[#allocation6] sm:$0x1]
    %162 = vadd.xlane.f32.xlu0 %v158
    %v163 = vpop.xlane.xlu0 %162
    %164 = vadd.xlane.f32.xlu0 %v159
    %v165 = vpop.xlane.xlu0 %164
    %v166 = vrcp.pop 128.0
    %v167 = vmul.f32 128.0, %v166
    %v168 = vsub.f32 1.0, %v167
    %v169 = vmul.f32 %v166, %v168
    %v170 = vadd.f32 %v166, %v169
    %vm171 = vweird.f32 %v166
    %v172 = vsel %vm171, %v166, %v170
    %v173 = vmul.f32 %v163, %v172
    %v174 = vmul.f32 %v165, %v172
    %v175 = vsub.f32 %v158, %v173
    %v176 = vsub.f32 %v159, %v174
    %v177 = vmul.f32 %v175, %v175
    %v178 = vmul.f32 %v176, %v176
    %179 = vadd.xlane.f32.xlu0 %v177
    %v180 = vpop.xlane.xlu0 %179
    %181 = vadd.xlane.f32.xlu0 %v178
    %v182 = vpop.xlane.xlu0 %181
    %v183 = vmul.f32 %v180, %v172
    %v184 = vmul.f32 %v182, %v172
    %v185 = vadd.f32 %v183, 1e-05
    %v186 = vadd.f32 %v184, 1e-05
    %v187 = vrsqrt.pop %v185
    %v188 = vmul.f32 %v187, %v185
    %v189 = vmul.f32 %v188, %v187
    %v190 = vmul.f32 0.5, %v189
    %v191 = vsub.f32 1.5, %v190
    %v192 = vmul.f32 %v187, %v191
    %vm193 = vweird.f32 %v185
    %vm194 = vweird.f32 %v187
    %vm195 = vmor %vm193, %vm194
    %v196 = vsel %vm195, %v187, %v192
    %v197 = vrsqrt.pop %v186
    %v198 = vmul.f32 %v197, %v186
    %v199 = vmul.f32 %v198, %v197
    %v200 = vmul.f32 0.5, %v199
    %v201 = vsub.f32 1.5, %v200
    %v202 = vmul.f32 %v197, %v201
    %vm203 = vweird.f32 %v186
    %vm204 = vweird.f32 %v197
    %vm205 = vmor %vm203, %vm204
    %v206 = vsel %vm205, %v197, %v202
    %v207 = vmul.f32 %v175, %v196
    %v208 = vmul.f32 %v176, %v206
    %v210 = vperm.slane %v160, 0
    %v212 = vmul.f32 %v207, %v210
    %v213 = vmul.f32 %v208, %v210
    %v215 = vperm.slane %v161, 0
    %v217 = vadd.f32 %v212, %v215
    %v218 = vadd.f32 %v213, %v215
    %v219 = vpack.c.bf16 %v217, %v217
    %v220 = vpack.c.bf16 %v218, %v218
    %221 = vst [vmem:[%s6] sm:$0xf] %v219
    %222 = vst [vmem:[%s6 + $0x4] sm:$0xf] %v220
    // Predicated region
    $region38: #{transformer_forward.43} parent=1 // pred_check
      _
    $region39: #{transformer_forward.43} parent=1 // pred_check_branch
      %224 = sbr.rel (0) target = $region41
    $region40: #{transformer_forward.43} parent=1 // pred_region
      _
    $region41: #{transformer_forward.43} parent=1 // pred_fallthru
      _
    // Predicated region
    $region42: #{transformer_forward.43} parent=1 // pred_check
      _
    $region43: #{transformer_forward.43} parent=1 // pred_check_branch
      %226 = sbr.rel (0) target = $region45
    $region44: #{transformer_forward.43} parent=1 // pred_region
      _
    $region45: #{transformer_forward.43} parent=1 // pred_fallthru
      _
    %227 = vsyncpa [#allocation3], 1
    %228 = vsyncpa [#allocation5], 1

// kernel: transformer_forward.44
$region0: #{transformer_forward.44}
  #allocation0 [shape = 'u32[]', space=smem, size = 0x4, offset = 0x4, fixed_abs, tag = 'smem constant byte address 0x4 - core index']
  #allocation1 [shape = 'u32[72,128]{1,0:T(1,128)}', space=vmem, size = 0x9000, scoped, tag = 'internal scratch']
  %s0 = inlined_call_operand.vmem [shape: bf16[16,128], index: 0, kind: input, shape index: {}]
  %s1 = inlined_call_operand.hbm [shape: bf16[128,128], index: 1, kind: input, shape index: {}]
  %s2 = inlined_call_operand.hbm [shape: f32[1,128], index: 2, kind: input, shape index: {}]
  %s3 = inlined_call_operand.vmem [shape: bf16[16,128], index: 3, kind: output, shape index: {}]
  %s4 = sld [smem:[#allocation0]]
  $region30: #{transformer_forward.44} parent=0
    _
  %s6 = ssub.s32 1, %s4
  %s7 = scalar_select 0, %s6, %s4
  $region1: #{transformer_forward.44} parent=0
    #allocation2 [shape = 'u8[32768]{0}', space=vmem, size = 0x8000, scoped, tag = 'input window, operand 1, single buffered']
    #allocation3 [shape = 's32[1]{0}', space=sflag, size = 0x4, scoped, tag = 'scoped memory for transformer_forward.44']
    #allocation4 [shape = 'u8[512]{0}', space=vmem, size = 0x400, scoped, tag = 'input window, operand 2, single buffered']
    #allocation5 [shape = 's32[1]{0}', space=sflag, size = 0x4, scoped, tag = 'scoped memory for transformer_forward.44']
    %8 = vsyncpa [#allocation3], 0
    %9 = vsyncpa [#allocation5], 0
    // Predicated region
    $region2: #{transformer_forward.44} parent=1 // pred_check
      _
    $region3: #{transformer_forward.44} parent=1 // pred_check_branch
      %11 = sbr.rel (0) target = $region5
    $region4: #{transformer_forward.44} parent=1 // pred_region
      _
    $region5: #{transformer_forward.44} parent=1 // pred_fallthru
      _
    // Predicated region
    $region6: #{transformer_forward.44} parent=1 // pred_check
      _
    $region7: #{transformer_forward.44} parent=1 // pred_check_branch
      %13 = sbr.rel (0) target = $region9
    $region8: #{transformer_forward.44} parent=1 // pred_region
      %15 = vsyncadd [#allocation3], 0
      %s16 = sshll.u32 %s1, 4
      %s17 = int_to_ptr.hbm [resolvable:$true] %s16
      %s18 = sshll.u32 [#allocation2], 4
      %s19 = int_to_ptr.vmem [resolvable:$true] %s18
      %24 = dma.hbm_to_vmem [thread:$0]  %s17, 1024, %s19, [#allocation3], 64, 64, 4
    $region9: #{transformer_forward.44} parent=1 // pred_fallthru
      _
    // Predicated region
    $region10: #{transformer_forward.44} parent=1 // pred_check
      _
    $region11: #{transformer_forward.44} parent=1 // pred_check_branch
      %26 = sbr.rel (0) target = $region13
    $region12: #{transformer_forward.44} parent=1 // pred_region
      %28 = vsyncadd [#allocation5], 0
      %s30 = sshll.u32 %s2, 4
      %s31 = int_to_ptr.hbm [resolvable:$true] %s30
      %s32 = sshll.u32 [#allocation4], 4
      %s33 = int_to_ptr.vmem [resolvable:$true] %s32
      %35 = dma.hbm_to_vmem [thread:$0]  %s31, 16, %s33, [#allocation5]
    $region13: #{transformer_forward.44} parent=1 // pred_fallthru
      _
    // Predicated region
    $region14: #{transformer_forward.44} parent=1 // pred_check
      _
    $region15: #{transformer_forward.44} parent=1 // pred_check_branch
      %37 = sbr.rel (0) target = $region17
    $region16: #{transformer_forward.44} parent=1 // pred_region
      %39 = dma.done [#allocation3], 1024
    $region17: #{transformer_forward.44} parent=1 // pred_fallthru
      _
    // Predicated region
    $region18: #{transformer_forward.44} parent=1 // pred_check
      _
    $region19: #{transformer_forward.44} parent=1 // pred_check_branch
      %41 = sbr.rel (0) target = $region21
    $region20: #{transformer_forward.44} parent=1 // pred_region
      %43 = dma.done [#allocation5], 16
    $region21: #{transformer_forward.44} parent=1 // pred_fallthru
      _
    %v44 = vld [vmem:[%s0] sm:$0xf]
    %v45 = vld [vmem:[%s0 + $0x4] sm:$0xf]
    %v46 = vld [vmem:[#allocation2] sm:$0xf]
    %v47 = vld [vmem:[#allocation2 + $0x4] sm:$0xf]
    %v48 = vld [vmem:[#allocation2 + $0x8] sm:$0xf]
    %v49 = vld [vmem:[#allocation2 + $0xc] sm:$0xf]
    %v50 = vld [vmem:[#allocation2 + $0x10] sm:$0xf]
    %v51 = vld [vmem:[#allocation2 + $0x14] sm:$0xf]
    %v52 = vld [vmem:[#allocation2 + $0x18] sm:$0xf]
    %v53 = vld [vmem:[#allocation2 + $0x1c] sm:$0xf]
    %v54 = vld [vmem:[#allocation2 + $0x20] sm:$0xf]
    %v55 = vld [vmem:[#allocation2 + $0x24] sm:$0xf]
    %v56 = vld [vmem:[#allocation2 + $0x28] sm:$0xf]
    %v57 = vld [vmem:[#allocation2 + $0x2c] sm:$0xf]
    %v58 = vld [vmem:[#allocation2 + $0x30] sm:$0xf]
    %v59 = vld [vmem:[#allocation2 + $0x34] sm:$0xf]
    %v60 = vld [vmem:[#allocation2 + $0x38] sm:$0xf]
    %v61 = vld [vmem:[#allocation2 + $0x3c] sm:$0xf]
    %v62 = vld [vmem:[#allocation4] sm:$0x1]
    %v64 = vperm.slane %v62, 0
    %v68 = vunpack.c.l.b16 %v44
    %v69 = vunpack.c.l.b16 %v45
    %v70 = vpack.c.b16 %v69, %v68
    %v88 = vunpack.c.l.b16 %v46
    %v89 = vunpack.c.l.b16 %v47
    %v90 = vunpack.c.l.b16 %v48
    %v91 = vunpack.c.l.b16 %v49
    %v92 = vunpack.c.l.b16 %v50
    %v93 = vunpack.c.l.b16 %v51
    %v94 = vunpack.c.l.b16 %v52
    %v95 = vunpack.c.l.b16 %v53
    %v96 = vunpack.c.l.b16 %v54
    %v97 = vunpack.c.l.b16 %v55
    %v98 = vunpack.c.l.b16 %v56
    %v99 = vunpack.c.l.b16 %v57
    %v100 = vunpack.c.l.b16 %v58
    %v101 = vunpack.c.l.b16 %v59
    %v102 = vunpack.c.l.b16 %v60
    %v103 = vunpack.c.l.b16 %v61
    %v104 = vpack.c.b16 %v89, %v88
    %v105 = vpack.c.b16 %v91, %v90
    %v106 = vpack.c.b16 %v93, %v92
    %v107 = vpack.c.b16 %v95, %v94
    %v108 = vpack.c.b16 %v97, %v96
    %v109 = vpack.c.b16 %v99, %v98
    %v110 = vpack.c.b16 %v101, %v100
    %v111 = vpack.c.b16 %v103, %v102
    %120 = vmatpush.bf16.msra.mxu0 %v111
    %121 = vmatpush.bf16.msra.mxu0 %v110
    %122 = vmatpush.bf16.msra.mxu0 %v109
    %123 = vmatpush.bf16.msra.mxu0 %v108
    %124 = vmatpush.bf16.msra.mxu0 %v107
    %125 = vmatpush.bf16.msra.mxu0 %v106
    %126 = vmatpush.bf16.msra.mxu0 %v105
    %127 = vmatpush.bf16.msra.mxu0 %v104
    %128 = vmatmul.bf16.gmra.mxu0 %v70
    %v129 = vpop.f32.mrf.mxu0
    %v130 = vadd.f32 %v64, %v129
    %v131 = vpop.f32.mrf.mxu0
    %v132 = vadd.f32 %v64, %v131
    %133 = vdwg.mxu0
    %v134 = vpack.c.bf16 %v130, %v130
    %v135 = vpack.c.bf16 %v132, %v132
    %136 = vst [vmem:[%s3] sm:$0xf] %v134
    %137 = vst [vmem:[%s3 + $0x4] sm:$0xf] %v135
    // Predicated region
    $region22: #{transformer_forward.44} parent=1 // pred_check
      _
    $region23: #{transformer_forward.44} parent=1 // pred_check_branch
      %139 = sbr.rel (0) target = $region25
    $region24: #{transformer_forward.44} parent=1 // pred_region
      _
    $region25: #{transformer_forward.44} parent=1 // pred_fallthru
      _
    // Predicated region
    $region26: #{transformer_forward.44} parent=1 // pred_check
      _
    $region27: #{transformer_forward.44} parent=1 // pred_check_branch
      %141 = sbr.rel (0) target = $region29
    $region28: #{transformer_forward.44} parent=1 // pred_region
      _
    $region29: #{transformer_forward.44} parent=1 // pred_fallthru
      _
    %142 = vsyncpa [#allocation3], 1
    %143 = vsyncpa [#allocation5], 1

// kernel: transformer_forward.40
$region0: #{transformer_forward.40}
  #allocation0 [shape = 'u32[]', space=smem, size = 0x4, offset = 0x4, fixed_abs, tag = 'smem constant byte address 0x4 - core index']
  #allocation1 [shape = 'u32[72,128]{1,0:T(1,128)}', space=vmem, size = 0x9000, scoped, tag = 'internal scratch']
  #allocation2 [shape = 'f32[16,128]{1,0:T(8,128)}', space=vmem, size = 0x2000, scoped, tag = 'scratch operand']
  %s0 = inlined_call_operand.vmem [shape: bf16[16,128], index: 0, kind: input, shape index: {}]
  %s1 = inlined_call_operand.hbm [shape: bf16[128,256], index: 1, kind: input, shape index: {}]
  %s2 = inlined_call_operand.vmem [shape: f32[1,256], index: 2, kind: input, shape index: {}]
  %s3 = inlined_call_operand.hbm [shape: bf16[256,128], index: 3, kind: input, shape index: {}]
  %s4 = inlined_call_operand.hbm [shape: f32[1,128], index: 4, kind: input, shape index: {}]
  %s5 = inlined_call_operand.hbm [shape: f32[1,128], index: 5, kind: input, shape index: {}]
  %s6 = inlined_call_operand.hbm [shape: f32[1,128], index: 6, kind: input, shape index: {}]
  %s7 = inlined_call_operand.vmem [shape: bf16[16,128], index: 7, kind: output, shape index: {}]
  %s8 = sld [smem:[#allocation0]]
  $region66: #{transformer_forward.40} parent=0
    _
  %s10 = ssub.s32 1, %s8
  %s11 = scalar_select 0, %s10, %s8
  $region1: #{transformer_forward.40} parent=0
    #allocation3 [shape = 'u8[65536]{0}', space=vmem, size = 0x10000, scoped, tag = 'input window, operand 1, single buffered']
    #allocation4 [shape = 's32[1]{0}', space=sflag, size = 0x4, scoped, tag = 'scoped memory for transformer_forward.40']
    #allocation5 [shape = 'u8[65536]{0}', space=vmem, size = 0x10000, scoped, tag = 'input window, operand 3, single buffered']
    #allocation6 [shape = 's32[1]{0}', space=sflag, size = 0x4, scoped, tag = 'scoped memory for transformer_forward.40']
    #allocation7 [shape = 'u8[512]{0}', space=vmem, size = 0x400, scoped, tag = 'input window, operand 4, single buffered']
    #allocation8 [shape = 'u8[512]{0}', space=vmem, size = 0x400, scoped, tag = 'input window, operand 5, single buffered']
    #allocation9 [shape = 's32[1]{0}', space=sflag, size = 0x4, scoped, tag = 'scoped memory for transformer_forward.40']
    #allocation10 [shape = 'u8[512]{0}', space=vmem, size = 0x400, scoped, tag = 'input window, operand 6, single buffered']
    %12 = vsyncpa [#allocation4], 0
    %13 = vsyncpa [#allocation6], 0
    %14 = vsyncpa [#allocation9], 0
    // Predicated region
    $region2: #{transformer_forward.40} parent=1 // pred_check
      _
    $region3: #{transformer_forward.40} parent=1 // pred_check_branch
      %16 = sbr.rel (0) target = $region5
    $region4: #{transformer_forward.40} parent=1 // pred_region
      _
    $region5: #{transformer_forward.40} parent=1 // pred_fallthru
      _
    // Predicated region
    $region6: #{transformer_forward.40} parent=1 // pred_check
      _
    $region7: #{transformer_forward.40} parent=1 // pred_check_branch
      %18 = sbr.rel (0) target = $region9
    $region8: #{transformer_forward.40} parent=1 // pred_region
      %20 = vsyncadd [#allocation4], 0
      %s21 = sshll.u32 %s1, 4
      %s22 = int_to_ptr.hbm [resolvable:$true] %s21
      %s23 = sshll.u32 [#allocation3], 4
      %s24 = int_to_ptr.vmem [resolvable:$true] %s23
      %29 = dma.hbm_to_vmem [thread:$0]  %s22, 2048, %s24, [#allocation4], 128, 128, 8
    $region9: #{transformer_forward.40} parent=1 // pred_fallthru
      _
    // Predicated region
    $region10: #{transformer_forward.40} parent=1 // pred_check
      _
    $region11: #{transformer_forward.40} parent=1 // pred_check_branch
      %31 = sbr.rel (0) target = $region13
    $region12: #{transformer_forward.40} parent=1 // pred_region
      _
    $region13: #{transformer_forward.40} parent=1 // pred_fallthru
      _
    // Predicated region
    $region14: #{transformer_forward.40} parent=1 // pred_check
      _
    $region15: #{transformer_forward.40} parent=1 // pred_check_branch
      %33 = sbr.rel (0) target = $region17
    $region16: #{transformer_forward.40} parent=1 // pred_region
      %35 = vsyncadd [#allocation6], 0
      %s36 = sshll.u32 %s3, 4
      %s37 = int_to_ptr.hbm [resolvable:$true] %s36
      %s38 = sshll.u32 [#allocation5], 4
      %s39 = int_to_ptr.vmem [resolvable:$true] %s38
      %44 = dma.hbm_to_vmem [thread:$0]  %s37, 2048, %s39, [#allocation6], 64, 64, 4
    $region17: #{transformer_forward.40} parent=1 // pred_fallthru
      _
    // Predicated region
    $region18: #{transformer_forward.40} parent=1 // pred_check
      _
    $region19: #{transformer_forward.40} parent=1 // pred_check_branch
      %46 = sbr.rel (0) target = $region21
    $region20: #{transformer_forward.40} parent=1 // pred_region
      %48 = vsyncadd [#allocation6], 0
      %s50 = sshll.u32 %s4, 4
      %s51 = int_to_ptr.hbm [resolvable:$true] %s50
      %s52 = sshll.u32 [#allocation7], 4
      %s53 = int_to_ptr.vmem [resolvable:$true] %s52
      %55 = dma.hbm_to_vmem [thread:$0]  %s51, 16, %s53, [#allocation6]
    $region21: #{transformer_forward.40} parent=1 // pred_fallthru
      _
    // Predicated region
    $region22: #{transformer_forward.40} parent=1 // pred_check
      _
    $region23: #{transformer_forward.40} parent=1 // pred_check_branch
      %57 = sbr.rel (0) target = $region25
    $region24: #{transformer_forward.40} parent=1 // pred_region
      %59 = vsyncadd [#allocation9], 0
      %s61 = sshll.u32 %s5, 4
      %s62 = int_to_ptr.hbm [resolvable:$true] %s61
      %s63 = sshll.u32 [#allocation8], 4
      %s64 = int_to_ptr.vmem [resolvable:$true] %s63
      %66 = dma.hbm_to_vmem [thread:$0]  %s62, 16, %s64, [#allocation9]
    $region25: #{transformer_forward.40} parent=1 // pred_fallthru
      _
    // Predicated region
    $region26: #{transformer_forward.40} parent=1 // pred_check
      _
    $region27: #{transformer_forward.40} parent=1 // pred_check_branch
      %68 = sbr.rel (0) target = $region29
    $region28: #{transformer_forward.40} parent=1 // pred_region
      %70 = vsyncadd [#allocation9], 0
      %s72 = sshll.u32 %s6, 4
      %s73 = int_to_ptr.hbm [resolvable:$true] %s72
      %s74 = sshll.u32 [#allocation10], 4
      %s75 = int_to_ptr.vmem [resolvable:$true] %s74
      %77 = dma.hbm_to_vmem [thread:$0]  %s73, 16, %s75, [#allocation9]
    $region29: #{transformer_forward.40} parent=1 // pred_fallthru
      _
    // Predicated region
    $region30: #{transformer_forward.40} parent=1 // pred_check
      _
    $region31: #{transformer_forward.40} parent=1 // pred_check_branch
      %79 = sbr.rel (0) target = $region33
    $region32: #{transformer_forward.40} parent=1 // pred_region
      %81 = dma.done [#allocation4], 2048
    $region33: #{transformer_forward.40} parent=1 // pred_fallthru
      _
    // Predicated region
    $region34: #{transformer_forward.40} parent=1 // pred_check
      _
    $region35: #{transformer_forward.40} parent=1 // pred_check_branch
      %83 = sbr.rel (0) target = $region37
    $region36: #{transformer_forward.40} parent=1 // pred_region
      %85 = dma.done [#allocation6], 2048
    $region37: #{transformer_forward.40} parent=1 // pred_fallthru
      _
    // Predicated region
    $region38: #{transformer_forward.40} parent=1 // pred_check
      _
    $region39: #{transformer_forward.40} parent=1 // pred_check_branch
      %87 = sbr.rel (0) target = $region41
    $region40: #{transformer_forward.40} parent=1 // pred_region
      %89 = dma.done [#allocation6], 16
    $region41: #{transformer_forward.40} parent=1 // pred_fallthru
      _
    // Predicated region
    $region42: #{transformer_forward.40} parent=1 // pred_check
      _
    $region43: #{transformer_forward.40} parent=1 // pred_check_branch
      %91 = sbr.rel (0) target = $region45
    $region44: #{transformer_forward.40} parent=1 // pred_region
      %93 = dma.done [#allocation9], 16
    $region45: #{transformer_forward.40} parent=1 // pred_fallthru
      _
    // Predicated region
    $region46: #{transformer_forward.40} parent=1 // pred_check
      _
    $region47: #{transformer_forward.40} parent=1 // pred_check_branch
      %95 = sbr.rel (0) target = $region49
    $region48: #{transformer_forward.40} parent=1 // pred_region
      %97 = dma.done [#allocation9], 16
    $region49: #{transformer_forward.40} parent=1 // pred_fallthru
      _
    %p98 = scmp.eq.s32.totalorder 0, 0
    // Predicated region
    $region50: #{transformer_forward.40} parent=1 // pred_check
      %p99 = pneg %p98
    $region51: #{transformer_forward.40} parent=1 // pred_check_branch
      %101 = sbr.rel (%p99) target = $region53
    $region52: #{transformer_forward.40} parent=1 // pred_region
      %v102 = vld [vmem:[#allocation7] sm:$0x1]
      %v104 = vperm.slane %v102, 0
      %106 = vst [vmem:[#allocation2] sm:$0xff] %v104
      %107 = vst [vmem:[#allocation2 + $0x8] sm:$0xff] %v104
    $region53: #{transformer_forward.40} parent=1 // pred_fallthru
      _
    %v108 = vld [vmem:[%s0] sm:$0xf]
    %v109 = vld [vmem:[%s0 + $0x4] sm:$0xf]
    %v110 = vld [vmem:[#allocation3] sm:$0xff]
    %v111 = vld [vmem:[#allocation3 + $0x8] sm:$0xff]
    %v112 = vld [vmem:[#allocation3 + $0x10] sm:$0xff]
    %v113 = vld [vmem:[#allocation3 + $0x18] sm:$0xff]
    %v114 = vld [vmem:[#allocation3 + $0x20] sm:$0xff]
    %v115 = vld [vmem:[#allocation3 + $0x28] sm:$0xff]
    %v116 = vld [vmem:[#allocation3 + $0x30] sm:$0xff]
    %v117 = vld [vmem:[#allocation3 + $0x38] sm:$0xff]
    %v118 = vld [vmem:[#allocation3 + $0x40] sm:$0xff]
    %v119 = vld [vmem:[#allocation3 + $0x48] sm:$0xff]
    %v120 = vld [vmem:[#allocation3 + $0x50] sm:$0xff]
    %v121 = vld [vmem:[#allocation3 + $0x58] sm:$0xff]
    %v122 = vld [vmem:[#allocation3 + $0x60] sm:$0xff]
    %v123 = vld [vmem:[#allocation3 + $0x68] sm:$0xff]
    %v124 = vld [vmem:[#allocation3 + $0x70] sm:$0xff]
    %v125 = vld [vmem:[#allocation3 + $0x78] sm:$0xff]
    %v126 = vld [vmem:[%s2] sm:$0x3]
    %v128 = vperm.slane %v126, 0
    %v129 = vperm.slane %v126, 1
    %v134 = vunpack.c.l.b16 %v108
    %v135 = vunpack.c.l.b16 %v109
    %v136 = vpack.c.b16 %v135, %v134
    %v154 = vunpack.c.l.b16 %v110
    %v155 = vunpack.c.h.b16 %v110
    %v156 = vunpack.c.l.b16 %v111
    %v157 = vunpack.c.h.b16 %v111
    %v158 = vunpack.c.l.b16 %v112
    %v159 = vunpack.c.h.b16 %v112
    %v160 = vunpack.c.l.b16 %v113
    %v161 = vunpack.c.h.b16 %v113
    %v162 = vunpack.c.l.b16 %v114
    %v163 = vunpack.c.h.b16 %v114
    %v164 = vunpack.c.l.b16 %v115
    %v165 = vunpack.c.h.b16 %v115
    %v166 = vunpack.c.l.b16 %v116
    %v167 = vunpack.c.h.b16 %v116
    %v168 = vunpack.c.l.b16 %v117
    %v169 = vunpack.c.h.b16 %v117
    %v170 = vunpack.c.l.b16 %v118
    %v171 = vunpack.c.h.b16 %v118
    %v172 = vunpack.c.l.b16 %v119
    %v173 = vunpack.c.h.b16 %v119
    %v174 = vunpack.c.l.b16 %v120
    %v175 = vunpack.c.h.b16 %v120
    %v176 = vunpack.c.l.b16 %v121
    %v177 = vunpack.c.h.b16 %v121
    %v178 = vunpack.c.l.b16 %v122
    %v179 = vunpack.c.h.b16 %v122
    %v180 = vunpack.c.l.b16 %v123
    %v181 = vunpack.c.h.b16 %v123
    %v182 = vunpack.c.l.b16 %v124
    %v183 = vunpack.c.h.b16 %v124
    %v184 = vunpack.c.l.b16 %v125
    %v185 = vunpack.c.h.b16 %v125
    %v186 = vpack.c.b16 %v156, %v154
    %v187 = vpack.c.b16 %v157, %v155
    %v188 = vpack.c.b16 %v160, %v158
    %v189 = vpack.c.b16 %v161, %v159
    %v190 = vpack.c.b16 %v164, %v162
    %v191 = vpack.c.b16 %v165, %v163
    %v192 = vpack.c.b16 %v168, %v166
    %v193 = vpack.c.b16 %v169, %v167
    %v194 = vpack.c.b16 %v172, %v170
    %v195 = vpack.c.b16 %v173, %v171
    %v196 = vpack.c.b16 %v176, %v174
    %v197 = vpack.c.b16 %v177, %v175
    %v198 = vpack.c.b16 %v180, %v178
    %v199 = vpack.c.b16 %v181, %v179
    %v200 = vpack.c.b16 %v184, %v182
    %v201 = vpack.c.b16 %v185, %v183
    %218 = vmatpush.bf16.msra.mxu0 %v200
    %219 = vmatpush.bf16.msra.mxu0 %v198
    %220 = vmatpush.bf16.msra.mxu0 %v196
    %221 = vmatpush.bf16.msra.mxu0 %v194
    %222 = vmatpush.bf16.msra.mxu0 %v192
    %223 = vmatpush.bf16.msra.mxu0 %v190
    %224 = vmatpush.bf16.msra.mxu0 %v188
    %225 = vmatpush.bf16.msra.mxu0 %v186
    %226 = vmatmul.bf16.gmra.mxu0 %v136
    %v227 = vpop.f32.mrf.mxu0
    %v228 = vadd.f32 %v128, %v227
    %v229 = vpop.f32.mrf.mxu0
    %v230 = vadd.f32 %v128, %v229
    %231 = vdwg.mxu0
    %232 = vmatpush.bf16.msra.mxu0 %v201
    %233 = vmatpush.bf16.msra.mxu0 %v199
    %234 = vmatpush.bf16.msra.mxu0 %v197
    %235 = vmatpush.bf16.msra.mxu0 %v195
    %236 = vmatpush.bf16.msra.mxu0 %v193
    %237 = vmatpush.bf16.msra.mxu0 %v191
    %238 = vmatpush.bf16.msra.mxu0 %v189
    %239 = vmatpush.bf16.msra.mxu0 %v187
    %240 = vmatmul.bf16.gmra.mxu0 %v136
    %v241 = vpop.f32.mrf.mxu0
    %v242 = vadd.f32 %v129, %v241
    %v243 = vpop.f32.mrf.mxu0
    %v244 = vadd.f32 %v129, %v243
    %245 = vdwg.mxu0
    %v246 = vmax.f32 %v228, 0.0
    %v247 = vmax.f32 %v242, 0.0
    %v248 = vmax.f32 %v230, 0.0
    %v249 = vmax.f32 %v244, 0.0
    %v250 = vpack.c.bf16 %v248, %v246
    %v251 = vpack.c.bf16 %v249, %v247
    %v252 = vld [vmem:[#allocation2] sm:$0xff]
    %v253 = vld [vmem:[#allocation2 + $0x8] sm:$0xff]
    %v254 = vld [vmem:[#allocation5] sm:$0xf]
    %v255 = vld [vmem:[#allocation5 + $0x4] sm:$0xf]
    %v256 = vld [vmem:[#allocation5 + $0x8] sm:$0xf]
    %v257 = vld [vmem:[#allocation5 + $0xc] sm:$0xf]
    %v258 = vld [vmem:[#allocation5 + $0x10] sm:$0xf]
    %v259 = vld [vmem:[#allocation5 + $0x14] sm:$0xf]
    %v260 = vld [vmem:[#allocation5 + $0x18] sm:$0xf]
    %v261 = vld [vmem:[#allocation5 + $0x1c] sm:$0xf]
    %v262 = vld [vmem:[#allocation5 + $0x20] sm:$0xf]
    %v263 = vld [vmem:[#allocation5 + $0x24] sm:$0xf]
    %v264 = vld [vmem:[#allocation5 + $0x28] sm:$0xf]
    %v265 = vld [vmem:[#allocation5 + $0x2c] sm:$0xf]
    %v266 = vld [vmem:[#allocation5 + $0x30] sm:$0xf]
    %v267 = vld [vmem:[#allocation5 + $0x34] sm:$0xf]
    %v268 = vld [vmem:[#allocation5 + $0x38] sm:$0xf]
    %v269 = vld [vmem:[#allocation5 + $0x3c] sm:$0xf]
    %v270 = vld [vmem:[#allocation5 + $0x40] sm:$0xf]
    %v271 = vld [vmem:[#allocation5 + $0x44] sm:$0xf]
    %v272 = vld [vmem:[#allocation5 + $0x48] sm:$0xf]
    %v273 = vld [vmem:[#allocation5 + $0x4c] sm:$0xf]
    %v274 = vld [vmem:[#allocation5 + $0x50] sm:$0xf]
    %v275 = vld [vmem:[#allocation5 + $0x54] sm:$0xf]
    %v276 = vld [vmem:[#allocation5 + $0x58] sm:$0xf]
    %v277 = vld [vmem:[#allocation5 + $0x5c] sm:$0xf]
    %v278 = vld [vmem:[#allocation5 + $0x60] sm:$0xf]
    %v279 = vld [vmem:[#allocation5 + $0x64] sm:$0xf]
    %v280 = vld [vmem:[#allocation5 + $0x68] sm:$0xf]
    %v281 = vld [vmem:[#allocation5 + $0x6c] sm:$0xf]
    %v282 = vld [vmem:[#allocation5 + $0x70] sm:$0xf]
    %v283 = vld [vmem:[#allocation5 + $0x74] sm:$0xf]
    %v284 = vld [vmem:[#allocation5 + $0x78] sm:$0xf]
    %v285 = vld [vmem:[#allocation5 + $0x7c] sm:$0xf]
    %v318 = vunpack.c.l.b16 %v254
    %v319 = vunpack.c.l.b16 %v255
    %v320 = vunpack.c.l.b16 %v256
    %v321 = vunpack.c.l.b16 %v257
    %v322 = vunpack.c.l.b16 %v258
    %v323 = vunpack.c.l.b16 %v259
    %v324 = vunpack.c.l.b16 %v260
    %v325 = vunpack.c.l.b16 %v261
    %v326 = vunpack.c.l.b16 %v262
    %v327 = vunpack.c.l.b16 %v263
    %v328 = vunpack.c.l.b16 %v264
    %v329 = vunpack.c.l.b16 %v265
    %v330 = vunpack.c.l.b16 %v266
    %v331 = vunpack.c.l.b16 %v267
    %v332 = vunpack.c.l.b16 %v268
    %v333 = vunpack.c.l.b16 %v269
    %v334 = vunpack.c.l.b16 %v270
    %v335 = vunpack.c.l.b16 %v271
    %v336 = vunpack.c.l.b16 %v272
    %v337 = vunpack.c.l.b16 %v273
    %v338 = vunpack.c.l.b16 %v274
    %v339 = vunpack.c.l.b16 %v275
    %v340 = vunpack.c.l.b16 %v276
    %v341 = vunpack.c.l.b16 %v277
    %v342 = vunpack.c.l.b16 %v278
    %v343 = vunpack.c.l.b16 %v279
    %v344 = vunpack.c.l.b16 %v280
    %v345 = vunpack.c.l.b16 %v281
    %v346 = vunpack.c.l.b16 %v282
    %v347 = vunpack.c.l.b16 %v283
    %v348 = vunpack.c.l.b16 %v284
    %v349 = vunpack.c.l.b16 %v285
    %v350 = vpack.c.b16 %v319, %v318
    %v351 = vpack.c.b16 %v321, %v320
    %v352 = vpack.c.b16 %v323, %v322
    %v353 = vpack.c.b16 %v325, %v324
    %v354 = vpack.c.b16 %v327, %v326
    %v355 = vpack.c.b16 %v329, %v328
    %v356 = vpack.c.b16 %v331, %v330
    %v357 = vpack.c.b16 %v333, %v332
    %v358 = vpack.c.b16 %v335, %v334
    %v359 = vpack.c.b16 %v337, %v336
    %v360 = vpack.c.b16 %v339, %v338
    %v361 = vpack.c.b16 %v341, %v340
    %v362 = vpack.c.b16 %v343, %v342
    %v363 = vpack.c.b16 %v345, %v344
    %v364 = vpack.c.b16 %v347, %v346
    %v365 = vpack.c.b16 %v349, %v348
    %382 = vmatpush.bf16.msra.mxu0 %v357
    %383 = vmatpush.bf16.msra.mxu0 %v356
    %384 = vmatpush.bf16.msra.mxu0 %v355
    %385 = vmatpush.bf16.msra.mxu0 %v354
    %386 = vmatpush.bf16.msra.mxu0 %v353
    %387 = vmatpush.bf16.msra.mxu0 %v352
    %388 = vmatpush.bf16.msra.mxu0 %v351
    %389 = vmatpush.bf16.msra.mxu0 %v350
    %390 = vmatmul.bf16.gmra.mxu0 %v250
    %v391 = vpop.f32.mrf.mxu0
    %v392 = vadd.f32 0.0, %v391
    %v393 = vpop.f32.mrf.mxu0
    %v394 = vadd.f32 0.0, %v393
    %395 = vdwg.mxu0
    %396 = vmatpush.bf16.msra.mxu0 %v365
    %397 = vmatpush.bf16.msra.mxu0 %v364
    %398 = vmatpush.bf16.msra.mxu0 %v363
    %399 = vmatpush.bf16.msra.mxu0 %v362
    %400 = vmatpush.bf16.msra.mxu0 %v361
    %401 = vmatpush.bf16.msra.mxu0 %v360
    %402 = vmatpush.bf16.msra.mxu0 %v359
    %403 = vmatpush.bf16.msra.mxu0 %v358
    %404 = vmatmul.bf16.gmra.mxu0 %v251
    %v405 = vpop.f32.mrf.mxu0
    %v406 = vadd.f32 %v392, %v405
    %v407 = vpop.f32.mrf.mxu0
    %v408 = vadd.f32 %v394, %v407
    %409 = vdwg.mxu0
    %v410 = vadd.f32 %v252, %v406
    %v411 = vadd.f32 %v253, %v408
    %412 = vst [vmem:[#allocation2] sm:$0xff] %v410
    %413 = vst [vmem:[#allocation2 + $0x8] sm:$0xff] %v411
    // Predicated region
    $region54: #{transformer_forward.40} parent=1 // pred_check
      %p414 = pneg %p98
    $region55: #{transformer_forward.40} parent=1 // pred_check_branch
      %416 = sbr.rel (%p414) target = $region57
    $region56: #{transformer_forward.40} parent=1 // pred_region
      %v417 = vld [vmem:[#allocation2] sm:$0xff]
      %v418 = vld [vmem:[#allocation2 + $0x8] sm:$0xff]
      %v419 = vld [vmem:[%s0] sm:$0xf]
      %v420 = vld [vmem:[%s0 + $0x4] sm:$0xf]
      %v421 = vunpack.c.l.bf16 %v419
      %v422 = vunpack.c.l.bf16 %v420
      %v423 = vadd.f32 %v417, %v421
      %v424 = vadd.f32 %v418, %v422
      %v425 = vld [vmem:[#allocation8] sm:$0x1]
      %v426 = vld [vmem:[#allocation10] sm:$0x1]
      %427 = vadd.xlane.f32.xlu0 %v423
      %v428 = vpop.xlane.xlu0 %427
      %429 = vadd.xlane.f32.xlu0 %v424
      %v430 = vpop.xlane.xlu0 %429
      %v431 = vrcp.pop 128.0
      %v432 = vmul.f32 128.0, %v431
      %v433 = vsub.f32 1.0, %v432
      %v434 = vmul.f32 %v431, %v433
      %v435 = vadd.f32 %v431, %v434
      %vm436 = vweird.f32 %v431
      %v437 = vsel %vm436, %v431, %v435
      %v438 = vmul.f32 %v428, %v437
      %v439 = vmul.f32 %v430, %v437
      %v440 = vsub.f32 %v423, %v438
      %v441 = vsub.f32 %v424, %v439
      %v442 = vmul.f32 %v440, %v440
      %v443 = vmul.f32 %v441, %v441
      %444 = vadd.xlane.f32.xlu0 %v442
      %v445 = vpop.xlane.xlu0 %444
      %446 = vadd.xlane.f32.xlu0 %v443
      %v447 = vpop.xlane.xlu0 %446
      %v448 = vmul.f32 %v445, %v437
      %v449 = vmul.f32 %v447, %v437
      %v450 = vadd.f32 %v448, 1e-05
      %v451 = vadd.f32 %v449, 1e-05
      %v452 = vrsqrt.pop %v450
      %v453 = vmul.f32 %v452, %v450
      %v454 = vmul.f32 %v453, %v452
      %v455 = vmul.f32 0.5, %v454
      %v456 = vsub.f32 1.5, %v455
      %v457 = vmul.f32 %v452, %v456
      %vm458 = vweird.f32 %v450
      %vm459 = vweird.f32 %v452
      %vm460 = vmor %vm458, %vm459
      %v461 = vsel %vm460, %v452, %v457
      %v462 = vrsqrt.pop %v451
      %v463 = vmul.f32 %v462, %v451
      %v464 = vmul.f32 %v463, %v462
      %v465 = vmul.f32 0.5, %v464
      %v466 = vsub.f32 1.5, %v465
      %v467 = vmul.f32 %v462, %v466
      %vm468 = vweird.f32 %v451
      %vm469 = vweird.f32 %v462
      %vm470 = vmor %vm468, %vm469
      %v471 = vsel %vm470, %v462, %v467
      %v472 = vmul.f32 %v440, %v461
      %v473 = vmul.f32 %v441, %v471
      %v475 = vperm.slane %v425, 0
      %v477 = vmul.f32 %v472, %v475
      %v478 = vmul.f32 %v473, %v475
      %v480 = vperm.slane %v426, 0
      %v482 = vadd.f32 %v477, %v480
      %v483 = vadd.f32 %v478, %v480
      %v484 = vpack.c.bf16 %v482, %v482
      %v485 = vpack.c.bf16 %v483, %v483
      %486 = vst [vmem:[%s7] sm:$0xf] %v484
      %487 = vst [vmem:[%s7 + $0x4] sm:$0xf] %v485
    $region57: #{transformer_forward.40} parent=1 // pred_fallthru
      _
    // Predicated region
    $region58: #{transformer_forward.40} parent=1 // pred_check
      _
    $region59: #{transformer_forward.40} parent=1 // pred_check_branch
      %489 = sbr.rel (0) target = $region61
    $region60: #{transformer_forward.40} parent=1 // pred_region
      _
    $region61: #{transformer_forward.40} parent=1 // pred_fallthru
      _
    // Predicated region
    $region62: #{transformer_forward.40} parent=1 // pred_check
      _
    $region63: #{transformer_forward.40} parent=1 // pred_check_branch
      %491 = sbr.rel (0) target = $region65
    $region64: #{transformer_forward.40} parent=1 // pred_region
      _
    $region65: #{transformer_forward.40} parent=1 // pred_fallthru
      _
    %492 = vsyncpa [#allocation4], 1
    %493 = vsyncpa [#allocation6], 1
    %494 = vsyncpa [#allocation9], 1

// kernel: transformer_forward.47
$region0: #{transformer_forward.47}
  #allocation0 [shape = 'u32[]', space=smem, size = 0x4, offset = 0x4, fixed_abs, tag = 'smem constant byte address 0x4 - core index']
  #allocation1 [shape = 'u32[72,128]{1,0:T(1,128)}', space=vmem, size = 0x9000, scoped, tag = 'internal scratch']
  %s0 = inlined_call_operand.vmem [shape: bf16[16,128], index: 0, kind: input, shape index: {}]
  %s1 = inlined_call_operand.hbm [shape: bf16[128,128], index: 1, kind: input, shape index: {}]
  %s2 = inlined_call_operand.hbm [shape: f32[1,128], index: 2, kind: input, shape index: {}]
  %s3 = inlined_call_operand.vmem [shape: bf16[16,128], index: 3, kind: input, shape index: {}]
  %s4 = inlined_call_operand.hbm [shape: f32[1,128], index: 4, kind: input, shape index: {}]
  %s5 = inlined_call_operand.hbm [shape: f32[1,128], index: 5, kind: input, shape index: {}]
  %s6 = inlined_call_operand.vmem [shape: bf16[16,128], index: 6, kind: output, shape index: {}]
  %s7 = sld [smem:[#allocation0]]
  $region50: #{transformer_forward.47} parent=0
    _
  %s9 = ssub.s32 1, %s7
  %s10 = scalar_select 0, %s9, %s7
  $region1: #{transformer_forward.47} parent=0
    #allocation2 [shape = 'u8[32768]{0}', space=vmem, size = 0x8000, scoped, tag = 'input window, operand 1, single buffered']
    #allocation3 [shape = 's32[1]{0}', space=sflag, size = 0x4, scoped, tag = 'scoped memory for transformer_forward.47']
    #allocation4 [shape = 'u8[512]{0}', space=vmem, size = 0x400, scoped, tag = 'input window, operand 2, single buffered']
    #allocation5 [shape = 's32[1]{0}', space=sflag, size = 0x4, scoped, tag = 'scoped memory for transformer_forward.47']
    #allocation6 [shape = 'u8[512]{0}', space=vmem, size = 0x400, scoped, tag = 'input window, operand 4, single buffered']
    #allocation7 [shape = 'u8[512]{0}', space=vmem, size = 0x400, scoped, tag = 'input window, operand 5, single buffered']
    #allocation8 [shape = 's32[1]{0}', space=sflag, size = 0x4, scoped, tag = 'scoped memory for transformer_forward.47']
    %11 = vsyncpa [#allocation3], 0
    %12 = vsyncpa [#allocation5], 0
    %13 = vsyncpa [#allocation8], 0
    // Predicated region
    $region2: #{transformer_forward.47} parent=1 // pred_check
      _
    $region3: #{transformer_forward.47} parent=1 // pred_check_branch
      %15 = sbr.rel (0) target = $region5
    $region4: #{transformer_forward.47} parent=1 // pred_region
      _
    $region5: #{transformer_forward.47} parent=1 // pred_fallthru
      _
    // Predicated region
    $region6: #{transformer_forward.47} parent=1 // pred_check
      _
    $region7: #{transformer_forward.47} parent=1 // pred_check_branch
      %17 = sbr.rel (0) target = $region9
    $region8: #{transformer_forward.47} parent=1 // pred_region
      %19 = vsyncadd [#allocation3], 0
      %s20 = sshll.u32 %s1, 4
      %s21 = int_to_ptr.hbm [resolvable:$true] %s20
      %s22 = sshll.u32 [#allocation2], 4
      %s23 = int_to_ptr.vmem [resolvable:$true] %s22
      %28 = dma.hbm_to_vmem [thread:$0]  %s21, 1024, %s23, [#allocation3], 64, 64, 4
    $region9: #{transformer_forward.47} parent=1 // pred_fallthru
      _
    // Predicated region
    $region10: #{transformer_forward.47} parent=1 // pred_check
      _
    $region11: #{transformer_forward.47} parent=1 // pred_check_branch
      %30 = sbr.rel (0) target = $region13
    $region12: #{transformer_forward.47} parent=1 // pred_region
      %32 = vsyncadd [#allocation5], 0
      %s34 = sshll.u32 %s2, 4
      %s35 = int_to_ptr.hbm [resolvable:$true] %s34
      %s36 = sshll.u32 [#allocation4], 4
      %s37 = int_to_ptr.vmem [resolvable:$true] %s36
      %39 = dma.hbm_to_vmem [thread:$0]  %s35, 16, %s37, [#allocation5]
    $region13: #{transformer_forward.47} parent=1 // pred_fallthru
      _
    // Predicated region
    $region14: #{transformer_forward.47} parent=1 // pred_check
      _
    $region15: #{transformer_forward.47} parent=1 // pred_check_branch
      %41 = sbr.rel (0) target = $region17
    $region16: #{transformer_forward.47} parent=1 // pred_region
      _
    $region17: #{transformer_forward.47} parent=1 // pred_fallthru
      _
    // Predicated region
    $region18: #{transformer_forward.47} parent=1 // pred_check
      _
    $region19: #{transformer_forward.47} parent=1 // pred_check_branch
      %43 = sbr.rel (0) target = $region21
    $region20: #{transformer_forward.47} parent=1 // pred_region
      %45 = vsyncadd [#allocation5], 0
      %s47 = sshll.u32 %s4, 4
      %s48 = int_to_ptr.hbm [resolvable:$true] %s47
      %s49 = sshll.u32 [#allocation6], 4
      %s50 = int_to_ptr.vmem [resolvable:$true] %s49
      %52 = dma.hbm_to_vmem [thread:$0]  %s48, 16, %s50, [#allocation5]
    $region21: #{transformer_forward.47} parent=1 // pred_fallthru
      _
    // Predicated region
    $region22: #{transformer_forward.47} parent=1 // pred_check
      _
    $region23: #{transformer_forward.47} parent=1 // pred_check_branch
      %54 = sbr.rel (0) target = $region25
    $region24: #{transformer_forward.47} parent=1 // pred_region
      %56 = vsyncadd [#allocation8], 0
      %s58 = sshll.u32 %s5, 4
      %s59 = int_to_ptr.hbm [resolvable:$true] %s58
      %s60 = sshll.u32 [#allocation7], 4
      %s61 = int_to_ptr.vmem [resolvable:$true] %s60
      %63 = dma.hbm_to_vmem [thread:$0]  %s59, 16, %s61, [#allocation8]
    $region25: #{transformer_forward.47} parent=1 // pred_fallthru
      _
    // Predicated region
    $region26: #{transformer_forward.47} parent=1 // pred_check
      _
    $region27: #{transformer_forward.47} parent=1 // pred_check_branch
      %65 = sbr.rel (0) target = $region29
    $region28: #{transformer_forward.47} parent=1 // pred_region
      %67 = dma.done [#allocation3], 1024
    $region29: #{transformer_forward.47} parent=1 // pred_fallthru
      _
    // Predicated region
    $region30: #{transformer_forward.47} parent=1 // pred_check
      _
    $region31: #{transformer_forward.47} parent=1 // pred_check_branch
      %69 = sbr.rel (0) target = $region33
    $region32: #{transformer_forward.47} parent=1 // pred_region
      %71 = dma.done [#allocation5], 16
    $region33: #{transformer_forward.47} parent=1 // pred_fallthru
      _
    // Predicated region
    $region34: #{transformer_forward.47} parent=1 // pred_check
      _
    $region35: #{transformer_forward.47} parent=1 // pred_check_branch
      %73 = sbr.rel (0) target = $region37
    $region36: #{transformer_forward.47} parent=1 // pred_region
      %75 = dma.done [#allocation5], 16
    $region37: #{transformer_forward.47} parent=1 // pred_fallthru
      _
    // Predicated region
    $region38: #{transformer_forward.47} parent=1 // pred_check
      _
    $region39: #{transformer_forward.47} parent=1 // pred_check_branch
      %77 = sbr.rel (0) target = $region41
    $region40: #{transformer_forward.47} parent=1 // pred_region
      %79 = dma.done [#allocation8], 16
    $region41: #{transformer_forward.47} parent=1 // pred_fallthru
      _
    %v80 = vld [vmem:[%s0] sm:$0xf]
    %v81 = vld [vmem:[%s0 + $0x4] sm:$0xf]
    %v82 = vld [vmem:[#allocation2] sm:$0xf]
    %v83 = vld [vmem:[#allocation2 + $0x4] sm:$0xf]
    %v84 = vld [vmem:[#allocation2 + $0x8] sm:$0xf]
    %v85 = vld [vmem:[#allocation2 + $0xc] sm:$0xf]
    %v86 = vld [vmem:[#allocation2 + $0x10] sm:$0xf]
    %v87 = vld [vmem:[#allocation2 + $0x14] sm:$0xf]
    %v88 = vld [vmem:[#allocation2 + $0x18] sm:$0xf]
    %v89 = vld [vmem:[#allocation2 + $0x1c] sm:$0xf]
    %v90 = vld [vmem:[#allocation2 + $0x20] sm:$0xf]
    %v91 = vld [vmem:[#allocation2 + $0x24] sm:$0xf]
    %v92 = vld [vmem:[#allocation2 + $0x28] sm:$0xf]
    %v93 = vld [vmem:[#allocation2 + $0x2c] sm:$0xf]
    %v94 = vld [vmem:[#allocation2 + $0x30] sm:$0xf]
    %v95 = vld [vmem:[#allocation2 + $0x34] sm:$0xf]
    %v96 = vld [vmem:[#allocation2 + $0x38] sm:$0xf]
    %v97 = vld [vmem:[#allocation2 + $0x3c] sm:$0xf]
    %v98 = vld [vmem:[#allocation4] sm:$0x1]
    %v100 = vperm.slane %v98, 0
    %v104 = vunpack.c.l.b16 %v80
    %v105 = vunpack.c.l.b16 %v81
    %v106 = vpack.c.b16 %v105, %v104
    %v124 = vunpack.c.l.b16 %v82
    %v125 = vunpack.c.l.b16 %v83
    %v126 = vunpack.c.l.b16 %v84
    %v127 = vunpack.c.l.b16 %v85
    %v128 = vunpack.c.l.b16 %v86
    %v129 = vunpack.c.l.b16 %v87
    %v130 = vunpack.c.l.b16 %v88
    %v131 = vunpack.c.l.b16 %v89
    %v132 = vunpack.c.l.b16 %v90
    %v133 = vunpack.c.l.b16 %v91
    %v134 = vunpack.c.l.b16 %v92
    %v135 = vunpack.c.l.b16 %v93
    %v136 = vunpack.c.l.b16 %v94
    %v137 = vunpack.c.l.b16 %v95
    %v138 = vunpack.c.l.b16 %v96
    %v139 = vunpack.c.l.b16 %v97
    %v140 = vpack.c.b16 %v125, %v124
    %v141 = vpack.c.b16 %v127, %v126
    %v142 = vpack.c.b16 %v129, %v128
    %v143 = vpack.c.b16 %v131, %v130
    %v144 = vpack.c.b16 %v133, %v132
    %v145 = vpack.c.b16 %v135, %v134
    %v146 = vpack.c.b16 %v137, %v136
    %v147 = vpack.c.b16 %v139, %v138
    %156 = vmatpush.bf16.msra.mxu0 %v147
    %157 = vmatpush.bf16.msra.mxu0 %v146
    %158 = vmatpush.bf16.msra.mxu0 %v145
    %159 = vmatpush.bf16.msra.mxu0 %v144
    %160 = vmatpush.bf16.msra.mxu0 %v143
    %161 = vmatpush.bf16.msra.mxu0 %v142
    %162 = vmatpush.bf16.msra.mxu0 %v141
    %163 = vmatpush.bf16.msra.mxu0 %v140
    %164 = vmatmul.bf16.gmra.mxu0 %v106
    %v165 = vpop.f32.mrf.mxu0
    %v166 = vadd.f32 %v100, %v165
    %v167 = vpop.f32.mrf.mxu0
    %v168 = vadd.f32 %v100, %v167
    %169 = vdwg.mxu0
    %v170 = vld [vmem:[%s3] sm:$0xf]
    %v171 = vld [vmem:[%s3 + $0x4] sm:$0xf]
    %v172 = vunpack.c.l.bf16 %v170
    %v173 = vunpack.c.l.bf16 %v171
    %v174 = vadd.f32 %v166, %v172
    %v175 = vadd.f32 %v168, %v173
    %v176 = vld [vmem:[#allocation6] sm:$0x1]
    %v177 = vld [vmem:[#allocation7] sm:$0x1]
    %178 = vadd.xlane.f32.xlu0 %v174
    %v179 = vpop.xlane.xlu0 %178
    %180 = vadd.xlane.f32.xlu0 %v175
    %v181 = vpop.xlane.xlu0 %180
    %v182 = vrcp.pop 128.0
    %v183 = vmul.f32 128.0, %v182
    %v184 = vsub.f32 1.0, %v183
    %v185 = vmul.f32 %v182, %v184
    %v186 = vadd.f32 %v182, %v185
    %vm187 = vweird.f32 %v182
    %v188 = vsel %vm187, %v182, %v186
    %v189 = vmul.f32 %v179, %v188
    %v190 = vmul.f32 %v181, %v188
    %v191 = vsub.f32 %v174, %v189
    %v192 = vsub.f32 %v175, %v190
    %v193 = vmul.f32 %v191, %v191
    %v194 = vmul.f32 %v192, %v192
    %195 = vadd.xlane.f32.xlu0 %v193
    %v196 = vpop.xlane.xlu0 %195
    %197 = vadd.xlane.f32.xlu0 %v194
    %v198 = vpop.xlane.xlu0 %197
    %v199 = vmul.f32 %v196, %v188
    %v200 = vmul.f32 %v198, %v188
    %v201 = vadd.f32 %v199, 1e-05
    %v202 = vadd.f32 %v200, 1e-05
    %v203 = vrsqrt.pop %v201
    %v204 = vmul.f32 %v203, %v201
    %v205 = vmul.f32 %v204, %v203
    %v206 = vmul.f32 0.5, %v205
    %v207 = vsub.f32 1.5, %v206
    %v208 = vmul.f32 %v203, %v207
    %vm209 = vweird.f32 %v201
    %vm210 = vweird.f32 %v203
    %vm211 = vmor %vm209, %vm210
    %v212 = vsel %vm211, %v203, %v208
    %v213 = vrsqrt.pop %v202
    %v214 = vmul.f32 %v213, %v202
    %v215 = vmul.f32 %v214, %v213
    %v216 = vmul.f32 0.5, %v215
    %v217 = vsub.f32 1.5, %v216
    %v218 = vmul.f32 %v213, %v217
    %vm219 = vweird.f32 %v202
    %vm220 = vweird.f32 %v213
    %vm221 = vmor %vm219, %vm220
    %v222 = vsel %vm221, %v213, %v218
    %v223 = vmul.f32 %v191, %v212
    %v224 = vmul.f32 %v192, %v222
    %v226 = vperm.slane %v176, 0
    %v228 = vmul.f32 %v223, %v226
    %v229 = vmul.f32 %v224, %v226
    %v231 = vperm.slane %v177, 0
    %v233 = vadd.f32 %v228, %v231
    %v234 = vadd.f32 %v229, %v231
    %v235 = vpack.c.bf16 %v233, %v233
    %v236 = vpack.c.bf16 %v234, %v234
    %237 = vst [vmem:[%s6] sm:$0xf] %v235
    %238 = vst [vmem:[%s6 + $0x4] sm:$0xf] %v236
    // Predicated region
    $region42: #{transformer_forward.47} parent=1 // pred_check
      _
    $region43: #{transformer_forward.47} parent=1 // pred_check_branch
      %240 = sbr.rel (0) target = $region45
    $region44: #{transformer_forward.47} parent=1 // pred_region
      _
    $region45: #{transformer_forward.47} parent=1 // pred_fallthru
      _
    // Predicated region
    $region46: #{transformer_forward.47} parent=1 // pred_check
      _
    $region47: #{transformer_forward.47} parent=1 // pred_check_branch
      %242 = sbr.rel (0) target = $region49
    $region48: #{transformer_forward.47} parent=1 // pred_region
      _
    $region49: #{transformer_forward.47} parent=1 // pred_fallthru
      _
    %243 = vsyncpa [#allocation3], 1
    %244 = vsyncpa [#allocation5], 1
    %245 = vsyncpa [#allocation8], 1

// kernel: transformer_forward.49
$region0: #{transformer_forward.49}
  #allocation0 [shape = 'u32[]', space=smem, size = 0x4, offset = 0x4, fixed_abs, tag = 'smem constant byte address 0x4 - core index']
  #allocation1 [shape = 'u32[72,128]{1,0:T(1,128)}', space=vmem, size = 0x9000, scoped, tag = 'internal scratch']
  %s0 = inlined_call_operand.vmem [shape: bf16[16,128], index: 0, kind: input, shape index: {}]
  %s1 = inlined_call_operand.hbm [shape: bf16[128,128], index: 1, kind: input, shape index: {}]
  %s2 = inlined_call_operand.vmem [shape: f32[1,128], index: 2, kind: input, shape index: {}]
  %s3 = inlined_call_operand.hbm [shape: f32[16,128], index: 3, kind: output, shape index: {}]
  %s4 = sld [smem:[#allocation0]]
  $region26: #{transformer_forward.49} parent=0
    _
  %s6 = ssub.s32 1, %s4
  %s7 = scalar_select 0, %s6, %s4
  $region1: #{transformer_forward.49} parent=0
    #allocation2 [shape = 'u8[32768]{0}', space=vmem, size = 0x8000, scoped, tag = 'input window, operand 1, single buffered']
    #allocation3 [shape = 's32[1]{0}', space=sflag, size = 0x4, scoped, tag = 'scoped memory for transformer_forward.49']
    #allocation4 [shape = 's32[1]{0}', space=sflag, size = 0x4, scoped, tag = 'scoped memory for transformer_forward.49']
    #allocation5 [shape = 'u8[8192]{0}', space=vmem, size = 0x2000, scoped, tag = 'output window, operand 0, single buffered']
    %8 = vsyncpa [#allocation3], 0
    %9 = vsyncpa [#allocation4], 0
    // Predicated region
    $region2: #{transformer_forward.49} parent=1 // pred_check
      _
    $region3: #{transformer_forward.49} parent=1 // pred_check_branch
      %11 = sbr.rel (0) target = $region5
    $region4: #{transformer_forward.49} parent=1 // pred_region
      _
    $region5: #{transformer_forward.49} parent=1 // pred_fallthru
      _
    // Predicated region
    $region6: #{transformer_forward.49} parent=1 // pred_check
      _
    $region7: #{transformer_forward.49} parent=1 // pred_check_branch
      %13 = sbr.rel (0) target = $region9
    $region8: #{transformer_forward.49} parent=1 // pred_region
      %15 = vsyncadd [#allocation3], 0
      %s16 = sshll.u32 %s1, 4
      %s17 = int_to_ptr.hbm [resolvable:$true] %s16
      %s18 = sshll.u32 [#allocation2], 4
      %s19 = int_to_ptr.vmem [resolvable:$true] %s18
      %24 = dma.hbm_to_vmem [thread:$0]  %s17, 1024, %s19, [#allocation3], 64, 64, 4
    $region9: #{transformer_forward.49} parent=1 // pred_fallthru
      _
    // Predicated region
    $region10: #{transformer_forward.49} parent=1 // pred_check
      _
    $region11: #{transformer_forward.49} parent=1 // pred_check_branch
      %26 = sbr.rel (0) target = $region13
    $region12: #{transformer_forward.49} parent=1 // pred_region
      _
    $region13: #{transformer_forward.49} parent=1 // pred_fallthru
      _
    // Predicated region
    $region14: #{transformer_forward.49} parent=1 // pred_check
      _
    $region15: #{transformer_forward.49} parent=1 // pred_check_branch
      %28 = sbr.rel (0) target = $region17
    $region16: #{transformer_forward.49} parent=1 // pred_region
      %30 = dma.done [#allocation3], 1024
    $region17: #{transformer_forward.49} parent=1 // pred_fallthru
      _
    %v31 = vld [vmem:[%s0] sm:$0xf]
    %v32 = vld [vmem:[%s0 + $0x4] sm:$0xf]
    %v33 = vld [vmem:[#allocation2] sm:$0xf]
    %v34 = vld [vmem:[#allocation2 + $0x4] sm:$0xf]
    %v35 = vld [vmem:[#allocation2 + $0x8] sm:$0xf]
    %v36 = vld [vmem:[#allocation2 + $0xc] sm:$0xf]
    %v37 = vld [vmem:[#allocation2 + $0x10] sm:$0xf]
    %v38 = vld [vmem:[#allocation2 + $0x14] sm:$0xf]
    %v39 = vld [vmem:[#allocation2 + $0x18] sm:$0xf]
    %v40 = vld [vmem:[#allocation2 + $0x1c] sm:$0xf]
    %v41 = vld [vmem:[#allocation2 + $0x20] sm:$0xf]
    %v42 = vld [vmem:[#allocation2 + $0x24] sm:$0xf]
    %v43 = vld [vmem:[#allocation2 + $0x28] sm:$0xf]
    %v44 = vld [vmem:[#allocation2 + $0x2c] sm:$0xf]
    %v45 = vld [vmem:[#allocation2 + $0x30] sm:$0xf]
    %v46 = vld [vmem:[#allocation2 + $0x34] sm:$0xf]
    %v47 = vld [vmem:[#allocation2 + $0x38] sm:$0xf]
    %v48 = vld [vmem:[#allocation2 + $0x3c] sm:$0xf]
    %v49 = vld [vmem:[%s2] sm:$0x1]
    %v51 = vperm.slane %v49, 0
    %v55 = vunpack.c.l.b16 %v31
    %v56 = vunpack.c.l.b16 %v32
    %v57 = vpack.c.b16 %v56, %v55
    %v75 = vunpack.c.l.b16 %v33
    %v76 = vunpack.c.l.b16 %v34
    %v77 = vunpack.c.l.b16 %v35
    %v78 = vunpack.c.l.b16 %v36
    %v79 = vunpack.c.l.b16 %v37
    %v80 = vunpack.c.l.b16 %v38
    %v81 = vunpack.c.l.b16 %v39
    %v82 = vunpack.c.l.b16 %v40
    %v83 = vunpack.c.l.b16 %v41
    %v84 = vunpack.c.l.b16 %v42
    %v85 = vunpack.c.l.b16 %v43
    %v86 = vunpack.c.l.b16 %v44
    %v87 = vunpack.c.l.b16 %v45
    %v88 = vunpack.c.l.b16 %v46
    %v89 = vunpack.c.l.b16 %v47
    %v90 = vunpack.c.l.b16 %v48
    %v91 = vpack.c.b16 %v76, %v75
    %v92 = vpack.c.b16 %v78, %v77
    %v93 = vpack.c.b16 %v80, %v79
    %v94 = vpack.c.b16 %v82, %v81
    %v95 = vpack.c.b16 %v84, %v83
    %v96 = vpack.c.b16 %v86, %v85
    %v97 = vpack.c.b16 %v88, %v87
    %v98 = vpack.c.b16 %v90, %v89
    %107 = vmatpush.bf16.msra.mxu0 %v98
    %108 = vmatpush.bf16.msra.mxu0 %v97
    %109 = vmatpush.bf16.msra.mxu0 %v96
    %110 = vmatpush.bf16.msra.mxu0 %v95
    %111 = vmatpush.bf16.msra.mxu0 %v94
    %112 = vmatpush.bf16.msra.mxu0 %v93
    %113 = vmatpush.bf16.msra.mxu0 %v92
    %114 = vmatpush.bf16.msra.mxu0 %v91
    %115 = vmatmul.bf16.gmra.mxu0 %v57
    %v116 = vpop.f32.mrf.mxu0
    %v117 = vadd.f32 %v51, %v116
    %v118 = vpop.f32.mrf.mxu0
    %v119 = vadd.f32 %v51, %v118
    %120 = vdwg.mxu0
    %121 = vst [vmem:[#allocation5] sm:$0xff] %v117
    %122 = vst [vmem:[#allocation5 + $0x8] sm:$0xff] %v119
    // Predicated region
    $region18: #{transformer_forward.49} parent=1 // pred_check
      _
    $region19: #{transformer_forward.49} parent=1 // pred_check_branch
      %124 = sbr.rel (0) target = $region21
    $region20: #{transformer_forward.49} parent=1 // pred_region
      %126 = vsyncadd [#allocation4], 0
      %s127 = sshll.u32 [#allocation5], 4
      %s128 = int_to_ptr.vmem [resolvable:$true] %s127
      %s129 = sshll.u32 %s3, 4
      %s130 = int_to_ptr.hbm [resolvable:$true] %s129
      %135 = dma.vmem_to_hbm [thread:$0]  %s128, 256, %s130, [#allocation4], 128, 128, 8
    $region21: #{transformer_forward.49} parent=1 // pred_fallthru
      _
    // Predicated region
    $region22: #{transformer_forward.49} parent=1 // pred_check
      _
    $region23: #{transformer_forward.49} parent=1 // pred_check_branch
      %137 = sbr.rel (0) target = $region25
    $region24: #{transformer_forward.49} parent=1 // pred_region
      %139 = dma.done [#allocation4], 256
    $region25: #{transformer_forward.49} parent=1 // pred_fallthru
      _
    %140 = vsyncpa [#allocation3], 1
    %141 = vsyncpa [#allocation4], 1

// kernel: transformer_forward.48
$region0: #{transformer_forward.48}
  #allocation0 [shape = 'u32[]', space=smem, size = 0x4, offset = 0x4, fixed_abs, tag = 'smem constant byte address 0x4 - core index']
  #allocation1 [shape = 'u32[72,128]{1,0:T(1,128)}', space=vmem, size = 0x9000, scoped, tag = 'internal scratch']
  #allocation2 [shape = 'f32[16,128]{1,0:T(8,128)}', space=vmem, size = 0x2000, scoped, tag = 'scratch operand']
  %s0 = inlined_call_operand.vmem [shape: bf16[16,128], index: 0, kind: input, shape index: {}]
  %s1 = inlined_call_operand.vmem [shape: bf16[128,256], index: 1, kind: input, shape index: {}]
  %s2 = inlined_call_operand.vmem [shape: f32[1,256], index: 2, kind: input, shape index: {}]
  %s3 = inlined_call_operand.vmem [shape: bf16[256,128], index: 3, kind: input, shape index: {}]
  %s4 = inlined_call_operand.hbm [shape: f32[1,128], index: 4, kind: input, shape index: {}]
  %s5 = inlined_call_operand.hbm [shape: f32[1,128], index: 5, kind: input, shape index: {}]
  %s6 = inlined_call_operand.hbm [shape: f32[1,128], index: 6, kind: input, shape index: {}]
  %s7 = inlined_call_operand.vmem [shape: bf16[16,128], index: 7, kind: output, shape index: {}]
  %s8 = sld [smem:[#allocation0]]
  $region58: #{transformer_forward.48} parent=0
    _
  %s10 = ssub.s32 1, %s8
  %s11 = scalar_select 0, %s10, %s8
  $region1: #{transformer_forward.48} parent=0
    #allocation3 [shape = 'u8[512]{0}', space=vmem, size = 0x400, scoped, tag = 'input window, operand 4, single buffered']
    #allocation4 [shape = 's32[1]{0}', space=sflag, size = 0x4, scoped, tag = 'scoped memory for transformer_forward.48']
    #allocation5 [shape = 'u8[512]{0}', space=vmem, size = 0x400, scoped, tag = 'input window, operand 5, single buffered']
    #allocation6 [shape = 's32[1]{0}', space=sflag, size = 0x4, scoped, tag = 'scoped memory for transformer_forward.48']
    #allocation7 [shape = 'u8[512]{0}', space=vmem, size = 0x400, scoped, tag = 'input window, operand 6, single buffered']
    %12 = vsyncpa [#allocation4], 0
    %13 = vsyncpa [#allocation6], 0
    // Predicated region
    $region2: #{transformer_forward.48} parent=1 // pred_check
      _
    $region3: #{transformer_forward.48} parent=1 // pred_check_branch
      %15 = sbr.rel (0) target = $region5
    $region4: #{transformer_forward.48} parent=1 // pred_region
      _
    $region5: #{transformer_forward.48} parent=1 // pred_fallthru
      _
    // Predicated region
    $region6: #{transformer_forward.48} parent=1 // pred_check
      _
    $region7: #{transformer_forward.48} parent=1 // pred_check_branch
      %17 = sbr.rel (0) target = $region9
    $region8: #{transformer_forward.48} parent=1 // pred_region
      _
    $region9: #{transformer_forward.48} parent=1 // pred_fallthru
      _
    // Predicated region
    $region10: #{transformer_forward.48} parent=1 // pred_check
      _
    $region11: #{transformer_forward.48} parent=1 // pred_check_branch
      %19 = sbr.rel (0) target = $region13
    $region12: #{transformer_forward.48} parent=1 // pred_region
      _
    $region13: #{transformer_forward.48} parent=1 // pred_fallthru
      _
    // Predicated region
    $region14: #{transformer_forward.48} parent=1 // pred_check
      _
    $region15: #{transformer_forward.48} parent=1 // pred_check_branch
      %21 = sbr.rel (0) target = $region17
    $region16: #{transformer_forward.48} parent=1 // pred_region
      _
    $region17: #{transformer_forward.48} parent=1 // pred_fallthru
      _
    // Predicated region
    $region18: #{transformer_forward.48} parent=1 // pred_check
      _
    $region19: #{transformer_forward.48} parent=1 // pred_check_branch
      %23 = sbr.rel (0) target = $region21
    $region20: #{transformer_forward.48} parent=1 // pred_region
      %25 = vsyncadd [#allocation4], 0
      %s27 = sshll.u32 %s4, 4
      %s28 = int_to_ptr.hbm [resolvable:$true] %s27
      %s29 = sshll.u32 [#allocation3], 4
      %s30 = int_to_ptr.vmem [resolvable:$true] %s29
      %32 = dma.hbm_to_vmem [thread:$0]  %s28, 16, %s30, [#allocation4]
    $region21: #{transformer_forward.48} parent=1 // pred_fallthru
      _
    // Predicated region
    $region22: #{transformer_forward.48} parent=1 // pred_check
      _
    $region23: #{transformer_forward.48} parent=1 // pred_check_branch
      %34 = sbr.rel (0) target = $region25
    $region24: #{transformer_forward.48} parent=1 // pred_region
      %36 = vsyncadd [#allocation6], 0
      %s38 = sshll.u32 %s5, 4
      %s39 = int_to_ptr.hbm [resolvable:$true] %s38
      %s40 = sshll.u32 [#allocation5], 4
      %s41 = int_to_ptr.vmem [resolvable:$true] %s40
      %43 = dma.hbm_to_vmem [thread:$0]  %s39, 16, %s41, [#allocation6]
    $region25: #{transformer_forward.48} parent=1 // pred_fallthru
      _
    // Predicated region
    $region26: #{transformer_forward.48} parent=1 // pred_check
      _
    $region27: #{transformer_forward.48} parent=1 // pred_check_branch
      %45 = sbr.rel (0) target = $region29
    $region28: #{transformer_forward.48} parent=1 // pred_region
      %47 = vsyncadd [#allocation6], 0
      %s49 = sshll.u32 %s6, 4
      %s50 = int_to_ptr.hbm [resolvable:$true] %s49
      %s51 = sshll.u32 [#allocation7], 4
      %s52 = int_to_ptr.vmem [resolvable:$true] %s51
      %54 = dma.hbm_to_vmem [thread:$0]  %s50, 16, %s52, [#allocation6]
    $region29: #{transformer_forward.48} parent=1 // pred_fallthru
      _
    // Predicated region
    $region30: #{transformer_forward.48} parent=1 // pred_check
      _
    $region31: #{transformer_forward.48} parent=1 // pred_check_branch
      %56 = sbr.rel (0) target = $region33
    $region32: #{transformer_forward.48} parent=1 // pred_region
      %58 = dma.done [#allocation4], 16
    $region33: #{transformer_forward.48} parent=1 // pred_fallthru
      _
    // Predicated region
    $region34: #{transformer_forward.48} parent=1 // pred_check
      _
    $region35: #{transformer_forward.48} parent=1 // pred_check_branch
      %60 = sbr.rel (0) target = $region37
    $region36: #{transformer_forward.48} parent=1 // pred_region
      %62 = dma.done [#allocation6], 16
    $region37: #{transformer_forward.48} parent=1 // pred_fallthru
      _
    // Predicated region
    $region38: #{transformer_forward.48} parent=1 // pred_check
      _
    $region39: #{transformer_forward.48} parent=1 // pred_check_branch
      %64 = sbr.rel (0) target = $region41
    $region40: #{transformer_forward.48} parent=1 // pred_region
      %66 = dma.done [#allocation6], 16
    $region41: #{transformer_forward.48} parent=1 // pred_fallthru
      _
    %p67 = scmp.eq.s32.totalorder 0, 0
    // Predicated region
    $region42: #{transformer_forward.48} parent=1 // pred_check
      %p68 = pneg %p67
    $region43: #{transformer_forward.48} parent=1 // pred_check_branch
      %70 = sbr.rel (%p68) target = $region45
    $region44: #{transformer_forward.48} parent=1 // pred_region
      %v71 = vld [vmem:[#allocation3] sm:$0x1]
      %v73 = vperm.slane %v71, 0
      %75 = vst [vmem:[#allocation2] sm:$0xff] %v73
      %76 = vst [vmem:[#allocation2 + $0x8] sm:$0xff] %v73
    $region45: #{transformer_forward.48} parent=1 // pred_fallthru
      _
    %v77 = vld [vmem:[%s0] sm:$0xf]
    %v78 = vld [vmem:[%s0 + $0x4] sm:$0xf]
    %v79 = vld [vmem:[%s1] sm:$0xff]
    %v80 = vld [vmem:[%s1 + $0x8] sm:$0xff]
    %v81 = vld [vmem:[%s1 + $0x10] sm:$0xff]
    %v82 = vld [vmem:[%s1 + $0x18] sm:$0xff]
    %v83 = vld [vmem:[%s1 + $0x20] sm:$0xff]
    %v84 = vld [vmem:[%s1 + $0x28] sm:$0xff]
    %v85 = vld [vmem:[%s1 + $0x30] sm:$0xff]
    %v86 = vld [vmem:[%s1 + $0x38] sm:$0xff]
    %v87 = vld [vmem:[%s1 + $0x40] sm:$0xff]
    %v88 = vld [vmem:[%s1 + $0x48] sm:$0xff]
    %v89 = vld [vmem:[%s1 + $0x50] sm:$0xff]
    %v90 = vld [vmem:[%s1 + $0x58] sm:$0xff]
    %v91 = vld [vmem:[%s1 + $0x60] sm:$0xff]
    %v92 = vld [vmem:[%s1 + $0x68] sm:$0xff]
    %v93 = vld [vmem:[%s1 + $0x70] sm:$0xff]
    %v94 = vld [vmem:[%s1 + $0x78] sm:$0xff]
    %v95 = vld [vmem:[%s2] sm:$0x3]
    %v97 = vperm.slane %v95, 0
    %v98 = vperm.slane %v95, 1
    %v103 = vunpack.c.l.b16 %v77
    %v104 = vunpack.c.l.b16 %v78
    %v105 = vpack.c.b16 %v104, %v103
    %v123 = vunpack.c.l.b16 %v79
    %v124 = vunpack.c.h.b16 %v79
    %v125 = vunpack.c.l.b16 %v80
    %v126 = vunpack.c.h.b16 %v80
    %v127 = vunpack.c.l.b16 %v81
    %v128 = vunpack.c.h.b16 %v81
    %v129 = vunpack.c.l.b16 %v82
    %v130 = vunpack.c.h.b16 %v82
    %v131 = vunpack.c.l.b16 %v83
    %v132 = vunpack.c.h.b16 %v83
    %v133 = vunpack.c.l.b16 %v84
    %v134 = vunpack.c.h.b16 %v84
    %v135 = vunpack.c.l.b16 %v85
    %v136 = vunpack.c.h.b16 %v85
    %v137 = vunpack.c.l.b16 %v86
    %v138 = vunpack.c.h.b16 %v86
    %v139 = vunpack.c.l.b16 %v87
    %v140 = vunpack.c.h.b16 %v87
    %v141 = vunpack.c.l.b16 %v88
    %v142 = vunpack.c.h.b16 %v88
    %v143 = vunpack.c.l.b16 %v89
    %v144 = vunpack.c.h.b16 %v89
    %v145 = vunpack.c.l.b16 %v90
    %v146 = vunpack.c.h.b16 %v90
    %v147 = vunpack.c.l.b16 %v91
    %v148 = vunpack.c.h.b16 %v91
    %v149 = vunpack.c.l.b16 %v92
    %v150 = vunpack.c.h.b16 %v92
    %v151 = vunpack.c.l.b16 %v93
    %v152 = vunpack.c.h.b16 %v93
    %v153 = vunpack.c.l.b16 %v94
    %v154 = vunpack.c.h.b16 %v94
    %v155 = vpack.c.b16 %v125, %v123
    %v156 = vpack.c.b16 %v126, %v124
    %v157 = vpack.c.b16 %v129, %v127
    %v158 = vpack.c.b16 %v130, %v128
    %v159 = vpack.c.b16 %v133, %v131
    %v160 = vpack.c.b16 %v134, %v132
    %v161 = vpack.c.b16 %v137, %v135
    %v162 = vpack.c.b16 %v138, %v136
    %v163 = vpack.c.b16 %v141, %v139
    %v164 = vpack.c.b16 %v142, %v140
    %v165 = vpack.c.b16 %v145, %v143
    %v166 = vpack.c.b16 %v146, %v144
    %v167 = vpack.c.b16 %v149, %v147
    %v168 = vpack.c.b16 %v150, %v148
    %v169 = vpack.c.b16 %v153, %v151
    %v170 = vpack.c.b16 %v154, %v152
    %187 = vmatpush.bf16.msra.mxu0 %v169
    %188 = vmatpush.bf16.msra.mxu0 %v167
    %189 = vmatpush.bf16.msra.mxu0 %v165
    %190 = vmatpush.bf16.msra.mxu0 %v163
    %191 = vmatpush.bf16.msra.mxu0 %v161
    %192 = vmatpush.bf16.msra.mxu0 %v159
    %193 = vmatpush.bf16.msra.mxu0 %v157
    %194 = vmatpush.bf16.msra.mxu0 %v155
    %195 = vmatmul.bf16.gmra.mxu0 %v105
    %v196 = vpop.f32.mrf.mxu0
    %v197 = vadd.f32 %v97, %v196
    %v198 = vpop.f32.mrf.mxu0
    %v199 = vadd.f32 %v97, %v198
    %200 = vdwg.mxu0
    %201 = vmatpush.bf16.msra.mxu0 %v170
    %202 = vmatpush.bf16.msra.mxu0 %v168
    %203 = vmatpush.bf16.msra.mxu0 %v166
    %204 = vmatpush.bf16.msra.mxu0 %v164
    %205 = vmatpush.bf16.msra.mxu0 %v162
    %206 = vmatpush.bf16.msra.mxu0 %v160
    %207 = vmatpush.bf16.msra.mxu0 %v158
    %208 = vmatpush.bf16.msra.mxu0 %v156
    %209 = vmatmul.bf16.gmra.mxu0 %v105
    %v210 = vpop.f32.mrf.mxu0
    %v211 = vadd.f32 %v98, %v210
    %v212 = vpop.f32.mrf.mxu0
    %v213 = vadd.f32 %v98, %v212
    %214 = vdwg.mxu0
    %v215 = vmax.f32 %v197, 0.0
    %v216 = vmax.f32 %v211, 0.0
    %v217 = vmax.f32 %v199, 0.0
    %v218 = vmax.f32 %v213, 0.0
    %v219 = vpack.c.bf16 %v217, %v215
    %v220 = vpack.c.bf16 %v218, %v216
    %v221 = vld [vmem:[#allocation2] sm:$0xff]
    %v222 = vld [vmem:[#allocation2 + $0x8] sm:$0xff]
    %v223 = vld [vmem:[%s3] sm:$0xf]
    %v224 = vld [vmem:[%s3 + $0x4] sm:$0xf]
    %v225 = vld [vmem:[%s3 + $0x8] sm:$0xf]
    %v226 = vld [vmem:[%s3 + $0xc] sm:$0xf]
    %v227 = vld [vmem:[%s3 + $0x10] sm:$0xf]
    %v228 = vld [vmem:[%s3 + $0x14] sm:$0xf]
    %v229 = vld [vmem:[%s3 + $0x18] sm:$0xf]
    %v230 = vld [vmem:[%s3 + $0x1c] sm:$0xf]
    %v231 = vld [vmem:[%s3 + $0x20] sm:$0xf]
    %v232 = vld [vmem:[%s3 + $0x24] sm:$0xf]
    %v233 = vld [vmem:[%s3 + $0x28] sm:$0xf]
    %v234 = vld [vmem:[%s3 + $0x2c] sm:$0xf]
    %v235 = vld [vmem:[%s3 + $0x30] sm:$0xf]
    %v236 = vld [vmem:[%s3 + $0x34] sm:$0xf]
    %v237 = vld [vmem:[%s3 + $0x38] sm:$0xf]
    %v238 = vld [vmem:[%s3 + $0x3c] sm:$0xf]
    %v239 = vld [vmem:[%s3 + $0x40] sm:$0xf]
    %v240 = vld [vmem:[%s3 + $0x44] sm:$0xf]
    %v241 = vld [vmem:[%s3 + $0x48] sm:$0xf]
    %v242 = vld [vmem:[%s3 + $0x4c] sm:$0xf]
    %v243 = vld [vmem:[%s3 + $0x50] sm:$0xf]
    %v244 = vld [vmem:[%s3 + $0x54] sm:$0xf]
    %v245 = vld [vmem:[%s3 + $0x58] sm:$0xf]
    %v246 = vld [vmem:[%s3 + $0x5c] sm:$0xf]
    %v247 = vld [vmem:[%s3 + $0x60] sm:$0xf]
    %v248 = vld [vmem:[%s3 + $0x64] sm:$0xf]
    %v249 = vld [vmem:[%s3 + $0x68] sm:$0xf]
    %v250 = vld [vmem:[%s3 + $0x6c] sm:$0xf]
    %v251 = vld [vmem:[%s3 + $0x70] sm:$0xf]
    %v252 = vld [vmem:[%s3 + $0x74] sm:$0xf]
    %v253 = vld [vmem:[%s3 + $0x78] sm:$0xf]
    %v254 = vld [vmem:[%s3 + $0x7c] sm:$0xf]
    %v287 = vunpack.c.l.b16 %v223
    %v288 = vunpack.c.l.b16 %v224
    %v289 = vunpack.c.l.b16 %v225
    %v290 = vunpack.c.l.b16 %v226
    %v291 = vunpack.c.l.b16 %v227
    %v292 = vunpack.c.l.b16 %v228
    %v293 = vunpack.c.l.b16 %v229
    %v294 = vunpack.c.l.b16 %v230
    %v295 = vunpack.c.l.b16 %v231
    %v296 = vunpack.c.l.b16 %v232
    %v297 = vunpack.c.l.b16 %v233
    %v298 = vunpack.c.l.b16 %v234
    %v299 = vunpack.c.l.b16 %v235
    %v300 = vunpack.c.l.b16 %v236
    %v301 = vunpack.c.l.b16 %v237
    %v302 = vunpack.c.l.b16 %v238
    %v303 = vunpack.c.l.b16 %v239
    %v304 = vunpack.c.l.b16 %v240
    %v305 = vunpack.c.l.b16 %v241
    %v306 = vunpack.c.l.b16 %v242
    %v307 = vunpack.c.l.b16 %v243
    %v308 = vunpack.c.l.b16 %v244
    %v309 = vunpack.c.l.b16 %v245
    %v310 = vunpack.c.l.b16 %v246
    %v311 = vunpack.c.l.b16 %v247
    %v312 = vunpack.c.l.b16 %v248
    %v313 = vunpack.c.l.b16 %v249
    %v314 = vunpack.c.l.b16 %v250
    %v315 = vunpack.c.l.b16 %v251
    %v316 = vunpack.c.l.b16 %v252
    %v317 = vunpack.c.l.b16 %v253
    %v318 = vunpack.c.l.b16 %v254
    %v319 = vpack.c.b16 %v288, %v287
    %v320 = vpack.c.b16 %v290, %v289
    %v321 = vpack.c.b16 %v292, %v291
    %v322 = vpack.c.b16 %v294, %v293
    %v323 = vpack.c.b16 %v296, %v295
    %v324 = vpack.c.b16 %v298, %v297
    %v325 = vpack.c.b16 %v300, %v299
    %v326 = vpack.c.b16 %v302, %v301
    %v327 = vpack.c.b16 %v304, %v303
    %v328 = vpack.c.b16 %v306, %v305
    %v329 = vpack.c.b16 %v308, %v307
    %v330 = vpack.c.b16 %v310, %v309
    %v331 = vpack.c.b16 %v312, %v311
    %v332 = vpack.c.b16 %v314, %v313
    %v333 = vpack.c.b16 %v316, %v315
    %v334 = vpack.c.b16 %v318, %v317
    %351 = vmatpush.bf16.msra.mxu0 %v326
    %352 = vmatpush.bf16.msra.mxu0 %v325
    %353 = vmatpush.bf16.msra.mxu0 %v324
    %354 = vmatpush.bf16.msra.mxu0 %v323
    %355 = vmatpush.bf16.msra.mxu0 %v322
    %356 = vmatpush.bf16.msra.mxu0 %v321
    %357 = vmatpush.bf16.msra.mxu0 %v320
    %358 = vmatpush.bf16.msra.mxu0 %v319
    %359 = vmatmul.bf16.gmra.mxu0 %v219
    %v360 = vpop.f32.mrf.mxu0
    %v361 = vadd.f32 0.0, %v360
    %v362 = vpop.f32.mrf.mxu0
    %v363 = vadd.f32 0.0, %v362
    %364 = vdwg.mxu0
    %365 = vmatpush.bf16.msra.mxu0 %v334
    %366 = vmatpush.bf16.msra.mxu0 %v333
    %367 = vmatpush.bf16.msra.mxu0 %v332
    %368 = vmatpush.bf16.msra.mxu0 %v331
    %369 = vmatpush.bf16.msra.mxu0 %v330
    %370 = vmatpush.bf16.msra.mxu0 %v329
    %371 = vmatpush.bf16.msra.mxu0 %v328
    %372 = vmatpush.bf16.msra.mxu0 %v327
    %373 = vmatmul.bf16.gmra.mxu0 %v220
    %v374 = vpop.f32.mrf.mxu0
    %v375 = vadd.f32 %v361, %v374
    %v376 = vpop.f32.mrf.mxu0
    %v377 = vadd.f32 %v363, %v376
    %378 = vdwg.mxu0
    %v379 = vadd.f32 %v221, %v375
    %v380 = vadd.f32 %v222, %v377
    %381 = vst [vmem:[#allocation2] sm:$0xff] %v379
    %382 = vst [vmem:[#allocation2 + $0x8] sm:$0xff] %v380
    // Predicated region
    $region46: #{transformer_forward.48} parent=1 // pred_check
      %p383 = pneg %p67
    $region47: #{transformer_forward.48} parent=1 // pred_check_branch
      %385 = sbr.rel (%p383) target = $region49
    $region48: #{transformer_forward.48} parent=1 // pred_region
      %v386 = vld [vmem:[#allocation2] sm:$0xff]
      %v387 = vld [vmem:[#allocation2 + $0x8] sm:$0xff]
      %v388 = vld [vmem:[%s0] sm:$0xf]
      %v389 = vld [vmem:[%s0 + $0x4] sm:$0xf]
      %v390 = vunpack.c.l.bf16 %v388
      %v391 = vunpack.c.l.bf16 %v389
      %v392 = vadd.f32 %v386, %v390
      %v393 = vadd.f32 %v387, %v391
      %v394 = vld [vmem:[#allocation5] sm:$0x1]
      %v395 = vld [vmem:[#allocation7] sm:$0x1]
      %396 = vadd.xlane.f32.xlu0 %v392
      %v397 = vpop.xlane.xlu0 %396
      %398 = vadd.xlane.f32.xlu0 %v393
      %v399 = vpop.xlane.xlu0 %398
      %v400 = vrcp.pop 128.0
      %v401 = vmul.f32 128.0, %v400
      %v402 = vsub.f32 1.0, %v401
      %v403 = vmul.f32 %v400, %v402
      %v404 = vadd.f32 %v400, %v403
      %vm405 = vweird.f32 %v400
      %v406 = vsel %vm405, %v400, %v404
      %v407 = vmul.f32 %v397, %v406
      %v408 = vmul.f32 %v399, %v406
      %v409 = vsub.f32 %v392, %v407
      %v410 = vsub.f32 %v393, %v408
      %v411 = vmul.f32 %v409, %v409
      %v412 = vmul.f32 %v410, %v410
      %413 = vadd.xlane.f32.xlu0 %v411
      %v414 = vpop.xlane.xlu0 %413
      %415 = vadd.xlane.f32.xlu0 %v412
      %v416 = vpop.xlane.xlu0 %415
      %v417 = vmul.f32 %v414, %v406
      %v418 = vmul.f32 %v416, %v406
      %v419 = vadd.f32 %v417, 1e-05
      %v420 = vadd.f32 %v418, 1e-05
      %v421 = vrsqrt.pop %v419
      %v422 = vmul.f32 %v421, %v419
      %v423 = vmul.f32 %v422, %v421
      %v424 = vmul.f32 0.5, %v423
      %v425 = vsub.f32 1.5, %v424
      %v426 = vmul.f32 %v421, %v425
      %vm427 = vweird.f32 %v419
      %vm428 = vweird.f32 %v421
      %vm429 = vmor %vm427, %vm428
      %v430 = vsel %vm429, %v421, %v426
      %v431 = vrsqrt.pop %v420
      %v432 = vmul.f32 %v431, %v420
      %v433 = vmul.f32 %v432, %v431
      %v434 = vmul.f32 0.5, %v433
      %v435 = vsub.f32 1.5, %v434
      %v436 = vmul.f32 %v431, %v435
      %vm437 = vweird.f32 %v420
      %vm438 = vweird.f32 %v431
      %vm439 = vmor %vm437, %vm438
      %v440 = vsel %vm439, %v431, %v436
      %v441 = vmul.f32 %v409, %v430
      %v442 = vmul.f32 %v410, %v440
      %v444 = vperm.slane %v394, 0
      %v446 = vmul.f32 %v441, %v444
      %v447 = vmul.f32 %v442, %v444
      %v449 = vperm.slane %v395, 0
      %v451 = vadd.f32 %v446, %v449
      %v452 = vadd.f32 %v447, %v449
      %v453 = vpack.c.bf16 %v451, %v451
      %v454 = vpack.c.bf16 %v452, %v452
      %455 = vst [vmem:[%s7] sm:$0xf] %v453
      %456 = vst [vmem:[%s7 + $0x4] sm:$0xf] %v454
    $region49: #{transformer_forward.48} parent=1 // pred_fallthru
      _
    // Predicated region
    $region50: #{transformer_forward.48} parent=1 // pred_check
      _
    $region51: #{transformer_forward.48} parent=1 // pred_check_branch
      %458 = sbr.rel (0) target = $region53
    $region52: #{transformer_forward.48} parent=1 // pred_region
      _
    $region53: #{transformer_forward.48} parent=1 // pred_fallthru
      _
    // Predicated region
    $region54: #{transformer_forward.48} parent=1 // pred_check
      _
    $region55: #{transformer_forward.48} parent=1 // pred_check_branch
      %460 = sbr.rel (0) target = $region57
    $region56: #{transformer_forward.48} parent=1 // pred_region
      _
    $region57: #{transformer_forward.48} parent=1 // pred_fallthru
      _
    %461 = vsyncpa [#allocation4], 1
    %462 = vsyncpa [#allocation6], 1

</llo_original>
